<compile_context>
chip_gen: v7x
topology: tpu7x:2x2x1
jax: 0.10.0
libtpu: 0.0.40
codegen_flags: <defaults>
</compile_context>

<pallas_src>
import numpy as np
import jax
import jax.numpy as jnp
from jax.experimental import pallas as pl
from jax.experimental.pallas import tpu as pltpu

BN_EPS = 1e-5
KSIZE = 5
STRIDE = 2


def conv_out_size(s, k=KSIZE, stride=STRIDE):
    return (s - (k - 1) - 1) // stride + 1


# ----------------------------------------------------------------------------
# Fused Pallas kernel: 3 x (shifted-matmul conv + train-mode BN) + Linear
# ----------------------------------------------------------------------------
def _tile_lanes(v, reps):
    """Tile a (1, C) value `reps` times along the lane axis (O(log reps) concats)."""
    result = None
    chunk = v
    r = reps
    while r > 0:
        if r & 1:
            result = chunk if result is None else jnp.concatenate([result, chunk], axis=1)
        r >>= 1
        if r:
            chunk = jnp.concatenate([chunk, chunk], axis=1)
    return result


def _dqn_fused_kernel(x_ref,
                      s1_ref, bw1_ref, g1_ref, b1_ref,
                      s2_ref, bw2_ref, g2_ref, b2_ref,
                      s3_ref, bw3_ref, g3_ref, b3_ref,
                      gfc_ref, wfc_ref, fcb_ref,
                      o_ref):
    def conv_bn(x_bf16, s_ref, bw_ref, g_ref, b_ref):
        k_taps, m_rows, _ = s_ref.shape          # (5, N*OH, N*H_in)
        cout = g_ref.shape[1]
        l_cols = bw_ref.shape[2]                  # OW*Cout
        ow = l_cols // cout

        # Shifted-matmul convolution (no im2col, no conv bias -- BN cancels it).
        acc = None
        for i in range(k_taps):
            # Row selection: picks input rows 2*oh + i for every (n, oh).
            rows = jnp.dot(s_ref[i], x_bf16, preferred_element_type=jnp.float32)
            part = jnp.dot(rows.astype(jnp.bfloat16), bw_ref[i],
                           preferred_element_type=jnp.float32)
            acc = part if acc is None else acc + part        # (N*OH, OW*Cout) f32

        # Training-mode BatchNorm, single pass: per-channel sum / sum-of-squares.
        colsum = jnp.sum(acc, axis=0, keepdims=True)          # (1, OW*Cout)
        colsumsq = jnp.sum(acc * acc, axis=0, keepdims=True)  # (1, OW*Cout)
        ch_sum = colsum[:, 0:cout]
        ch_sumsq = colsumsq[:, 0:cout]
        for w in range(1, ow):
            ch_sum = ch_sum + colsum[:, w * cout:(w + 1) * cout]
            ch_sumsq = ch_sumsq + colsumsq[:, w * cout:(w + 1) * cout]
        inv_count = 1.0 / float(m_rows * ow)                  # 1 / (N*OH*OW)
        mean = ch_sum * inv_count
        var = ch_sumsq * inv_count - mean * mean               # biased variance
        scale = g_ref[...] * jax.lax.rsqrt(var + BN_EPS)       # (1, Cout)
        shift = b_ref[...] - mean * scale
        scale_cols = _tile_lanes(scale, ow)                    # (1, OW*Cout)
        shift_cols = _tile_lanes(shift, ow)
        y = acc * scale_cols + shift_cols                      # fused affine
        return y.astype(jnp.bfloat16)

    a = conv_bn(x_ref[...], s1_ref, bw1_ref, g1_ref, b1_ref)
    a = conv_bn(a, s2_ref, bw2_ref, g2_ref, b2_ref)
    a = conv_bn(a, s3_ref, bw3_ref, g3_ref, b3_ref)

    # Final Linear layer folded into the same kernel (no extra launch).
    oh3 = gfc_ref.shape[0]
    out = None
    for oh in range(oh3):
        rows = jnp.dot(gfc_ref[oh], a, preferred_element_type=jnp.float32)  # (N, OW3*C3)
        part = jnp.dot(rows.astype(jnp.bfloat16), wfc_ref[oh],
                       preferred_element_type=jnp.float32)                   # (N, O)
        out = part if out is None else out + part
    o_ref[...] = out + fcb_ref[...]


def _full_block_spec(arr):
    ndim = arr.ndim
    return pl.BlockSpec(arr.shape, lambda i, _n=ndim: (0,) * _n)


@jax.jit
def dqn_forward(kparams, x_nchw):
    n, c, h, w = x_nchw.shape
    # NCHW -> rows = (n, h), interleaved cols = (w, c); bf16 operands for the MXU.
    x2d = jnp.transpose(x_nchw, (0, 2, 3, 1)).reshape(n * h, w * c).astype(jnp.bfloat16)

    inputs = (
        x2d,
        kparams["s1"], kparams["bw1"], kparams["g1"], kparams["b1"],
        kparams["s2"], kparams["bw2"], kparams["g2"], kparams["b2"],
        kparams["s3"], kparams["bw3"], kparams["g3"], kparams["b3"],
        kparams["gfc"], kparams["wfc"], kparams["fcb"],
    )
    outputs_dim = kparams["fcb"].shape[1]
    return pl.pallas_call(
        _dqn_fused_kernel,
        grid=(1,),
        out_shape=jax.ShapeDtypeStruct((n, outputs_dim), jnp.float32),
        in_specs=[_full_block_spec(a) for a in inputs],
        out_specs=pl.BlockSpec((n, outputs_dim), lambda i: (0, 0)),
        compiler_params=pltpu.CompilerParams(dimension_semantics=("arbitrary",)),
    )(*inputs)


# ----------------------------------------------------------------------------
# One-time parameter preparation (re-run only if weights / batch / size change)
# ----------------------------------------------------------------------------
def prepare_params(params, h, w, batch):
    kp = {}
    chans = [3, 16, 32, 32]
    cur_h, cur_w = h, w
    for l in range(1, 4):
        cin, cout = chans[l - 1], chans[l]
        oh, ow = conv_out_size(cur_h), conv_out_size(cur_w)

        # S[i][n*OH + r, n*H + 2*r + i] = 1  (row selection, exact in bf16)
        sel = np.zeros((KSIZE, batch * oh, batch * cur_h), np.float32)
        for i in range(KSIZE):
            for nn in range(batch):
                for r in range(oh):
                    sel[i, nn * oh + r, nn * cur_h + STRIDE * r + i] = 1.0
        kp[f"s{l}"] = jnp.asarray(sel, jnp.bfloat16)

        # BW[i][w*Cin + ci, ow*Cout + co] = W[co, ci, i, w - 2*ow] (0 elsewhere)
        m_struct = np.zeros((KSIZE, cur_w, ow), np.float32)
        for j in range(KSIZE):
            for q in range(ow):
                m_struct[j, STRIDE * q + j, q] = 1.0
        w_t = jnp.transpose(params[f"conv{l}_w"], (2, 3, 1, 0))  # (kh, kw, ci, co)
        bw = jnp.einsum("ijcd,jwo->iwcod", w_t, jnp.asarray(m_struct))
        kp[f"bw{l}"] = bw.reshape(KSIZE, cur_w * cin, ow * cout).astype(jnp.bfloat16)

        kp[f"g{l}"] = params[f"bn{l}_gamma"].reshape(1, cout).astype(jnp.float32)
        kp[f"b{l}"] = params[f"bn{l}_beta"].reshape(1, cout).astype(jnp.float32)
        # conv bias intentionally NOT passed: cancelled exactly by train-mode BN.
        cur_h, cur_w = oh, ow

    oh3, ow3, c3 = cur_h, cur_w, chans[3]
    outputs = params["fc_w"].shape[0]

    # G[oh][n, n*OH3 + oh] = 1  (gathers the per-sample output rows for the FC)
    gsel = np.zeros((oh3, batch, batch * oh3), np.float32)
    for r in range(oh3):
        for nn in range(batch):
            gsel[r, nn, nn * oh3 + r] = 1.0
    kp["gfc"] = jnp.asarray(gsel, jnp.bfloat16)

    # FC weight rows permuted from PyTorch NCHW-flatten order (co, oh, ow) to
    # the kernel's (oh, ow, co) activation layout.
    wfc = params["fc_w"].reshape(outputs, c3, oh3, ow3)
    wfc = jnp.transpose(wfc, (2, 3, 1, 0)).reshape(oh3, ow3 * c3, outputs)
    kp["wfc"] = wfc.astype(jnp.bfloat16)
    kp["fcb"] = params["fc_b"].reshape(1, outputs).astype(jnp.float32)
    return kp


# ----------------------------------------------------------------------------
# Parameter init (mirrors the PyTorch module, deterministic)
# ----------------------------------------------------------------------------
def init_params(key, w, h, outputs):
    params = {}

    def conv_init(key, cout, cin, k):
        kw_, kb_ = jax.random.split(key)
        fan_in = cin * k * k
        bound = 1.0 / np.sqrt(fan_in)
        weight = jax.random.uniform(kw_, (cout, cin, k, k), jnp.float32, -bound, bound)
        bias = jax.random.uniform(kb_, (cout,), jnp.float32, -bound, bound)
        return weight, bias

    k1, k2, k3, k4 = jax.random.split(key, 4)
    params["conv1_w"], params["conv1_b"] = conv_init(k1, 16, 3, KSIZE)
    params["conv2_w"], params["conv2_b"] = conv_init(k2, 32, 16, KSIZE)
    params["conv3_w"], params["conv3_b"] = conv_init(k3, 32, 32, KSIZE)
    for i, c in zip((1, 2, 3), (16, 32, 32)):
        params[f"bn{i}_gamma"] = jnp.ones((c,), jnp.float32)
        params[f"bn{i}_beta"] = jnp.zeros((c,), jnp.float32)

    cw = conv_out_size(conv_out_size(conv_out_size(w)))
    ch = conv_out_size(conv_out_size(conv_out_size(h)))
    in_features = cw * ch * 32
    bound = float(np.sqrt(6.0 / (in_features + outputs)))
    params["fc_w"] = jax.random.uniform(
        k4, (outputs, in_features), jnp.float32, -bound, bound)
    params["fc_b"] = jnp.full((outputs,), 0.01, jnp.float32)
    return params


# ----------------------------------------------------------------------------
# Pure-JAX reference (faithful PyTorch semantics, incl. conv bias) for checking
# ----------------------------------------------------------------------------
def dqn_reference(params, x_nchw):
    x = x_nchw
    for l in (1, 2, 3):
        x = jax.lax.conv_general_dilated(
            x, params[f"conv{l}_w"], window_strides=(STRIDE, STRIDE),
            padding="VALID", dimension_numbers=("NCHW", "OIHW", "NCHW"),
            precision=jax.lax.Precision.HIGHEST)
        x = x + params[f"conv{l}_b"].reshape(1, -1, 1, 1)
        mean = jnp.mean(x, axis=(0, 2, 3), keepdims=True)
        var = jnp.mean(jnp.square(x - mean), axis=(0, 2, 3), keepdims=True)
        x = (x - mean) * jax.lax.rsqrt(var + BN_EPS)
        x = (x * params[f"bn{l}_gamma"].reshape(1, -1, 1, 1)
             + params[f"bn{l}_beta"].reshape(1, -1, 1, 1))
    x = x.reshape(x.shape[0], -1)
    return (jnp.dot(x, params["fc_w"].T, precision=jax.lax.Precision.HIGHEST)
            + params["fc_b"])


if __name__ == "__main__":
    # 3 stride-2 5x5 valid convs need >= 29x29 input; 40x40 -> 18 -> 7 -> 2.
    BATCH, H, W, OUTPUTS = 2, 40, 40, 4

    key = jax.random.PRNGKey(0)
    k_params, k_x = jax.random.split(key)
    params = init_params(k_params, W, H, OUTPUTS)
    x = jax.random.normal(k_x, (BATCH, 3, H, W), jnp.float32)  # NCHW like PyTorch

    kparams = prepare_params(params, H, W, BATCH)   # one-time weight-layout prep
    out = dqn_forward(kparams, x)
    jax.block_until_ready(out)
    assert out.shape == (BATCH, OUTPUTS), out.shape

    # Correctness check vs. faithful f32 reference (loose tol for bf16 MXU path).
    ref = dqn_reference(params, x)
    np.testing.assert_allclose(np.asarray(out), np.asarray(ref), rtol=0.15, atol=0.15)

    print("KERNEL_OK")
</pallas_src>

<mosaic_0001>
module attributes {stable_mosaic.version = 11 : i64} {
  func.func @_dqn_fused_kernel(%arg0: i32, %arg1: memref<80x120xbf16, #tpu.memory_space<vmem>>, %arg2: memref<5x36x80xbf16, #tpu.memory_space<vmem>>, %arg3: memref<5x120x288xbf16, #tpu.memory_space<vmem>>, %arg4: memref<1x16xf32, #tpu.memory_space<vmem>>, %arg5: memref<1x16xf32, #tpu.memory_space<vmem>>, %arg6: memref<5x14x36xbf16, #tpu.memory_space<vmem>>, %arg7: memref<5x288x224xbf16, #tpu.memory_space<vmem>>, %arg8: memref<1x32xf32, #tpu.memory_space<vmem>>, %arg9: memref<1x32xf32, #tpu.memory_space<vmem>>, %arg10: memref<5x4x14xbf16, #tpu.memory_space<vmem>>, %arg11: memref<5x224x64xbf16, #tpu.memory_space<vmem>>, %arg12: memref<1x32xf32, #tpu.memory_space<vmem>>, %arg13: memref<1x32xf32, #tpu.memory_space<vmem>>, %arg14: memref<2x2x4xbf16, #tpu.memory_space<vmem>>, %arg15: memref<2x64x4xbf16, #tpu.memory_space<vmem>>, %arg16: memref<1x4xf32, #tpu.memory_space<vmem>>, %arg17: memref<2x4xf32, #tpu.memory_space<vmem>>) attributes {dimension_semantics = [#tpu.dimension_semantics<arbitrary>], iteration_bounds = array<i64: 1>, scalar_prefetch = 0 : i64, scratch_operands = 0 : i64, tpu.core_type = #tpu.core_type<tc>, window_params = [{pipeline_mode = #tpu.pipeline_mode<synchronous>, transform_indices = @transform_0, window_bounds = array<i64: 80, 120>}, {pipeline_mode = #tpu.pipeline_mode<synchronous>, transform_indices = @transform_1, window_bounds = array<i64: 5, 36, 80>}, {pipeline_mode = #tpu.pipeline_mode<synchronous>, transform_indices = @transform_2, window_bounds = array<i64: 5, 120, 288>}, {pipeline_mode = #tpu.pipeline_mode<synchronous>, transform_indices = @transform_3, window_bounds = array<i64: 1, 16>}, {pipeline_mode = #tpu.pipeline_mode<synchronous>, transform_indices = @transform_4, window_bounds = array<i64: 1, 16>}, {pipeline_mode = #tpu.pipeline_mode<synchronous>, transform_indices = @transform_5, window_bounds = array<i64: 5, 14, 36>}, {pipeline_mode = #tpu.pipeline_mode<synchronous>, transform_indices = @transform_6, window_bounds = array<i64: 5, 288, 224>}, {pipeline_mode = #tpu.pipeline_mode<synchronous>, transform_indices = @transform_7, window_bounds = array<i64: 1, 32>}, {pipeline_mode = #tpu.pipeline_mode<synchronous>, transform_indices = @transform_8, window_bounds = array<i64: 1, 32>}, {pipeline_mode = #tpu.pipeline_mode<synchronous>, transform_indices = @transform_9, window_bounds = array<i64: 5, 4, 14>}, {pipeline_mode = #tpu.pipeline_mode<synchronous>, transform_indices = @transform_10, window_bounds = array<i64: 5, 224, 64>}, {pipeline_mode = #tpu.pipeline_mode<synchronous>, transform_indices = @transform_11, window_bounds = array<i64: 1, 32>}, {pipeline_mode = #tpu.pipeline_mode<synchronous>, transform_indices = @transform_12, window_bounds = array<i64: 1, 32>}, {pipeline_mode = #tpu.pipeline_mode<synchronous>, transform_indices = @transform_13, window_bounds = array<i64: 2, 2, 4>}, {pipeline_mode = #tpu.pipeline_mode<synchronous>, transform_indices = @transform_14, window_bounds = array<i64: 2, 64, 4>}, {pipeline_mode = #tpu.pipeline_mode<synchronous>, transform_indices = @transform_15, window_bounds = array<i64: 1, 4>}, {pipeline_mode = #tpu.pipeline_mode<synchronous>, transform_indices = @transform_16, window_bounds = array<i64: 2, 4>}]} {
    %c0 = arith.constant 0 : index
    %c0_0 = arith.constant 0 : index
    %0 = vector.load %arg1[%c0, %c0_0] : memref<80x120xbf16, #tpu.memory_space<vmem>>, vector<80x120xbf16>
    %c0_1 = arith.constant 0 : index
    %c0_2 = arith.constant 0 : index
    %c0_3 = arith.constant 0 : index
    %1 = vector.load %arg2[%c0_1, %c0_2, %c0_3] : memref<5x36x80xbf16, #tpu.memory_space<vmem>>, vector<1x36x80xbf16>
    %2 = vector.shape_cast %1 : vector<1x36x80xbf16> to vector<36x80xbf16>
    %cst = arith.constant dense<0.000000e+00> : vector<36x120xf32>
    %3 = tpu.matmul %2, %0, %cst {dimension_numbers = #tpu.dot_dimension_numbers<[1], [0], [0], [1], [0, 0, 1, 1], [], []>} : vector<36x80xbf16>, vector<80x120xbf16>, vector<36x120xf32> -> vector<36x120xf32>
    %4 = arith.truncf %3 : vector<36x120xf32> to vector<36x120xbf16>
    %c0_4 = arith.constant 0 : index
    %c0_5 = arith.constant 0 : index
    %c0_6 = arith.constant 0 : index
    %5 = vector.load %arg3[%c0_4, %c0_5, %c0_6] : memref<5x120x288xbf16, #tpu.memory_space<vmem>>, vector<1x120x288xbf16>
    %6 = vector.shape_cast %5 : vector<1x120x288xbf16> to vector<120x288xbf16>
    %cst_7 = arith.constant dense<0.000000e+00> : vector<36x288xf32>
    %7 = tpu.matmul %4, %6, %cst_7 {dimension_numbers = #tpu.dot_dimension_numbers<[1], [0], [0], [1], [0, 0, 1, 1], [], []>} : vector<36x120xbf16>, vector<120x288xbf16>, vector<36x288xf32> -> vector<36x288xf32>
    %c1 = arith.constant 1 : index
    %c0_8 = arith.constant 0 : index
    %c0_9 = arith.constant 0 : index
    %8 = vector.load %arg2[%c1, %c0_8, %c0_9] : memref<5x36x80xbf16, #tpu.memory_space<vmem>>, vector<1x36x80xbf16>
    %9 = vector.shape_cast %8 : vector<1x36x80xbf16> to vector<36x80xbf16>
    %cst_10 = arith.constant dense<0.000000e+00> : vector<36x120xf32>
    %10 = tpu.matmul %9, %0, %cst_10 {dimension_numbers = #tpu.dot_dimension_numbers<[1], [0], [0], [1], [0, 0, 1, 1], [], []>} : vector<36x80xbf16>, vector<80x120xbf16>, vector<36x120xf32> -> vector<36x120xf32>
    %11 = arith.truncf %10 : vector<36x120xf32> to vector<36x120xbf16>
    %c1_11 = arith.constant 1 : index
    %c0_12 = arith.constant 0 : index
    %c0_13 = arith.constant 0 : index
    %12 = vector.load %arg3[%c1_11, %c0_12, %c0_13] : memref<5x120x288xbf16, #tpu.memory_space<vmem>>, vector<1x120x288xbf16>
    %13 = vector.shape_cast %12 : vector<1x120x288xbf16> to vector<120x288xbf16>
    %cst_14 = arith.constant dense<0.000000e+00> : vector<36x288xf32>
    %14 = tpu.matmul %11, %13, %cst_14 {dimension_numbers = #tpu.dot_dimension_numbers<[1], [0], [0], [1], [0, 0, 1, 1], [], []>} : vector<36x120xbf16>, vector<120x288xbf16>, vector<36x288xf32> -> vector<36x288xf32>
    %15 = arith.addf %7, %14 : vector<36x288xf32>
    %c2 = arith.constant 2 : index
    %c0_15 = arith.constant 0 : index
    %c0_16 = arith.constant 0 : index
    %16 = vector.load %arg2[%c2, %c0_15, %c0_16] : memref<5x36x80xbf16, #tpu.memory_space<vmem>>, vector<1x36x80xbf16>
    %17 = vector.shape_cast %16 : vector<1x36x80xbf16> to vector<36x80xbf16>
    %cst_17 = arith.constant dense<0.000000e+00> : vector<36x120xf32>
    %18 = tpu.matmul %17, %0, %cst_17 {dimension_numbers = #tpu.dot_dimension_numbers<[1], [0], [0], [1], [0, 0, 1, 1], [], []>} : vector<36x80xbf16>, vector<80x120xbf16>, vector<36x120xf32> -> vector<36x120xf32>
    %19 = arith.truncf %18 : vector<36x120xf32> to vector<36x120xbf16>
    %c2_18 = arith.constant 2 : index
    %c0_19 = arith.constant 0 : index
    %c0_20 = arith.constant 0 : index
    %20 = vector.load %arg3[%c2_18, %c0_19, %c0_20] : memref<5x120x288xbf16, #tpu.memory_space<vmem>>, vector<1x120x288xbf16>
    %21 = vector.shape_cast %20 : vector<1x120x288xbf16> to vector<120x288xbf16>
    %cst_21 = arith.constant dense<0.000000e+00> : vector<36x288xf32>
    %22 = tpu.matmul %19, %21, %cst_21 {dimension_numbers = #tpu.dot_dimension_numbers<[1], [0], [0], [1], [0, 0, 1, 1], [], []>} : vector<36x120xbf16>, vector<120x288xbf16>, vector<36x288xf32> -> vector<36x288xf32>
    %23 = arith.addf %15, %22 : vector<36x288xf32>
    %c3 = arith.constant 3 : index
    %c0_22 = arith.constant 0 : index
    %c0_23 = arith.constant 0 : index
    %24 = vector.load %arg2[%c3, %c0_22, %c0_23] : memref<5x36x80xbf16, #tpu.memory_space<vmem>>, vector<1x36x80xbf16>
    %25 = vector.shape_cast %24 : vector<1x36x80xbf16> to vector<36x80xbf16>
    %cst_24 = arith.constant dense<0.000000e+00> : vector<36x120xf32>
    %26 = tpu.matmul %25, %0, %cst_24 {dimension_numbers = #tpu.dot_dimension_numbers<[1], [0], [0], [1], [0, 0, 1, 1], [], []>} : vector<36x80xbf16>, vector<80x120xbf16>, vector<36x120xf32> -> vector<36x120xf32>
    %27 = arith.truncf %26 : vector<36x120xf32> to vector<36x120xbf16>
    %c3_25 = arith.constant 3 : index
    %c0_26 = arith.constant 0 : index
    %c0_27 = arith.constant 0 : index
    %28 = vector.load %arg3[%c3_25, %c0_26, %c0_27] : memref<5x120x288xbf16, #tpu.memory_space<vmem>>, vector<1x120x288xbf16>
    %29 = vector.shape_cast %28 : vector<1x120x288xbf16> to vector<120x288xbf16>
    %cst_28 = arith.constant dense<0.000000e+00> : vector<36x288xf32>
    %30 = tpu.matmul %27, %29, %cst_28 {dimension_numbers = #tpu.dot_dimension_numbers<[1], [0], [0], [1], [0, 0, 1, 1], [], []>} : vector<36x120xbf16>, vector<120x288xbf16>, vector<36x288xf32> -> vector<36x288xf32>
    %31 = arith.addf %23, %30 : vector<36x288xf32>
    %c4 = arith.constant 4 : index
    %c0_29 = arith.constant 0 : index
    %c0_30 = arith.constant 0 : index
    %32 = vector.load %arg2[%c4, %c0_29, %c0_30] : memref<5x36x80xbf16, #tpu.memory_space<vmem>>, vector<1x36x80xbf16>
    %33 = vector.shape_cast %32 : vector<1x36x80xbf16> to vector<36x80xbf16>
    %cst_31 = arith.constant dense<0.000000e+00> : vector<36x120xf32>
    %34 = tpu.matmul %33, %0, %cst_31 {dimension_numbers = #tpu.dot_dimension_numbers<[1], [0], [0], [1], [0, 0, 1, 1], [], []>} : vector<36x80xbf16>, vector<80x120xbf16>, vector<36x120xf32> -> vector<36x120xf32>
    %35 = arith.truncf %34 : vector<36x120xf32> to vector<36x120xbf16>
    %c4_32 = arith.constant 4 : index
    %c0_33 = arith.constant 0 : index
    %c0_34 = arith.constant 0 : index
    %36 = vector.load %arg3[%c4_32, %c0_33, %c0_34] : memref<5x120x288xbf16, #tpu.memory_space<vmem>>, vector<1x120x288xbf16>
    %37 = vector.shape_cast %36 : vector<1x120x288xbf16> to vector<120x288xbf16>
    %cst_35 = arith.constant dense<0.000000e+00> : vector<36x288xf32>
    %38 = tpu.matmul %35, %37, %cst_35 {dimension_numbers = #tpu.dot_dimension_numbers<[1], [0], [0], [1], [0, 0, 1, 1], [], []>} : vector<36x120xbf16>, vector<120x288xbf16>, vector<36x288xf32> -> vector<36x288xf32>
    %39 = arith.addf %31, %38 : vector<36x288xf32>
    %cst_36 = arith.constant dense<0.000000e+00> : vector<288xf32>
    %40 = vector.multi_reduction <add>, %39, %cst_36 [0] : vector<36x288xf32> to vector<288xf32>
    %41 = vector.shape_cast %40 : vector<288xf32> to vector<1x288xf32>
    %42 = arith.mulf %39, %39 : vector<36x288xf32>
    %cst_37 = arith.constant dense<0.000000e+00> : vector<288xf32>
    %43 = vector.multi_reduction <add>, %42, %cst_37 [0] : vector<36x288xf32> to vector<288xf32>
    %44 = vector.shape_cast %43 : vector<288xf32> to vector<1x288xf32>
    %45 = vector.extract_strided_slice %41 {offsets = [0, 0], sizes = [1, 16], strides = [1, 1]} : vector<1x288xf32> to vector<1x16xf32>
    %46 = vector.extract_strided_slice %44 {offsets = [0, 0], sizes = [1, 16], strides = [1, 1]} : vector<1x288xf32> to vector<1x16xf32>
    %47 = vector.extract_strided_slice %41 {offsets = [0, 16], sizes = [1, 16], strides = [1, 1]} : vector<1x288xf32> to vector<1x16xf32>
    %48 = arith.addf %45, %47 : vector<1x16xf32>
    %49 = vector.extract_strided_slice %44 {offsets = [0, 16], sizes = [1, 16], strides = [1, 1]} : vector<1x288xf32> to vector<1x16xf32>
    %50 = arith.addf %46, %49 : vector<1x16xf32>
    %51 = vector.extract_strided_slice %41 {offsets = [0, 32], sizes = [1, 16], strides = [1, 1]} : vector<1x288xf32> to vector<1x16xf32>
    %52 = arith.addf %48, %51 : vector<1x16xf32>
    %53 = vector.extract_strided_slice %44 {offsets = [0, 32], sizes = [1, 16], strides = [1, 1]} : vector<1x288xf32> to vector<1x16xf32>
    %54 = arith.addf %50, %53 : vector<1x16xf32>
    %55 = vector.extract_strided_slice %41 {offsets = [0, 48], sizes = [1, 16], strides = [1, 1]} : vector<1x288xf32> to vector<1x16xf32>
    %56 = arith.addf %52, %55 : vector<1x16xf32>
    %57 = vector.extract_strided_slice %44 {offsets = [0, 48], sizes = [1, 16], strides = [1, 1]} : vector<1x288xf32> to vector<1x16xf32>
    %58 = arith.addf %54, %57 : vector<1x16xf32>
    %59 = vector.extract_strided_slice %41 {offsets = [0, 64], sizes = [1, 16], strides = [1, 1]} : vector<1x288xf32> to vector<1x16xf32>
    %60 = arith.addf %56, %59 : vector<1x16xf32>
    %61 = vector.extract_strided_slice %44 {offsets = [0, 64], sizes = [1, 16], strides = [1, 1]} : vector<1x288xf32> to vector<1x16xf32>
    %62 = arith.addf %58, %61 : vector<1x16xf32>
    %63 = vector.extract_strided_slice %41 {offsets = [0, 80], sizes = [1, 16], strides = [1, 1]} : vector<1x288xf32> to vector<1x16xf32>
    %64 = arith.addf %60, %63 : vector<1x16xf32>
    %65 = vector.extract_strided_slice %44 {offsets = [0, 80], sizes = [1, 16], strides = [1, 1]} : vector<1x288xf32> to vector<1x16xf32>
    %66 = arith.addf %62, %65 : vector<1x16xf32>
    %67 = vector.extract_strided_slice %41 {offsets = [0, 96], sizes = [1, 16], strides = [1, 1]} : vector<1x288xf32> to vector<1x16xf32>
    %68 = arith.addf %64, %67 : vector<1x16xf32>
    %69 = vector.extract_strided_slice %44 {offsets = [0, 96], sizes = [1, 16], strides = [1, 1]} : vector<1x288xf32> to vector<1x16xf32>
    %70 = arith.addf %66, %69 : vector<1x16xf32>
    %71 = vector.extract_strided_slice %41 {offsets = [0, 112], sizes = [1, 16], strides = [1, 1]} : vector<1x288xf32> to vector<1x16xf32>
    %72 = arith.addf %68, %71 : vector<1x16xf32>
    %73 = vector.extract_strided_slice %44 {offsets = [0, 112], sizes = [1, 16], strides = [1, 1]} : vector<1x288xf32> to vector<1x16xf32>
    %74 = arith.addf %70, %73 : vector<1x16xf32>
    %75 = vector.extract_strided_slice %41 {offsets = [0, 128], sizes = [1, 16], strides = [1, 1]} : vector<1x288xf32> to vector<1x16xf32>
    %76 = arith.addf %72, %75 : vector<1x16xf32>
    %77 = vector.extract_strided_slice %44 {offsets = [0, 128], sizes = [1, 16], strides = [1, 1]} : vector<1x288xf32> to vector<1x16xf32>
    %78 = arith.addf %74, %77 : vector<1x16xf32>
    %79 = vector.extract_strided_slice %41 {offsets = [0, 144], sizes = [1, 16], strides = [1, 1]} : vector<1x288xf32> to vector<1x16xf32>
    %80 = arith.addf %76, %79 : vector<1x16xf32>
    %81 = vector.extract_strided_slice %44 {offsets = [0, 144], sizes = [1, 16], strides = [1, 1]} : vector<1x288xf32> to vector<1x16xf32>
    %82 = arith.addf %78, %81 : vector<1x16xf32>
    %83 = vector.extract_strided_slice %41 {offsets = [0, 160], sizes = [1, 16], strides = [1, 1]} : vector<1x288xf32> to vector<1x16xf32>
    %84 = arith.addf %80, %83 : vector<1x16xf32>
    %85 = vector.extract_strided_slice %44 {offsets = [0, 160], sizes = [1, 16], strides = [1, 1]} : vector<1x288xf32> to vector<1x16xf32>
    %86 = arith.addf %82, %85 : vector<1x16xf32>
    %87 = vector.extract_strided_slice %41 {offsets = [0, 176], sizes = [1, 16], strides = [1, 1]} : vector<1x288xf32> to vector<1x16xf32>
    %88 = arith.addf %84, %87 : vector<1x16xf32>
    %89 = vector.extract_strided_slice %44 {offsets = [0, 176], sizes = [1, 16], strides = [1, 1]} : vector<1x288xf32> to vector<1x16xf32>
    %90 = arith.addf %86, %89 : vector<1x16xf32>
    %91 = vector.extract_strided_slice %41 {offsets = [0, 192], sizes = [1, 16], strides = [1, 1]} : vector<1x288xf32> to vector<1x16xf32>
    %92 = arith.addf %88, %91 : vector<1x16xf32>
    %93 = vector.extract_strided_slice %44 {offsets = [0, 192], sizes = [1, 16], strides = [1, 1]} : vector<1x288xf32> to vector<1x16xf32>
    %94 = arith.addf %90, %93 : vector<1x16xf32>
    %95 = vector.extract_strided_slice %41 {offsets = [0, 208], sizes = [1, 16], strides = [1, 1]} : vector<1x288xf32> to vector<1x16xf32>
    %96 = arith.addf %92, %95 : vector<1x16xf32>
    %97 = vector.extract_strided_slice %44 {offsets = [0, 208], sizes = [1, 16], strides = [1, 1]} : vector<1x288xf32> to vector<1x16xf32>
    %98 = arith.addf %94, %97 : vector<1x16xf32>
    %99 = vector.extract_strided_slice %41 {offsets = [0, 224], sizes = [1, 16], strides = [1, 1]} : vector<1x288xf32> to vector<1x16xf32>
    %100 = arith.addf %96, %99 : vector<1x16xf32>
    %101 = vector.extract_strided_slice %44 {offsets = [0, 224], sizes = [1, 16], strides = [1, 1]} : vector<1x288xf32> to vector<1x16xf32>
    %102 = arith.addf %98, %101 : vector<1x16xf32>
    %103 = vector.extract_strided_slice %41 {offsets = [0, 240], sizes = [1, 16], strides = [1, 1]} : vector<1x288xf32> to vector<1x16xf32>
    %104 = arith.addf %100, %103 : vector<1x16xf32>
    %105 = vector.extract_strided_slice %44 {offsets = [0, 240], sizes = [1, 16], strides = [1, 1]} : vector<1x288xf32> to vector<1x16xf32>
    %106 = arith.addf %102, %105 : vector<1x16xf32>
    %107 = vector.extract_strided_slice %41 {offsets = [0, 256], sizes = [1, 16], strides = [1, 1]} : vector<1x288xf32> to vector<1x16xf32>
    %108 = arith.addf %104, %107 : vector<1x16xf32>
    %109 = vector.extract_strided_slice %44 {offsets = [0, 256], sizes = [1, 16], strides = [1, 1]} : vector<1x288xf32> to vector<1x16xf32>
    %110 = arith.addf %106, %109 : vector<1x16xf32>
    %111 = vector.extract_strided_slice %41 {offsets = [0, 272], sizes = [1, 16], strides = [1, 1]} : vector<1x288xf32> to vector<1x16xf32>
    %112 = arith.addf %108, %111 : vector<1x16xf32>
    %113 = vector.extract_strided_slice %44 {offsets = [0, 272], sizes = [1, 16], strides = [1, 1]} : vector<1x288xf32> to vector<1x16xf32>
    %114 = arith.addf %110, %113 : vector<1x16xf32>
    %cst_38 = arith.constant 0.00154320989 : f32
    %115 = vector.broadcast %cst_38 : f32 to vector<1x16xf32>
    %116 = arith.mulf %112, %115 : vector<1x16xf32>
    %cst_39 = arith.constant 0.00154320989 : f32
    %117 = vector.broadcast %cst_39 : f32 to vector<1x16xf32>
    %118 = arith.mulf %114, %117 : vector<1x16xf32>
    %119 = arith.mulf %116, %116 : vector<1x16xf32>
    %120 = arith.subf %118, %119 : vector<1x16xf32>
    %c0_40 = arith.constant 0 : index
    %c0_41 = arith.constant 0 : index
    %121 = vector.load %arg4[%c0_40, %c0_41] : memref<1x16xf32, #tpu.memory_space<vmem>>, vector<1x16xf32>
    %cst_42 = arith.constant 9.99999974E-6 : f32
    %122 = vector.broadcast %cst_42 : f32 to vector<1x16xf32>
    %123 = arith.addf %120, %122 : vector<1x16xf32>
    %124 = math.rsqrt %123 : vector<1x16xf32>
    %125 = arith.mulf %121, %124 : vector<1x16xf32>
    %c0_43 = arith.constant 0 : index
    %c0_44 = arith.constant 0 : index
    %126 = vector.load %arg5[%c0_43, %c0_44] : memref<1x16xf32, #tpu.memory_space<vmem>>, vector<1x16xf32>
    %127 = arith.mulf %116, %125 : vector<1x16xf32>
    %128 = arith.subf %126, %127 : vector<1x16xf32>
    %129 = tpu.concatenate %125, %125 in 1 : vector<1x16xf32>, vector<1x16xf32> -> vector<1x32xf32>
    %130 = tpu.concatenate %129, %129 in 1 : vector<1x32xf32>, vector<1x32xf32> -> vector<1x64xf32>
    %131 = tpu.concatenate %130, %130 in 1 : vector<1x64xf32>, vector<1x64xf32> -> vector<1x128xf32>
    %132 = tpu.concatenate %131, %131 in 1 : vector<1x128xf32>, vector<1x128xf32> -> vector<1x256xf32>
    %133 = tpu.concatenate %129, %132 in 1 : vector<1x32xf32>, vector<1x256xf32> -> vector<1x288xf32>
    %134 = tpu.concatenate %128, %128 in 1 : vector<1x16xf32>, vector<1x16xf32> -> vector<1x32xf32>
    %135 = tpu.concatenate %134, %134 in 1 : vector<1x32xf32>, vector<1x32xf32> -> vector<1x64xf32>
    %136 = tpu.concatenate %135, %135 in 1 : vector<1x64xf32>, vector<1x64xf32> -> vector<1x128xf32>
    %137 = tpu.concatenate %136, %136 in 1 : vector<1x128xf32>, vector<1x128xf32> -> vector<1x256xf32>
    %138 = tpu.concatenate %134, %137 in 1 : vector<1x32xf32>, vector<1x256xf32> -> vector<1x288xf32>
    %139 = vector.broadcast %133 : vector<1x288xf32> to vector<36x288xf32>
    %140 = arith.mulf %39, %139 : vector<36x288xf32>
    %141 = vector.broadcast %138 : vector<1x288xf32> to vector<36x288xf32>
    %142 = arith.addf %140, %141 : vector<36x288xf32>
    %143 = arith.truncf %142 : vector<36x288xf32> to vector<36x288xbf16>
    %c0_45 = arith.constant 0 : index
    %c0_46 = arith.constant 0 : index
    %c0_47 = arith.constant 0 : index
    %144 = vector.load %arg6[%c0_45, %c0_46, %c0_47] : memref<5x14x36xbf16, #tpu.memory_space<vmem>>, vector<1x14x36xbf16>
    %145 = vector.shape_cast %144 : vector<1x14x36xbf16> to vector<14x36xbf16>
    %cst_48 = arith.constant dense<0.000000e+00> : vector<14x288xf32>
    %146 = tpu.matmul %145, %143, %cst_48 {dimension_numbers = #tpu.dot_dimension_numbers<[1], [0], [0], [1], [0, 0, 1, 1], [], []>} : vector<14x36xbf16>, vector<36x288xbf16>, vector<14x288xf32> -> vector<14x288xf32>
    %147 = arith.truncf %146 : vector<14x288xf32> to vector<14x288xbf16>
    %c0_49 = arith.constant 0 : index
    %c0_50 = arith.constant 0 : index
    %c0_51 = arith.constant 0 : index
    %148 = vector.load %arg7[%c0_49, %c0_50, %c0_51] : memref<5x288x224xbf16, #tpu.memory_space<vmem>>, vector<1x288x224xbf16>
    %149 = vector.shape_cast %148 : vector<1x288x224xbf16> to vector<288x224xbf16>
    %cst_52 = arith.constant dense<0.000000e+00> : vector<14x224xf32>
    %150 = tpu.matmul %147, %149, %cst_52 {dimension_numbers = #tpu.dot_dimension_numbers<[1], [0], [0], [1], [0, 0, 1, 1], [], []>} : vector<14x288xbf16>, vector<288x224xbf16>, vector<14x224xf32> -> vector<14x224xf32>
    %c1_53 = arith.constant 1 : index
    %c0_54 = arith.constant 0 : index
    %c0_55 = arith.constant 0 : index
    %151 = vector.load %arg6[%c1_53, %c0_54, %c0_55] : memref<5x14x36xbf16, #tpu.memory_space<vmem>>, vector<1x14x36xbf16>
    %152 = vector.shape_cast %151 : vector<1x14x36xbf16> to vector<14x36xbf16>
    %cst_56 = arith.constant dense<0.000000e+00> : vector<14x288xf32>
    %153 = tpu.matmul %152, %143, %cst_56 {dimension_numbers = #tpu.dot_dimension_numbers<[1], [0], [0], [1], [0, 0, 1, 1], [], []>} : vector<14x36xbf16>, vector<36x288xbf16>, vector<14x288xf32> -> vector<14x288xf32>
    %154 = arith.truncf %153 : vector<14x288xf32> to vector<14x288xbf16>
    %c1_57 = arith.constant 1 : index
    %c0_58 = arith.constant 0 : index
    %c0_59 = arith.constant 0 : index
    %155 = vector.load %arg7[%c1_57, %c0_58, %c0_59] : memref<5x288x224xbf16, #tpu.memory_space<vmem>>, vector<1x288x224xbf16>
    %156 = vector.shape_cast %155 : vector<1x288x224xbf16> to vector<288x224xbf16>
    %cst_60 = arith.constant dense<0.000000e+00> : vector<14x224xf32>
    %157 = tpu.matmul %154, %156, %cst_60 {dimension_numbers = #tpu.dot_dimension_numbers<[1], [0], [0], [1], [0, 0, 1, 1], [], []>} : vector<14x288xbf16>, vector<288x224xbf16>, vector<14x224xf32> -> vector<14x224xf32>
    %158 = arith.addf %150, %157 : vector<14x224xf32>
    %c2_61 = arith.constant 2 : index
    %c0_62 = arith.constant 0 : index
    %c0_63 = arith.constant 0 : index
    %159 = vector.load %arg6[%c2_61, %c0_62, %c0_63] : memref<5x14x36xbf16, #tpu.memory_space<vmem>>, vector<1x14x36xbf16>
    %160 = vector.shape_cast %159 : vector<1x14x36xbf16> to vector<14x36xbf16>
    %cst_64 = arith.constant dense<0.000000e+00> : vector<14x288xf32>
    %161 = tpu.matmul %160, %143, %cst_64 {dimension_numbers = #tpu.dot_dimension_numbers<[1], [0], [0], [1], [0, 0, 1, 1], [], []>} : vector<14x36xbf16>, vector<36x288xbf16>, vector<14x288xf32> -> vector<14x288xf32>
    %162 = arith.truncf %161 : vector<14x288xf32> to vector<14x288xbf16>
    %c2_65 = arith.constant 2 : index
    %c0_66 = arith.constant 0 : index
    %c0_67 = arith.constant 0 : index
    %163 = vector.load %arg7[%c2_65, %c0_66, %c0_67] : memref<5x288x224xbf16, #tpu.memory_space<vmem>>, vector<1x288x224xbf16>
    %164 = vector.shape_cast %163 : vector<1x288x224xbf16> to vector<288x224xbf16>
    %cst_68 = arith.constant dense<0.000000e+00> : vector<14x224xf32>
    %165 = tpu.matmul %162, %164, %cst_68 {dimension_numbers = #tpu.dot_dimension_numbers<[1], [0], [0], [1], [0, 0, 1, 1], [], []>} : vector<14x288xbf16>, vector<288x224xbf16>, vector<14x224xf32> -> vector<14x224xf32>
    %166 = arith.addf %158, %165 : vector<14x224xf32>
    %c3_69 = arith.constant 3 : index
    %c0_70 = arith.constant 0 : index
    %c0_71 = arith.constant 0 : index
    %167 = vector.load %arg6[%c3_69, %c0_70, %c0_71] : memref<5x14x36xbf16, #tpu.memory_space<vmem>>, vector<1x14x36xbf16>
    %168 = vector.shape_cast %167 : vector<1x14x36xbf16> to vector<14x36xbf16>
    %cst_72 = arith.constant dense<0.000000e+00> : vector<14x288xf32>
    %169 = tpu.matmul %168, %143, %cst_72 {dimension_numbers = #tpu.dot_dimension_numbers<[1], [0], [0], [1], [0, 0, 1, 1], [], []>} : vector<14x36xbf16>, vector<36x288xbf16>, vector<14x288xf32> -> vector<14x288xf32>
    %170 = arith.truncf %169 : vector<14x288xf32> to vector<14x288xbf16>
    %c3_73 = arith.constant 3 : index
    %c0_74 = arith.constant 0 : index
    %c0_75 = arith.constant 0 : index
    %171 = vector.load %arg7[%c3_73, %c0_74, %c0_75] : memref<5x288x224xbf16, #tpu.memory_space<vmem>>, vector<1x288x224xbf16>
    %172 = vector.shape_cast %171 : vector<1x288x224xbf16> to vector<288x224xbf16>
    %cst_76 = arith.constant dense<0.000000e+00> : vector<14x224xf32>
    %173 = tpu.matmul %170, %172, %cst_76 {dimension_numbers = #tpu.dot_dimension_numbers<[1], [0], [0], [1], [0, 0, 1, 1], [], []>} : vector<14x288xbf16>, vector<288x224xbf16>, vector<14x224xf32> -> vector<14x224xf32>
    %174 = arith.addf %166, %173 : vector<14x224xf32>
    %c4_77 = arith.constant 4 : index
    %c0_78 = arith.constant 0 : index
    %c0_79 = arith.constant 0 : index
    %175 = vector.load %arg6[%c4_77, %c0_78, %c0_79] : memref<5x14x36xbf16, #tpu.memory_space<vmem>>, vector<1x14x36xbf16>
    %176 = vector.shape_cast %175 : vector<1x14x36xbf16> to vector<14x36xbf16>
    %cst_80 = arith.constant dense<0.000000e+00> : vector<14x288xf32>
    %177 = tpu.matmul %176, %143, %cst_80 {dimension_numbers = #tpu.dot_dimension_numbers<[1], [0], [0], [1], [0, 0, 1, 1], [], []>} : vector<14x36xbf16>, vector<36x288xbf16>, vector<14x288xf32> -> vector<14x288xf32>
    %178 = arith.truncf %177 : vector<14x288xf32> to vector<14x288xbf16>
    %c4_81 = arith.constant 4 : index
    %c0_82 = arith.constant 0 : index
    %c0_83 = arith.constant 0 : index
    %179 = vector.load %arg7[%c4_81, %c0_82, %c0_83] : memref<5x288x224xbf16, #tpu.memory_space<vmem>>, vector<1x288x224xbf16>
    %180 = vector.shape_cast %179 : vector<1x288x224xbf16> to vector<288x224xbf16>
    %cst_84 = arith.constant dense<0.000000e+00> : vector<14x224xf32>
    %181 = tpu.matmul %178, %180, %cst_84 {dimension_numbers = #tpu.dot_dimension_numbers<[1], [0], [0], [1], [0, 0, 1, 1], [], []>} : vector<14x288xbf16>, vector<288x224xbf16>, vector<14x224xf32> -> vector<14x224xf32>
    %182 = arith.addf %174, %181 : vector<14x224xf32>
    %cst_85 = arith.constant dense<0.000000e+00> : vector<224xf32>
    %183 = vector.multi_reduction <add>, %182, %cst_85 [0] : vector<14x224xf32> to vector<224xf32>
    %184 = vector.shape_cast %183 : vector<224xf32> to vector<1x224xf32>
    %185 = arith.mulf %182, %182 : vector<14x224xf32>
    %cst_86 = arith.constant dense<0.000000e+00> : vector<224xf32>
    %186 = vector.multi_reduction <add>, %185, %cst_86 [0] : vector<14x224xf32> to vector<224xf32>
    %187 = vector.shape_cast %186 : vector<224xf32> to vector<1x224xf32>
    %188 = vector.extract_strided_slice %184 {offsets = [0, 0], sizes = [1, 32], strides = [1, 1]} : vector<1x224xf32> to vector<1x32xf32>
    %189 = vector.extract_strided_slice %187 {offsets = [0, 0], sizes = [1, 32], strides = [1, 1]} : vector<1x224xf32> to vector<1x32xf32>
    %190 = vector.extract_strided_slice %184 {offsets = [0, 32], sizes = [1, 32], strides = [1, 1]} : vector<1x224xf32> to vector<1x32xf32>
    %191 = arith.addf %188, %190 : vector<1x32xf32>
    %192 = vector.extract_strided_slice %187 {offsets = [0, 32], sizes = [1, 32], strides = [1, 1]} : vector<1x224xf32> to vector<1x32xf32>
    %193 = arith.addf %189, %192 : vector<1x32xf32>
    %194 = vector.extract_strided_slice %184 {offsets = [0, 64], sizes = [1, 32], strides = [1, 1]} : vector<1x224xf32> to vector<1x32xf32>
    %195 = arith.addf %191, %194 : vector<1x32xf32>
    %196 = vector.extract_strided_slice %187 {offsets = [0, 64], sizes = [1, 32], strides = [1, 1]} : vector<1x224xf32> to vector<1x32xf32>
    %197 = arith.addf %193, %196 : vector<1x32xf32>
    %198 = vector.extract_strided_slice %184 {offsets = [0, 96], sizes = [1, 32], strides = [1, 1]} : vector<1x224xf32> to vector<1x32xf32>
    %199 = arith.addf %195, %198 : vector<1x32xf32>
    %200 = vector.extract_strided_slice %187 {offsets = [0, 96], sizes = [1, 32], strides = [1, 1]} : vector<1x224xf32> to vector<1x32xf32>
    %201 = arith.addf %197, %200 : vector<1x32xf32>
    %202 = vector.extract_strided_slice %184 {offsets = [0, 128], sizes = [1, 32], strides = [1, 1]} : vector<1x224xf32> to vector<1x32xf32>
    %203 = arith.addf %199, %202 : vector<1x32xf32>
    %204 = vector.extract_strided_slice %187 {offsets = [0, 128], sizes = [1, 32], strides = [1, 1]} : vector<1x224xf32> to vector<1x32xf32>
    %205 = arith.addf %201, %204 : vector<1x32xf32>
    %206 = vector.extract_strided_slice %184 {offsets = [0, 160], sizes = [1, 32], strides = [1, 1]} : vector<1x224xf32> to vector<1x32xf32>
    %207 = arith.addf %203, %206 : vector<1x32xf32>
    %208 = vector.extract_strided_slice %187 {offsets = [0, 160], sizes = [1, 32], strides = [1, 1]} : vector<1x224xf32> to vector<1x32xf32>
    %209 = arith.addf %205, %208 : vector<1x32xf32>
    %210 = vector.extract_strided_slice %184 {offsets = [0, 192], sizes = [1, 32], strides = [1, 1]} : vector<1x224xf32> to vector<1x32xf32>
    %211 = arith.addf %207, %210 : vector<1x32xf32>
    %212 = vector.extract_strided_slice %187 {offsets = [0, 192], sizes = [1, 32], strides = [1, 1]} : vector<1x224xf32> to vector<1x32xf32>
    %213 = arith.addf %209, %212 : vector<1x32xf32>
    %cst_87 = arith.constant 0.0102040814 : f32
    %214 = vector.broadcast %cst_87 : f32 to vector<1x32xf32>
    %215 = arith.mulf %211, %214 : vector<1x32xf32>
    %cst_88 = arith.constant 0.0102040814 : f32
    %216 = vector.broadcast %cst_88 : f32 to vector<1x32xf32>
    %217 = arith.mulf %213, %216 : vector<1x32xf32>
    %218 = arith.mulf %215, %215 : vector<1x32xf32>
    %219 = arith.subf %217, %218 : vector<1x32xf32>
    %c0_89 = arith.constant 0 : index
    %c0_90 = arith.constant 0 : index
    %220 = vector.load %arg8[%c0_89, %c0_90] : memref<1x32xf32, #tpu.memory_space<vmem>>, vector<1x32xf32>
    %cst_91 = arith.constant 9.99999974E-6 : f32
    %221 = vector.broadcast %cst_91 : f32 to vector<1x32xf32>
    %222 = arith.addf %219, %221 : vector<1x32xf32>
    %223 = math.rsqrt %222 : vector<1x32xf32>
    %224 = arith.mulf %220, %223 : vector<1x32xf32>
    %c0_92 = arith.constant 0 : index
    %c0_93 = arith.constant 0 : index
    %225 = vector.load %arg9[%c0_92, %c0_93] : memref<1x32xf32, #tpu.memory_space<vmem>>, vector<1x32xf32>
    %226 = arith.mulf %215, %224 : vector<1x32xf32>
    %227 = arith.subf %225, %226 : vector<1x32xf32>
    %228 = tpu.concatenate %224, %224 in 1 : vector<1x32xf32>, vector<1x32xf32> -> vector<1x64xf32>
    %229 = tpu.concatenate %224, %228 in 1 : vector<1x32xf32>, vector<1x64xf32> -> vector<1x96xf32>
    %230 = tpu.concatenate %228, %228 in 1 : vector<1x64xf32>, vector<1x64xf32> -> vector<1x128xf32>
    %231 = tpu.concatenate %229, %230 in 1 : vector<1x96xf32>, vector<1x128xf32> -> vector<1x224xf32>
    %232 = tpu.concatenate %227, %227 in 1 : vector<1x32xf32>, vector<1x32xf32> -> vector<1x64xf32>
    %233 = tpu.concatenate %227, %232 in 1 : vector<1x32xf32>, vector<1x64xf32> -> vector<1x96xf32>
    %234 = tpu.concatenate %232, %232 in 1 : vector<1x64xf32>, vector<1x64xf32> -> vector<1x128xf32>
    %235 = tpu.concatenate %233, %234 in 1 : vector<1x96xf32>, vector<1x128xf32> -> vector<1x224xf32>
    %236 = vector.broadcast %231 : vector<1x224xf32> to vector<14x224xf32>
    %237 = arith.mulf %182, %236 : vector<14x224xf32>
    %238 = vector.broadcast %235 : vector<1x224xf32> to vector<14x224xf32>
    %239 = arith.addf %237, %238 : vector<14x224xf32>
    %240 = arith.truncf %239 : vector<14x224xf32> to vector<14x224xbf16>
    %c0_94 = arith.constant 0 : index
    %c0_95 = arith.constant 0 : index
    %c0_96 = arith.constant 0 : index
    %241 = vector.load %arg10[%c0_94, %c0_95, %c0_96] : memref<5x4x14xbf16, #tpu.memory_space<vmem>>, vector<1x4x14xbf16>
    %242 = vector.shape_cast %241 : vector<1x4x14xbf16> to vector<4x14xbf16>
    %cst_97 = arith.constant dense<0.000000e+00> : vector<4x224xf32>
    %243 = tpu.matmul %242, %240, %cst_97 {dimension_numbers = #tpu.dot_dimension_numbers<[1], [0], [0], [1], [0, 0, 1, 1], [], []>} : vector<4x14xbf16>, vector<14x224xbf16>, vector<4x224xf32> -> vector<4x224xf32>
    %244 = arith.truncf %243 : vector<4x224xf32> to vector<4x224xbf16>
    %c0_98 = arith.constant 0 : index
    %c0_99 = arith.constant 0 : index
    %c0_100 = arith.constant 0 : index
    %245 = vector.load %arg11[%c0_98, %c0_99, %c0_100] : memref<5x224x64xbf16, #tpu.memory_space<vmem>>, vector<1x224x64xbf16>
    %246 = vector.shape_cast %245 : vector<1x224x64xbf16> to vector<224x64xbf16>
    %cst_101 = arith.constant dense<0.000000e+00> : vector<4x64xf32>
    %247 = tpu.matmul %244, %246, %cst_101 {dimension_numbers = #tpu.dot_dimension_numbers<[1], [0], [0], [1], [0, 0, 1, 1], [], []>} : vector<4x224xbf16>, vector<224x64xbf16>, vector<4x64xf32> -> vector<4x64xf32>
    %c1_102 = arith.constant 1 : index
    %c0_103 = arith.constant 0 : index
    %c0_104 = arith.constant 0 : index
    %248 = vector.load %arg10[%c1_102, %c0_103, %c0_104] : memref<5x4x14xbf16, #tpu.memory_space<vmem>>, vector<1x4x14xbf16>
    %249 = vector.shape_cast %248 : vector<1x4x14xbf16> to vector<4x14xbf16>
    %cst_105 = arith.constant dense<0.000000e+00> : vector<4x224xf32>
    %250 = tpu.matmul %249, %240, %cst_105 {dimension_numbers = #tpu.dot_dimension_numbers<[1], [0], [0], [1], [0, 0, 1, 1], [], []>} : vector<4x14xbf16>, vector<14x224xbf16>, vector<4x224xf32> -> vector<4x224xf32>
    %251 = arith.truncf %250 : vector<4x224xf32> to vector<4x224xbf16>
    %c1_106 = arith.constant 1 : index
    %c0_107 = arith.constant 0 : index
    %c0_108 = arith.constant 0 : index
    %252 = vector.load %arg11[%c1_106, %c0_107, %c0_108] : memref<5x224x64xbf16, #tpu.memory_space<vmem>>, vector<1x224x64xbf16>
    %253 = vector.shape_cast %252 : vector<1x224x64xbf16> to vector<224x64xbf16>
    %cst_109 = arith.constant dense<0.000000e+00> : vector<4x64xf32>
    %254 = tpu.matmul %251, %253, %cst_109 {dimension_numbers = #tpu.dot_dimension_numbers<[1], [0], [0], [1], [0, 0, 1, 1], [], []>} : vector<4x224xbf16>, vector<224x64xbf16>, vector<4x64xf32> -> vector<4x64xf32>
    %255 = arith.addf %247, %254 : vector<4x64xf32>
    %c2_110 = arith.constant 2 : index
    %c0_111 = arith.constant 0 : index
    %c0_112 = arith.constant 0 : index
    %256 = vector.load %arg10[%c2_110, %c0_111, %c0_112] : memref<5x4x14xbf16, #tpu.memory_space<vmem>>, vector<1x4x14xbf16>
    %257 = vector.shape_cast %256 : vector<1x4x14xbf16> to vector<4x14xbf16>
    %cst_113 = arith.constant dense<0.000000e+00> : vector<4x224xf32>
    %258 = tpu.matmul %257, %240, %cst_113 {dimension_numbers = #tpu.dot_dimension_numbers<[1], [0], [0], [1], [0, 0, 1, 1], [], []>} : vector<4x14xbf16>, vector<14x224xbf16>, vector<4x224xf32> -> vector<4x224xf32>
    %259 = arith.truncf %258 : vector<4x224xf32> to vector<4x224xbf16>
    %c2_114 = arith.constant 2 : index
    %c0_115 = arith.constant 0 : index
    %c0_116 = arith.constant 0 : index
    %260 = vector.load %arg11[%c2_114, %c0_115, %c0_116] : memref<5x224x64xbf16, #tpu.memory_space<vmem>>, vector<1x224x64xbf16>
    %261 = vector.shape_cast %260 : vector<1x224x64xbf16> to vector<224x64xbf16>
    %cst_117 = arith.constant dense<0.000000e+00> : vector<4x64xf32>
    %262 = tpu.matmul %259, %261, %cst_117 {dimension_numbers = #tpu.dot_dimension_numbers<[1], [0], [0], [1], [0, 0, 1, 1], [], []>} : vector<4x224xbf16>, vector<224x64xbf16>, vector<4x64xf32> -> vector<4x64xf32>
    %263 = arith.addf %255, %262 : vector<4x64xf32>
    %c3_118 = arith.constant 3 : index
    %c0_119 = arith.constant 0 : index
    %c0_120 = arith.constant 0 : index
    %264 = vector.load %arg10[%c3_118, %c0_119, %c0_120] : memref<5x4x14xbf16, #tpu.memory_space<vmem>>, vector<1x4x14xbf16>
    %265 = vector.shape_cast %264 : vector<1x4x14xbf16> to vector<4x14xbf16>
    %cst_121 = arith.constant dense<0.000000e+00> : vector<4x224xf32>
    %266 = tpu.matmul %265, %240, %cst_121 {dimension_numbers = #tpu.dot_dimension_numbers<[1], [0], [0], [1], [0, 0, 1, 1], [], []>} : vector<4x14xbf16>, vector<14x224xbf16>, vector<4x224xf32> -> vector<4x224xf32>
    %267 = arith.truncf %266 : vector<4x224xf32> to vector<4x224xbf16>
    %c3_122 = arith.constant 3 : index
    %c0_123 = arith.constant 0 : index
    %c0_124 = arith.constant 0 : index
    %268 = vector.load %arg11[%c3_122, %c0_123, %c0_124] : memref<5x224x64xbf16, #tpu.memory_space<vmem>>, vector<1x224x64xbf16>
    %269 = vector.shape_cast %268 : vector<1x224x64xbf16> to vector<224x64xbf16>
    %cst_125 = arith.constant dense<0.000000e+00> : vector<4x64xf32>
    %270 = tpu.matmul %267, %269, %cst_125 {dimension_numbers = #tpu.dot_dimension_numbers<[1], [0], [0], [1], [0, 0, 1, 1], [], []>} : vector<4x224xbf16>, vector<224x64xbf16>, vector<4x64xf32> -> vector<4x64xf32>
    %271 = arith.addf %263, %270 : vector<4x64xf32>
    %c4_126 = arith.constant 4 : index
    %c0_127 = arith.constant 0 : index
    %c0_128 = arith.constant 0 : index
    %272 = vector.load %arg10[%c4_126, %c0_127, %c0_128] : memref<5x4x14xbf16, #tpu.memory_space<vmem>>, vector<1x4x14xbf16>
    %273 = vector.shape_cast %272 : vector<1x4x14xbf16> to vector<4x14xbf16>
    %cst_129 = arith.constant dense<0.000000e+00> : vector<4x224xf32>
    %274 = tpu.matmul %273, %240, %cst_129 {dimension_numbers = #tpu.dot_dimension_numbers<[1], [0], [0], [1], [0, 0, 1, 1], [], []>} : vector<4x14xbf16>, vector<14x224xbf16>, vector<4x224xf32> -> vector<4x224xf32>
    %275 = arith.truncf %274 : vector<4x224xf32> to vector<4x224xbf16>
    %c4_130 = arith.constant 4 : index
    %c0_131 = arith.constant 0 : index
    %c0_132 = arith.constant 0 : index
    %276 = vector.load %arg11[%c4_130, %c0_131, %c0_132] : memref<5x224x64xbf16, #tpu.memory_space<vmem>>, vector<1x224x64xbf16>
    %277 = vector.shape_cast %276 : vector<1x224x64xbf16> to vector<224x64xbf16>
    %cst_133 = arith.constant dense<0.000000e+00> : vector<4x64xf32>
    %278 = tpu.matmul %275, %277, %cst_133 {dimension_numbers = #tpu.dot_dimension_numbers<[1], [0], [0], [1], [0, 0, 1, 1], [], []>} : vector<4x224xbf16>, vector<224x64xbf16>, vector<4x64xf32> -> vector<4x64xf32>
    %279 = arith.addf %271, %278 : vector<4x64xf32>
    %cst_134 = arith.constant dense<0.000000e+00> : vector<64xf32>
    %280 = vector.multi_reduction <add>, %279, %cst_134 [0] : vector<4x64xf32> to vector<64xf32>
    %281 = vector.shape_cast %280 : vector<64xf32> to vector<1x64xf32>
    %282 = arith.mulf %279, %279 : vector<4x64xf32>
    %cst_135 = arith.constant dense<0.000000e+00> : vector<64xf32>
    %283 = vector.multi_reduction <add>, %282, %cst_135 [0] : vector<4x64xf32> to vector<64xf32>
    %284 = vector.shape_cast %283 : vector<64xf32> to vector<1x64xf32>
    %285 = vector.extract_strided_slice %281 {offsets = [0, 0], sizes = [1, 32], strides = [1, 1]} : vector<1x64xf32> to vector<1x32xf32>
    %286 = vector.extract_strided_slice %284 {offsets = [0, 0], sizes = [1, 32], strides = [1, 1]} : vector<1x64xf32> to vector<1x32xf32>
    %287 = vector.extract_strided_slice %281 {offsets = [0, 32], sizes = [1, 32], strides = [1, 1]} : vector<1x64xf32> to vector<1x32xf32>
    %288 = arith.addf %285, %287 : vector<1x32xf32>
    %289 = vector.extract_strided_slice %284 {offsets = [0, 32], sizes = [1, 32], strides = [1, 1]} : vector<1x64xf32> to vector<1x32xf32>
    %290 = arith.addf %286, %289 : vector<1x32xf32>
    %cst_136 = arith.constant 1.250000e-01 : f32
    %291 = vector.broadcast %cst_136 : f32 to vector<1x32xf32>
    %292 = arith.mulf %288, %291 : vector<1x32xf32>
    %cst_137 = arith.constant 1.250000e-01 : f32
    %293 = vector.broadcast %cst_137 : f32 to vector<1x32xf32>
    %294 = arith.mulf %290, %293 : vector<1x32xf32>
    %295 = arith.mulf %292, %292 : vector<1x32xf32>
    %296 = arith.subf %294, %295 : vector<1x32xf32>
    %c0_138 = arith.constant 0 : index
    %c0_139 = arith.constant 0 : index
    %297 = vector.load %arg12[%c0_138, %c0_139] : memref<1x32xf32, #tpu.memory_space<vmem>>, vector<1x32xf32>
    %cst_140 = arith.constant 9.99999974E-6 : f32
    %298 = vector.broadcast %cst_140 : f32 to vector<1x32xf32>
    %299 = arith.addf %296, %298 : vector<1x32xf32>
    %300 = math.rsqrt %299 : vector<1x32xf32>
    %301 = arith.mulf %297, %300 : vector<1x32xf32>
    %c0_141 = arith.constant 0 : index
    %c0_142 = arith.constant 0 : index
    %302 = vector.load %arg13[%c0_141, %c0_142] : memref<1x32xf32, #tpu.memory_space<vmem>>, vector<1x32xf32>
    %303 = arith.mulf %292, %301 : vector<1x32xf32>
    %304 = arith.subf %302, %303 : vector<1x32xf32>
    %305 = tpu.concatenate %301, %301 in 1 : vector<1x32xf32>, vector<1x32xf32> -> vector<1x64xf32>
    %306 = tpu.concatenate %304, %304 in 1 : vector<1x32xf32>, vector<1x32xf32> -> vector<1x64xf32>
    %307 = vector.broadcast %305 : vector<1x64xf32> to vector<4x64xf32>
    %308 = arith.mulf %279, %307 : vector<4x64xf32>
    %309 = vector.broadcast %306 : vector<1x64xf32> to vector<4x64xf32>
    %310 = arith.addf %308, %309 : vector<4x64xf32>
    %311 = arith.truncf %310 : vector<4x64xf32> to vector<4x64xbf16>
    %c0_143 = arith.constant 0 : index
    %c0_144 = arith.constant 0 : index
    %c0_145 = arith.constant 0 : index
    %312 = vector.load %arg14[%c0_143, %c0_144, %c0_145] : memref<2x2x4xbf16, #tpu.memory_space<vmem>>, vector<1x2x4xbf16>
    %313 = vector.shape_cast %312 : vector<1x2x4xbf16> to vector<2x4xbf16>
    %cst_146 = arith.constant dense<0.000000e+00> : vector<2x64xf32>
    %314 = tpu.matmul %313, %311, %cst_146 {dimension_numbers = #tpu.dot_dimension_numbers<[1], [0], [0], [1], [0, 0, 1, 1], [], []>} : vector<2x4xbf16>, vector<4x64xbf16>, vector<2x64xf32> -> vector<2x64xf32>
    %315 = arith.truncf %314 : vector<2x64xf32> to vector<2x64xbf16>
    %c0_147 = arith.constant 0 : index
    %c0_148 = arith.constant 0 : index
    %c0_149 = arith.constant 0 : index
    %316 = vector.load %arg15[%c0_147, %c0_148, %c0_149] : memref<2x64x4xbf16, #tpu.memory_space<vmem>>, vector<1x64x4xbf16>
    %317 = vector.shape_cast %316 : vector<1x64x4xbf16> to vector<64x4xbf16>
    %cst_150 = arith.constant dense<0.000000e+00> : vector<2x4xf32>
    %318 = tpu.matmul %315, %317, %cst_150 {dimension_numbers = #tpu.dot_dimension_numbers<[1], [0], [0], [1], [0, 0, 1, 1], [], []>} : vector<2x64xbf16>, vector<64x4xbf16>, vector<2x4xf32> -> vector<2x4xf32>
    %c1_151 = arith.constant 1 : index
    %c0_152 = arith.constant 0 : index
    %c0_153 = arith.constant 0 : index
    %319 = vector.load %arg14[%c1_151, %c0_152, %c0_153] : memref<2x2x4xbf16, #tpu.memory_space<vmem>>, vector<1x2x4xbf16>
    %320 = vector.shape_cast %319 : vector<1x2x4xbf16> to vector<2x4xbf16>
    %cst_154 = arith.constant dense<0.000000e+00> : vector<2x64xf32>
    %321 = tpu.matmul %320, %311, %cst_154 {dimension_numbers = #tpu.dot_dimension_numbers<[1], [0], [0], [1], [0, 0, 1, 1], [], []>} : vector<2x4xbf16>, vector<4x64xbf16>, vector<2x64xf32> -> vector<2x64xf32>
    %322 = arith.truncf %321 : vector<2x64xf32> to vector<2x64xbf16>
    %c1_155 = arith.constant 1 : index
    %c0_156 = arith.constant 0 : index
    %c0_157 = arith.constant 0 : index
    %323 = vector.load %arg15[%c1_155, %c0_156, %c0_157] : memref<2x64x4xbf16, #tpu.memory_space<vmem>>, vector<1x64x4xbf16>
    %324 = vector.shape_cast %323 : vector<1x64x4xbf16> to vector<64x4xbf16>
    %cst_158 = arith.constant dense<0.000000e+00> : vector<2x4xf32>
    %325 = tpu.matmul %322, %324, %cst_158 {dimension_numbers = #tpu.dot_dimension_numbers<[1], [0], [0], [1], [0, 0, 1, 1], [], []>} : vector<2x64xbf16>, vector<64x4xbf16>, vector<2x4xf32> -> vector<2x4xf32>
    %326 = arith.addf %318, %325 : vector<2x4xf32>
    %c0_159 = arith.constant 0 : index
    %c0_160 = arith.constant 0 : index
    %327 = vector.load %arg16[%c0_159, %c0_160] : memref<1x4xf32, #tpu.memory_space<vmem>>, vector<1x4xf32>
    %328 = vector.broadcast %327 : vector<1x4xf32> to vector<2x4xf32>
    %329 = arith.addf %326, %328 : vector<2x4xf32>
    %c0_161 = arith.constant 0 : index
    %c0_162 = arith.constant 0 : index
    %330 = vector.load %arg17[%c0_161, %c0_162] : memref<2x4xf32, #tpu.memory_space<vmem>>, vector<2x4xf32>
    tpu.vector_store %arg17[%c0_161, %c0_162], %329 {strides = array<i32>} : memref<2x4xf32, #tpu.memory_space<vmem>>, vector<2x4xf32>,
    return
  }
  func.func @transform_0(%arg0: i32) -> (i32, i32) {
    %c0_i32 = arith.constant 0 : i32
    %c0_i32_0 = arith.constant 0 : i32
    %c0_i32_1 = arith.constant 0 : i32
    return %c0_i32, %c0_i32_0 : i32, i32
  }
  func.func @transform_1(%arg0: i32) -> (i32, i32, i32) {
    %c0_i32 = arith.constant 0 : i32
    %c0_i32_0 = arith.constant 0 : i32
    %c0_i32_1 = arith.constant 0 : i32
    %c0_i32_2 = arith.constant 0 : i32
    return %c0_i32, %c0_i32_0, %c0_i32_1 : i32, i32, i32
  }
  func.func @transform_2(%arg0: i32) -> (i32, i32, i32) {
    %c0_i32 = arith.constant 0 : i32
    %c0_i32_0 = arith.constant 0 : i32
    %c0_i32_1 = arith.constant 0 : i32
    %c0_i32_2 = arith.constant 0 : i32
    return %c0_i32, %c0_i32_0, %c0_i32_1 : i32, i32, i32
  }
  func.func @transform_3(%arg0: i32) -> (i32, i32) {
    %c0_i32 = arith.constant 0 : i32
    %c0_i32_0 = arith.constant 0 : i32
    %c0_i32_1 = arith.constant 0 : i32
    return %c0_i32, %c0_i32_0 : i32, i32
  }
  func.func @transform_4(%arg0: i32) -> (i32, i32) {
    %c0_i32 = arith.constant 0 : i32
    %c0_i32_0 = arith.constant 0 : i32
    %c0_i32_1 = arith.constant 0 : i32
    return %c0_i32, %c0_i32_0 : i32, i32
  }
  func.func @transform_5(%arg0: i32) -> (i32, i32, i32) {
    %c0_i32 = arith.constant 0 : i32
    %c0_i32_0 = arith.constant 0 : i32
    %c0_i32_1 = arith.constant 0 : i32
    %c0_i32_2 = arith.constant 0 : i32
    return %c0_i32, %c0_i32_0, %c0_i32_1 : i32, i32, i32
  }
  func.func @transform_6(%arg0: i32) -> (i32, i32, i32) {
    %c0_i32 = arith.constant 0 : i32
    %c0_i32_0 = arith.constant 0 : i32
    %c0_i32_1 = arith.constant 0 : i32
    %c0_i32_2 = arith.constant 0 : i32
    return %c0_i32, %c0_i32_0, %c0_i32_1 : i32, i32, i32
  }
  func.func @transform_7(%arg0: i32) -> (i32, i32) {
    %c0_i32 = arith.constant 0 : i32
    %c0_i32_0 = arith.constant 0 : i32
    %c0_i32_1 = arith.constant 0 : i32
    return %c0_i32, %c0_i32_0 : i32, i32
  }
  func.func @transform_8(%arg0: i32) -> (i32, i32) {
    %c0_i32 = arith.constant 0 : i32
    %c0_i32_0 = arith.constant 0 : i32
    %c0_i32_1 = arith.constant 0 : i32
    return %c0_i32, %c0_i32_0 : i32, i32
  }
  func.func @transform_9(%arg0: i32) -> (i32, i32, i32) {
    %c0_i32 = arith.constant 0 : i32
    %c0_i32_0 = arith.constant 0 : i32
    %c0_i32_1 = arith.constant 0 : i32
    %c0_i32_2 = arith.constant 0 : i32
    return %c0_i32, %c0_i32_0, %c0_i32_1 : i32, i32, i32
  }
  func.func @transform_10(%arg0: i32) -> (i32, i32, i32) {
    %c0_i32 = arith.constant 0 : i32
    %c0_i32_0 = arith.constant 0 : i32
    %c0_i32_1 = arith.constant 0 : i32
    %c0_i32_2 = arith.constant 0 : i32
    return %c0_i32, %c0_i32_0, %c0_i32_1 : i32, i32, i32
  }
  func.func @transform_11(%arg0: i32) -> (i32, i32) {
    %c0_i32 = arith.constant 0 : i32
    %c0_i32_0 = arith.constant 0 : i32
    %c0_i32_1 = arith.constant 0 : i32
    return %c0_i32, %c0_i32_0 : i32, i32
  }
  func.func @transform_12(%arg0: i32) -> (i32, i32) {
    %c0_i32 = arith.constant 0 : i32
    %c0_i32_0 = arith.constant 0 : i32
    %c0_i32_1 = arith.constant 0 : i32
    return %c0_i32, %c0_i32_0 : i32, i32
  }
  func.func @transform_13(%arg0: i32) -> (i32, i32, i32) {
    %c0_i32 = arith.constant 0 : i32
    %c0_i32_0 = arith.constant 0 : i32
    %c0_i32_1 = arith.constant 0 : i32
    %c0_i32_2 = arith.constant 0 : i32
    return %c0_i32, %c0_i32_0, %c0_i32_1 : i32, i32, i32
  }
  func.func @transform_14(%arg0: i32) -> (i32, i32, i32) {
    %c0_i32 = arith.constant 0 : i32
    %c0_i32_0 = arith.constant 0 : i32
    %c0_i32_1 = arith.constant 0 : i32
    %c0_i32_2 = arith.constant 0 : i32
    return %c0_i32, %c0_i32_0, %c0_i32_1 : i32, i32, i32
  }
  func.func @transform_15(%arg0: i32) -> (i32, i32) {
    %c0_i32 = arith.constant 0 : i32
    %c0_i32_0 = arith.constant 0 : i32
    %c0_i32_1 = arith.constant 0 : i32
    return %c0_i32, %c0_i32_0 : i32, i32
  }
  func.func @transform_16(%arg0: i32) -> (i32, i32) {
    %c0_i32 = arith.constant 0 : i32
    %c0_i32_0 = arith.constant 0 : i32
    %c0_i32_1 = arith.constant 0 : i32
    return %c0_i32, %c0_i32_0 : i32, i32
  }
}

</mosaic_0001>

<llo_original>
// kernel: dqn_forward.1
$region0: #{dqn_forward.1}
  #allocation0 [shape = 'u32[]', space=smem, size = 0x4, offset = 0x4, fixed_abs, tag = 'smem constant byte address 0x4 - core index']
  #allocation1 [shape = 'u32[144,128]{1,0:T(1,128)}', space=vmem, size = 0x12000, scoped, tag = 'internal scratch']
  %s0 = inlined_call_operand.vmem [shape: bf16[80,120], index: 0, kind: input, shape index: {}]
  %s1 = inlined_call_operand.vmem [shape: bf16[5,36,80], index: 1, kind: input, shape index: {}]
  %s2 = inlined_call_operand.vmem [shape: bf16[5,120,288], index: 2, kind: input, shape index: {}]
  %s3 = inlined_call_operand.vmem [shape: f32[1,16], index: 3, kind: input, shape index: {}]
  %s4 = inlined_call_operand.vmem [shape: f32[1,16], index: 4, kind: input, shape index: {}]
  %s5 = inlined_call_operand.vmem [shape: bf16[5,14,36], index: 5, kind: input, shape index: {}]
  %s6 = inlined_call_operand.vmem [shape: bf16[5,288,224], index: 6, kind: input, shape index: {}]
  %s7 = inlined_call_operand.vmem [shape: f32[1,32], index: 7, kind: input, shape index: {}]
  %s8 = inlined_call_operand.vmem [shape: f32[1,32], index: 8, kind: input, shape index: {}]
  %s9 = inlined_call_operand.vmem [shape: bf16[5,4,14], index: 9, kind: input, shape index: {}]
  %s10 = inlined_call_operand.vmem [shape: bf16[5,224,64], index: 10, kind: input, shape index: {}]
  %s11 = inlined_call_operand.vmem [shape: f32[1,32], index: 11, kind: input, shape index: {}]
  %s12 = inlined_call_operand.vmem [shape: f32[1,32], index: 12, kind: input, shape index: {}]
  %s13 = inlined_call_operand.vmem [shape: bf16[2,2,4], index: 13, kind: input, shape index: {}]
  %s14 = inlined_call_operand.vmem [shape: bf16[2,64,4], index: 14, kind: input, shape index: {}]
  %s15 = inlined_call_operand.vmem [shape: f32[1,4], index: 15, kind: input, shape index: {}]
  %s16 = inlined_call_operand.hbm [shape: f32[2,4], index: 16, kind: output, shape index: {}]
  %s17 = sld [smem:[#allocation0]]
  $region74: #{dqn_forward.1} parent=0
    _
  %s19 = ssub.s32 1, %s17
  %s20 = scalar_select 0, %s19, %s17
  $region1: #{dqn_forward.1} parent=0
    #allocation2 [shape = 'u8[1024]{0}', space=vmem, size = 0x400, scoped, tag = 'output window, operand 0, single buffered']
    #allocation3 [shape = 's32[1]{0}', space=sflag, size = 0x4, scoped, tag = 'scoped memory for dqn_forward.1']
    %21 = vsyncpa [#allocation3], 0
    // Predicated region
    $region2: #{dqn_forward.1} parent=1 // pred_check
      _
    $region3: #{dqn_forward.1} parent=1 // pred_check_branch
      %23 = sbr.rel (0) target = $region5
    $region4: #{dqn_forward.1} parent=1 // pred_region
      _
    $region5: #{dqn_forward.1} parent=1 // pred_fallthru
      _
    // Predicated region
    $region6: #{dqn_forward.1} parent=1 // pred_check
      _
    $region7: #{dqn_forward.1} parent=1 // pred_check_branch
      %25 = sbr.rel (0) target = $region9
    $region8: #{dqn_forward.1} parent=1 // pred_region
      _
    $region9: #{dqn_forward.1} parent=1 // pred_fallthru
      _
    // Predicated region
    $region10: #{dqn_forward.1} parent=1 // pred_check
      _
    $region11: #{dqn_forward.1} parent=1 // pred_check_branch
      %27 = sbr.rel (0) target = $region13
    $region12: #{dqn_forward.1} parent=1 // pred_region
      _
    $region13: #{dqn_forward.1} parent=1 // pred_fallthru
      _
    // Predicated region
    $region14: #{dqn_forward.1} parent=1 // pred_check
      _
    $region15: #{dqn_forward.1} parent=1 // pred_check_branch
      %29 = sbr.rel (0) target = $region17
    $region16: #{dqn_forward.1} parent=1 // pred_region
      _
    $region17: #{dqn_forward.1} parent=1 // pred_fallthru
      _
    // Predicated region
    $region18: #{dqn_forward.1} parent=1 // pred_check
      _
    $region19: #{dqn_forward.1} parent=1 // pred_check_branch
      %31 = sbr.rel (0) target = $region21
    $region20: #{dqn_forward.1} parent=1 // pred_region
      _
    $region21: #{dqn_forward.1} parent=1 // pred_fallthru
      _
    // Predicated region
    $region22: #{dqn_forward.1} parent=1 // pred_check
      _
    $region23: #{dqn_forward.1} parent=1 // pred_check_branch
      %33 = sbr.rel (0) target = $region25
    $region24: #{dqn_forward.1} parent=1 // pred_region
      _
    $region25: #{dqn_forward.1} parent=1 // pred_fallthru
      _
    // Predicated region
    $region26: #{dqn_forward.1} parent=1 // pred_check
      _
    $region27: #{dqn_forward.1} parent=1 // pred_check_branch
      %35 = sbr.rel (0) target = $region29
    $region28: #{dqn_forward.1} parent=1 // pred_region
      _
    $region29: #{dqn_forward.1} parent=1 // pred_fallthru
      _
    // Predicated region
    $region30: #{dqn_forward.1} parent=1 // pred_check
      _
    $region31: #{dqn_forward.1} parent=1 // pred_check_branch
      %37 = sbr.rel (0) target = $region33
    $region32: #{dqn_forward.1} parent=1 // pred_region
      _
    $region33: #{dqn_forward.1} parent=1 // pred_fallthru
      _
    // Predicated region
    $region34: #{dqn_forward.1} parent=1 // pred_check
      _
    $region35: #{dqn_forward.1} parent=1 // pred_check_branch
      %39 = sbr.rel (0) target = $region37
    $region36: #{dqn_forward.1} parent=1 // pred_region
      _
    $region37: #{dqn_forward.1} parent=1 // pred_fallthru
      _
    // Predicated region
    $region38: #{dqn_forward.1} parent=1 // pred_check
      _
    $region39: #{dqn_forward.1} parent=1 // pred_check_branch
      %41 = sbr.rel (0) target = $region41
    $region40: #{dqn_forward.1} parent=1 // pred_region
      _
    $region41: #{dqn_forward.1} parent=1 // pred_fallthru
      _
    // Predicated region
    $region42: #{dqn_forward.1} parent=1 // pred_check
      _
    $region43: #{dqn_forward.1} parent=1 // pred_check_branch
      %43 = sbr.rel (0) target = $region45
    $region44: #{dqn_forward.1} parent=1 // pred_region
      _
    $region45: #{dqn_forward.1} parent=1 // pred_fallthru
      _
    // Predicated region
    $region46: #{dqn_forward.1} parent=1 // pred_check
      _
    $region47: #{dqn_forward.1} parent=1 // pred_check_branch
      %45 = sbr.rel (0) target = $region49
    $region48: #{dqn_forward.1} parent=1 // pred_region
      _
    $region49: #{dqn_forward.1} parent=1 // pred_fallthru
      _
    // Predicated region
    $region50: #{dqn_forward.1} parent=1 // pred_check
      _
    $region51: #{dqn_forward.1} parent=1 // pred_check_branch
      %47 = sbr.rel (0) target = $region53
    $region52: #{dqn_forward.1} parent=1 // pred_region
      _
    $region53: #{dqn_forward.1} parent=1 // pred_fallthru
      _
    // Predicated region
    $region54: #{dqn_forward.1} parent=1 // pred_check
      _
    $region55: #{dqn_forward.1} parent=1 // pred_check_branch
      %49 = sbr.rel (0) target = $region57
    $region56: #{dqn_forward.1} parent=1 // pred_region
      _
    $region57: #{dqn_forward.1} parent=1 // pred_fallthru
      _
    // Predicated region
    $region58: #{dqn_forward.1} parent=1 // pred_check
      _
    $region59: #{dqn_forward.1} parent=1 // pred_check_branch
      %51 = sbr.rel (0) target = $region61
    $region60: #{dqn_forward.1} parent=1 // pred_region
      _
    $region61: #{dqn_forward.1} parent=1 // pred_fallthru
      _
    // Predicated region
    $region62: #{dqn_forward.1} parent=1 // pred_check
      _
    $region63: #{dqn_forward.1} parent=1 // pred_check_branch
      %53 = sbr.rel (0) target = $region65
    $region64: #{dqn_forward.1} parent=1 // pred_region
      _
    $region65: #{dqn_forward.1} parent=1 // pred_fallthru
      _
    %v55 = vld [vmem:[%s0] sm:$0xf]
    %v56 = vld [vmem:[%s0 + $0x4] sm:$0xf]
    %v57 = vld [vmem:[%s0 + $0x8] sm:$0xf]
    %v58 = vld [vmem:[%s0 + $0xc] sm:$0xf]
    %v59 = vld [vmem:[%s0 + $0x10] sm:$0xf]
    %v60 = vld [vmem:[%s0 + $0x14] sm:$0xf]
    %v61 = vld [vmem:[%s0 + $0x18] sm:$0xf]
    %v62 = vld [vmem:[%s0 + $0x1c] sm:$0xf]
    %v63 = vld [vmem:[%s0 + $0x20] sm:$0xf]
    %v64 = vld [vmem:[%s0 + $0x24] sm:$0xf]
    %v65 = vld [vmem:[%s1] sm:$0xf]
    %v66 = vld [vmem:[%s1 + $0x4] sm:$0xf]
    %v67 = vld [vmem:[%s1 + $0x8] sm:$0xf]
    %v68 = vld [vmem:[%s1 + $0xc] sm:$0xf]
    %v69 = vld [vmem:[%s1 + $0x10] sm:$0x3]
    %v75 = vunpack.c.l.b16 %v65
    %v76 = vunpack.c.l.b16 %v66
    %v77 = vunpack.c.l.b16 %v67
    %v78 = vunpack.c.l.b16 %v68
    %v79 = vunpack.c.l.b16 %v69
    %v80 = vpack.c.b16 %v76, %v75
    %v81 = vpack.c.b16 %v78, %v77
    %v82 = vpack.c.b16 %v79, %v79
    %v93 = vunpack.c.l.b16 %v55
    %v94 = vunpack.c.l.b16 %v56
    %v95 = vunpack.c.l.b16 %v57
    %v96 = vunpack.c.l.b16 %v58
    %v97 = vunpack.c.l.b16 %v59
    %v98 = vunpack.c.l.b16 %v60
    %v99 = vunpack.c.l.b16 %v61
    %v100 = vunpack.c.l.b16 %v62
    %v101 = vunpack.c.l.b16 %v63
    %v102 = vunpack.c.l.b16 %v64
    %v103 = vpack.c.b16 %v94, %v93
    %v104 = vpack.c.b16 %v96, %v95
    %v105 = vpack.c.b16 %v98, %v97
    %v106 = vpack.c.b16 %v100, %v99
    %v107 = vpack.c.b16 %v102, %v101
    %vm113 = vcmask 654336
    %v115 = vsel %vm113, %v80, 0
    %v118 = vsel %vm113, %v81, 0
    %v121 = vsel %vm113, %v82, 0
    %123 = vmatprep.subr.bf16.mxu0 0
    %124 = vmatpush1.bf16.msra.mxu0 %v103
    %125 = vmatprep.subr.bf16.mxu0 0
    %126 = vmatpush1.bf16.msra.mxu0 %v104
    %127 = vmatprep.subr.bf16.mxu0 0
    %128 = vmatpush1.bf16.msra.mxu0 %v105
    %129 = vmatprep.subr.bf16.mxu0 0
    %130 = vmatpush1.bf16.msra.mxu0 %v106
    %131 = vmatprep.subr.bf16.mxu0 0
    %132 = vmatpush1.bf16.msra.mxu0 %v107
    %133 = vmatprep.subr.bf16.mxu0 0
    %134 = vmatpush1.bf16.msra.mxu0 0
    %135 = vmatprep.subr.bf16.mxu0 0
    %136 = vmatpush1.bf16.msra.mxu0 0
    %137 = vmatprep.subr.bf16.mxu0 0
    %138 = vmatpush1.bf16.msra.mxu0 0
    %139 = vmatprep.subr.bf16.mxu0 0
    %140 = vmatpush1.bf16.msra.mxu0 0
    %141 = vmatprep.subr.bf16.mxu0 0
    %142 = vmatpush1.bf16.msra.mxu0 0
    %143 = vmatprep.subr.bf16.mxu0 0
    %144 = vmatpush1.bf16.msra.mxu0 0
    %145 = vmatprep.subr.bf16.mxu0 0
    %146 = vmatpush1.bf16.msra.mxu0 0
    %147 = vmatprep.subr.bf16.mxu0 0
    %148 = vmatpush1.bf16.msra.mxu0 0
    %149 = vmatprep.subr.bf16.mxu0 0
    %150 = vmatpush1.bf16.msra.mxu0 0
    %151 = vmatprep.subr.bf16.mxu0 0
    %152 = vmatpush1.bf16.msra.mxu0 0
    %153 = vmatprep.subr.bf16.mxu0 0
    %154 = vmatpush1.bf16.msra.mxu0 0
    %155 = vmatprep.mubr.bf16.mxu0 0
    %156 = vmatmul.mubr.bf16.gmra.mrb[0].mxu0 %v115
    %v157 = vpop.f32.mrb[0].mxu0
    %v158 = vadd.f32 0.0, %v157
    %v159 = vpop.f32.mrb[0].mxu0
    %v160 = vpop.f32.mrb[0].mxu0
    %v161 = vadd.f32 0.0, %v160
    %v162 = vpop.f32.mrb[0].mxu0
    %163 = vmatprep.mubr.bf16.mxu0 0
    %164 = vmatmul.mubr.bf16.gmra.mrb[0].mxu0 %v118
    %v165 = vpop.f32.mrb[0].mxu0
    %v166 = vadd.f32 0.0, %v165
    %v167 = vpop.f32.mrb[0].mxu0
    %v168 = vpop.f32.mrb[0].mxu0
    %v169 = vadd.f32 0.0, %v168
    %v170 = vpop.f32.mrb[0].mxu0
    %171 = vmatprep.mubr.bf16.mxu0 0
    %172 = vmatmul.mubr.bf16.gmra.mrb[0].mxu0 %v121
    %v173 = vpop.f32.mrb[0].mxu0
    %v174 = vadd.f32 0.0, %v173
    %v175 = vpop.f32.mrb[0].mxu0
    %v176 = vpop.f32.mrb[0].mxu0
    %v177 = vpop.f32.mrb[0].mxu0
    %178 = vdwg.mxu0
    %v179 = vpack.c.bf16 %v161, %v158
    %v180 = vpack.c.bf16 %v169, %v166
    %v181 = vpack.c.bf16 %v174, %v174
    %v182 = vld [vmem:[%s2] sm:$0xff]
    %v183 = vld [vmem:[%s2 + $0x8] sm:$0xf]
    %v184 = vld [vmem:[%s2 + $0xc] sm:$0xff]
    %v185 = vld [vmem:[%s2 + $0x14] sm:$0xf]
    %v186 = vld [vmem:[%s2 + $0x18] sm:$0xff]
    %v187 = vld [vmem:[%s2 + $0x20] sm:$0xf]
    %v188 = vld [vmem:[%s2 + $0x24] sm:$0xff]
    %v189 = vld [vmem:[%s2 + $0x2c] sm:$0xf]
    %v190 = vld [vmem:[%s2 + $0x30] sm:$0xff]
    %v191 = vld [vmem:[%s2 + $0x38] sm:$0xf]
    %v192 = vld [vmem:[%s2 + $0x3c] sm:$0xff]
    %v193 = vld [vmem:[%s2 + $0x44] sm:$0xf]
    %v194 = vld [vmem:[%s2 + $0x48] sm:$0xff]
    %v195 = vld [vmem:[%s2 + $0x50] sm:$0xf]
    %v196 = vld [vmem:[%s2 + $0x54] sm:$0xff]
    %v197 = vld [vmem:[%s2 + $0x5c] sm:$0xf]
    %v198 = vld [vmem:[%s2 + $0x60] sm:$0xff]
    %v199 = vld [vmem:[%s2 + $0x68] sm:$0xf]
    %v200 = vld [vmem:[%s2 + $0x6c] sm:$0xff]
    %v201 = vld [vmem:[%s2 + $0x74] sm:$0xf]
    %v202 = vld [vmem:[%s2 + $0x78] sm:$0xff]
    %v203 = vld [vmem:[%s2 + $0x80] sm:$0xf]
    %v204 = vld [vmem:[%s2 + $0x84] sm:$0xff]
    %v205 = vld [vmem:[%s2 + $0x8c] sm:$0xf]
    %v206 = vld [vmem:[%s2 + $0x90] sm:$0xff]
    %v207 = vld [vmem:[%s2 + $0x98] sm:$0xf]
    %v208 = vld [vmem:[%s2 + $0x9c] sm:$0xff]
    %v209 = vld [vmem:[%s2 + $0xa4] sm:$0xf]
    %v210 = vld [vmem:[%s2 + $0xa8] sm:$0xff]
    %v211 = vld [vmem:[%s2 + $0xb0] sm:$0xf]
    %s212 = scalar_lea.vmem %s1, 20
    %v213 = vld [vmem:[%s212] sm:$0xf]
    %v214 = vld [vmem:[%s212 + $0x4] sm:$0xf]
    %v215 = vld [vmem:[%s212 + $0x8] sm:$0xf]
    %v216 = vld [vmem:[%s212 + $0xc] sm:$0xf]
    %v217 = vld [vmem:[%s212 + $0x10] sm:$0x3]
    %v223 = vunpack.c.l.b16 %v213
    %v224 = vunpack.c.l.b16 %v214
    %v225 = vunpack.c.l.b16 %v215
    %v226 = vunpack.c.l.b16 %v216
    %v227 = vunpack.c.l.b16 %v217
    %v228 = vpack.c.b16 %v224, %v223
    %v229 = vpack.c.b16 %v226, %v225
    %v230 = vpack.c.b16 %v227, %v227
    %v232 = vsel %vm113, %v228, 0
    %v235 = vsel %vm113, %v229, 0
    %v238 = vsel %vm113, %v230, 0
    %240 = vmatprep.subr.bf16.mxu0 0
    %241 = vmatpush1.bf16.msra.mxu0 %v103
    %242 = vmatprep.subr.bf16.mxu0 0
    %243 = vmatpush1.bf16.msra.mxu0 %v104
    %244 = vmatprep.subr.bf16.mxu0 0
    %245 = vmatpush1.bf16.msra.mxu0 %v105
    %246 = vmatprep.subr.bf16.mxu0 0
    %247 = vmatpush1.bf16.msra.mxu0 %v106
    %248 = vmatprep.subr.bf16.mxu0 0
    %249 = vmatpush1.bf16.msra.mxu0 %v107
    %250 = vmatprep.subr.bf16.mxu0 0
    %251 = vmatpush1.bf16.msra.mxu0 0
    %252 = vmatprep.subr.bf16.mxu0 0
    %253 = vmatpush1.bf16.msra.mxu0 0
    %254 = vmatprep.subr.bf16.mxu0 0
    %255 = vmatpush1.bf16.msra.mxu0 0
    %256 = vmatprep.subr.bf16.mxu0 0
    %257 = vmatpush1.bf16.msra.mxu0 0
    %258 = vmatprep.subr.bf16.mxu0 0
    %259 = vmatpush1.bf16.msra.mxu0 0
    %260 = vmatprep.subr.bf16.mxu0 0
    %261 = vmatpush1.bf16.msra.mxu0 0
    %262 = vmatprep.subr.bf16.mxu0 0
    %263 = vmatpush1.bf16.msra.mxu0 0
    %264 = vmatprep.subr.bf16.mxu0 0
    %265 = vmatpush1.bf16.msra.mxu0 0
    %266 = vmatprep.subr.bf16.mxu0 0
    %267 = vmatpush1.bf16.msra.mxu0 0
    %268 = vmatprep.subr.bf16.mxu0 0
    %269 = vmatpush1.bf16.msra.mxu0 0
    %270 = vmatprep.subr.bf16.mxu0 0
    %271 = vmatpush1.bf16.msra.mxu0 0
    %272 = vmatprep.mubr.bf16.mxu0 0
    %273 = vmatmul.mubr.bf16.gmra.mrb[0].mxu0 %v232
    %v274 = vpop.f32.mrb[0].mxu0
    %v275 = vadd.f32 0.0, %v274
    %v276 = vpop.f32.mrb[0].mxu0
    %v277 = vpop.f32.mrb[0].mxu0
    %v278 = vadd.f32 0.0, %v277
    %v279 = vpop.f32.mrb[0].mxu0
    %280 = vmatprep.mubr.bf16.mxu0 0
    %281 = vmatmul.mubr.bf16.gmra.mrb[0].mxu0 %v235
    %v282 = vpop.f32.mrb[0].mxu0
    %v283 = vadd.f32 0.0, %v282
    %v284 = vpop.f32.mrb[0].mxu0
    %v285 = vpop.f32.mrb[0].mxu0
    %v286 = vadd.f32 0.0, %v285
    %v287 = vpop.f32.mrb[0].mxu0
    %288 = vmatprep.mubr.bf16.mxu0 0
    %289 = vmatmul.mubr.bf16.gmra.mrb[0].mxu0 %v238
    %v290 = vpop.f32.mrb[0].mxu0
    %v291 = vadd.f32 0.0, %v290
    %v292 = vpop.f32.mrb[0].mxu0
    %v293 = vpop.f32.mrb[0].mxu0
    %v294 = vpop.f32.mrb[0].mxu0
    %295 = vdwg.mxu0
    %v296 = vpack.c.bf16 %v278, %v275
    %v297 = vpack.c.bf16 %v286, %v283
    %v298 = vpack.c.bf16 %v291, %v291
    %s299 = scalar_lea.vmem %s2, 180
    %v300 = vld [vmem:[%s299] sm:$0xff]
    %v301 = vld [vmem:[%s299 + $0x8] sm:$0xf]
    %v302 = vld [vmem:[%s299 + $0xc] sm:$0xff]
    %v303 = vld [vmem:[%s299 + $0x14] sm:$0xf]
    %v304 = vld [vmem:[%s299 + $0x18] sm:$0xff]
    %v305 = vld [vmem:[%s299 + $0x20] sm:$0xf]
    %v306 = vld [vmem:[%s299 + $0x24] sm:$0xff]
    %v307 = vld [vmem:[%s299 + $0x2c] sm:$0xf]
    %v308 = vld [vmem:[%s299 + $0x30] sm:$0xff]
    %v309 = vld [vmem:[%s299 + $0x38] sm:$0xf]
    %v310 = vld [vmem:[%s299 + $0x3c] sm:$0xff]
    %v311 = vld [vmem:[%s299 + $0x44] sm:$0xf]
    %v312 = vld [vmem:[%s299 + $0x48] sm:$0xff]
    %v313 = vld [vmem:[%s299 + $0x50] sm:$0xf]
    %v314 = vld [vmem:[%s299 + $0x54] sm:$0xff]
    %v315 = vld [vmem:[%s299 + $0x5c] sm:$0xf]
    %v316 = vld [vmem:[%s299 + $0x60] sm:$0xff]
    %v317 = vld [vmem:[%s299 + $0x68] sm:$0xf]
    %v318 = vld [vmem:[%s299 + $0x6c] sm:$0xff]
    %v319 = vld [vmem:[%s299 + $0x74] sm:$0xf]
    %v320 = vld [vmem:[%s299 + $0x78] sm:$0xff]
    %v321 = vld [vmem:[%s299 + $0x80] sm:$0xf]
    %v322 = vld [vmem:[%s299 + $0x84] sm:$0xff]
    %v323 = vld [vmem:[%s299 + $0x8c] sm:$0xf]
    %v324 = vld [vmem:[%s299 + $0x90] sm:$0xff]
    %v325 = vld [vmem:[%s299 + $0x98] sm:$0xf]
    %v326 = vld [vmem:[%s299 + $0x9c] sm:$0xff]
    %v327 = vld [vmem:[%s299 + $0xa4] sm:$0xf]
    %v328 = vld [vmem:[%s299 + $0xa8] sm:$0xff]
    %v329 = vld [vmem:[%s299 + $0xb0] sm:$0xf]
    %v360 = vunpack.c.l.b16 %v300
    %v361 = vunpack.c.h.b16 %v300
    %v362 = vunpack.c.l.b16 %v301
    %v363 = vunpack.c.l.b16 %v302
    %v364 = vunpack.c.h.b16 %v302
    %v365 = vunpack.c.l.b16 %v303
    %v366 = vunpack.c.l.b16 %v304
    %v367 = vunpack.c.h.b16 %v304
    %v368 = vunpack.c.l.b16 %v305
    %v369 = vunpack.c.l.b16 %v306
    %v370 = vunpack.c.h.b16 %v306
    %v371 = vunpack.c.l.b16 %v307
    %v372 = vunpack.c.l.b16 %v308
    %v373 = vunpack.c.h.b16 %v308
    %v374 = vunpack.c.l.b16 %v309
    %v375 = vunpack.c.l.b16 %v310
    %v376 = vunpack.c.h.b16 %v310
    %v377 = vunpack.c.l.b16 %v311
    %v378 = vunpack.c.l.b16 %v312
    %v379 = vunpack.c.h.b16 %v312
    %v380 = vunpack.c.l.b16 %v313
    %v381 = vunpack.c.l.b16 %v314
    %v382 = vunpack.c.h.b16 %v314
    %v383 = vunpack.c.l.b16 %v315
    %v384 = vunpack.c.l.b16 %v316
    %v385 = vunpack.c.h.b16 %v316
    %v386 = vunpack.c.l.b16 %v317
    %v387 = vunpack.c.l.b16 %v318
    %v388 = vunpack.c.h.b16 %v318
    %v389 = vunpack.c.l.b16 %v319
    %v390 = vunpack.c.l.b16 %v320
    %v391 = vunpack.c.h.b16 %v320
    %v392 = vunpack.c.l.b16 %v321
    %v393 = vunpack.c.l.b16 %v322
    %v394 = vunpack.c.h.b16 %v322
    %v395 = vunpack.c.l.b16 %v323
    %v396 = vunpack.c.l.b16 %v324
    %v397 = vunpack.c.h.b16 %v324
    %v398 = vunpack.c.l.b16 %v325
    %v399 = vunpack.c.l.b16 %v326
    %v400 = vunpack.c.h.b16 %v326
    %v401 = vunpack.c.l.b16 %v327
    %v402 = vunpack.c.l.b16 %v328
    %v403 = vunpack.c.h.b16 %v328
    %v404 = vunpack.c.l.b16 %v329
    %v405 = vpack.c.b16 %v363, %v360
    %v406 = vpack.c.b16 %v364, %v361
    %v407 = vpack.c.b16 %v365, %v362
    %v408 = vpack.c.b16 %v369, %v366
    %v409 = vpack.c.b16 %v370, %v367
    %v410 = vpack.c.b16 %v371, %v368
    %v411 = vpack.c.b16 %v375, %v372
    %v412 = vpack.c.b16 %v376, %v373
    %v413 = vpack.c.b16 %v377, %v374
    %v414 = vpack.c.b16 %v381, %v378
    %v415 = vpack.c.b16 %v382, %v379
    %v416 = vpack.c.b16 %v383, %v380
    %v417 = vpack.c.b16 %v387, %v384
    %v418 = vpack.c.b16 %v388, %v385
    %v419 = vpack.c.b16 %v389, %v386
    %v420 = vpack.c.b16 %v393, %v390
    %v421 = vpack.c.b16 %v394, %v391
    %v422 = vpack.c.b16 %v395, %v392
    %v423 = vpack.c.b16 %v399, %v396
    %v424 = vpack.c.b16 %v400, %v397
    %v425 = vpack.c.b16 %v401, %v398
    %v426 = vpack.c.b16 %v402, %v402
    %v427 = vpack.c.b16 %v403, %v403
    %v428 = vpack.c.b16 %v404, %v404
    %vm450 = vcmask 982016
    %v452 = vsel %vm450, %v296, 0
    %v455 = vsel %vm450, %v297, 0
    %v458 = vsel %vm450, %v298, 0
    %vm460 = vcmask 1043456
    %v462 = vsel %vm460, %v426, 0
    %v465 = vsel %vm460, %v427, 0
    %v468 = vsel %vm460, %v428, 0
    %470 = vmatprep.subr.bf16.mxu0 %v406
    %471 = vmatpush1.bf16.msra.mxu0 %v405
    %472 = vmatprep.subr.bf16.mxu0 %v409
    %473 = vmatpush1.bf16.msra.mxu0 %v408
    %474 = vmatprep.subr.bf16.mxu0 %v412
    %475 = vmatpush1.bf16.msra.mxu0 %v411
    %476 = vmatprep.subr.bf16.mxu0 %v415
    %477 = vmatpush1.bf16.msra.mxu0 %v414
    %478 = vmatprep.subr.bf16.mxu0 %v418
    %479 = vmatpush1.bf16.msra.mxu0 %v417
    %480 = vmatprep.subr.bf16.mxu0 %v421
    %481 = vmatpush1.bf16.msra.mxu0 %v420
    %482 = vmatprep.subr.bf16.mxu0 %v424
    %483 = vmatpush1.bf16.msra.mxu0 %v423
    %484 = vmatprep.subr.bf16.mxu0 %v465
    %485 = vmatpush1.bf16.msra.mxu0 %v462
    %486 = vmatprep.subr.bf16.mxu0 0
    %487 = vmatpush1.bf16.msra.mxu0 0
    %488 = vmatprep.subr.bf16.mxu0 0
    %489 = vmatpush1.bf16.msra.mxu0 0
    %490 = vmatprep.subr.bf16.mxu0 0
    %491 = vmatpush1.bf16.msra.mxu0 0
    %492 = vmatprep.subr.bf16.mxu0 0
    %493 = vmatpush1.bf16.msra.mxu0 0
    %494 = vmatprep.subr.bf16.mxu0 0
    %495 = vmatpush1.bf16.msra.mxu0 0
    %496 = vmatprep.subr.bf16.mxu0 0
    %497 = vmatpush1.bf16.msra.mxu0 0
    %498 = vmatprep.subr.bf16.mxu0 0
    %499 = vmatpush1.bf16.msra.mxu0 0
    %500 = vmatprep.subr.bf16.mxu0 0
    %501 = vmatpush1.bf16.msra.mxu0 0
    %502 = vmatprep.mubr.bf16.mxu0 0
    %503 = vmatmul.mubr.bf16.gmra.mrb[0].mxu0 %v452
    %v504 = vpop.f32.mrb[0].mxu0
    %v505 = vadd.f32 0.0, %v504
    %v506 = vpop.f32.mrb[0].mxu0
    %v507 = vadd.f32 0.0, %v506
    %v508 = vpop.f32.mrb[0].mxu0
    %v509 = vadd.f32 0.0, %v508
    %v510 = vpop.f32.mrb[0].mxu0
    %v511 = vadd.f32 0.0, %v510
    %512 = vmatprep.mubr.bf16.mxu0 0
    %513 = vmatmul.mubr.bf16.gmra.mrb[0].mxu0 %v455
    %v514 = vpop.f32.mrb[0].mxu0
    %v515 = vadd.f32 0.0, %v514
    %v516 = vpop.f32.mrb[0].mxu0
    %v517 = vadd.f32 0.0, %v516
    %v518 = vpop.f32.mrb[0].mxu0
    %v519 = vadd.f32 0.0, %v518
    %v520 = vpop.f32.mrb[0].mxu0
    %v521 = vadd.f32 0.0, %v520
    %522 = vmatprep.mubr.bf16.mxu0 0
    %523 = vmatmul.mubr.bf16.gmra.mrb[0].mxu0 %v458
    %v524 = vpop.f32.mrb[0].mxu0
    %v525 = vadd.f32 0.0, %v524
    %v526 = vpop.f32.mrb[0].mxu0
    %v527 = vadd.f32 0.0, %v526
    %v528 = vpop.f32.mrb[0].mxu0
    %v529 = vpop.f32.mrb[0].mxu0
    %530 = vdwg.mxu0
    %531 = vmatprep.subr.bf16.mxu0 0
    %532 = vmatpush1.bf16.msra.mxu0 %v407
    %533 = vmatprep.subr.bf16.mxu0 0
    %534 = vmatpush1.bf16.msra.mxu0 %v410
    %535 = vmatprep.subr.bf16.mxu0 0
    %536 = vmatpush1.bf16.msra.mxu0 %v413
    %537 = vmatprep.subr.bf16.mxu0 0
    %538 = vmatpush1.bf16.msra.mxu0 %v416
    %539 = vmatprep.subr.bf16.mxu0 0
    %540 = vmatpush1.bf16.msra.mxu0 %v419
    %541 = vmatprep.subr.bf16.mxu0 0
    %542 = vmatpush1.bf16.msra.mxu0 %v422
    %543 = vmatprep.subr.bf16.mxu0 0
    %544 = vmatpush1.bf16.msra.mxu0 %v425
    %545 = vmatprep.subr.bf16.mxu0 0
    %546 = vmatpush1.bf16.msra.mxu0 %v468
    %547 = vmatprep.subr.bf16.mxu0 0
    %548 = vmatpush1.bf16.msra.mxu0 0
    %549 = vmatprep.subr.bf16.mxu0 0
    %550 = vmatpush1.bf16.msra.mxu0 0
    %551 = vmatprep.subr.bf16.mxu0 0
    %552 = vmatpush1.bf16.msra.mxu0 0
    %553 = vmatprep.subr.bf16.mxu0 0
    %554 = vmatpush1.bf16.msra.mxu0 0
    %555 = vmatprep.subr.bf16.mxu0 0
    %556 = vmatpush1.bf16.msra.mxu0 0
    %557 = vmatprep.subr.bf16.mxu0 0
    %558 = vmatpush1.bf16.msra.mxu0 0
    %559 = vmatprep.subr.bf16.mxu0 0
    %560 = vmatpush1.bf16.msra.mxu0 0
    %561 = vmatprep.subr.bf16.mxu0 0
    %562 = vmatpush1.bf16.msra.mxu0 0
    %563 = vmatprep.mubr.bf16.mxu0 0
    %564 = vmatmul.mubr.bf16.gmra.mrb[0].mxu0 %v452
    %v565 = vpop.f32.mrb[0].mxu0
    %v566 = vadd.f32 0.0, %v565
    %v567 = vpop.f32.mrb[0].mxu0
    %v568 = vpop.f32.mrb[0].mxu0
    %v569 = vadd.f32 0.0, %v568
    %v570 = vpop.f32.mrb[0].mxu0
    %571 = vmatprep.mubr.bf16.mxu0 0
    %572 = vmatmul.mubr.bf16.gmra.mrb[0].mxu0 %v455
    %v573 = vpop.f32.mrb[0].mxu0
    %v574 = vadd.f32 0.0, %v573
    %v575 = vpop.f32.mrb[0].mxu0
    %v576 = vpop.f32.mrb[0].mxu0
    %v577 = vadd.f32 0.0, %v576
    %v578 = vpop.f32.mrb[0].mxu0
    %579 = vmatprep.mubr.bf16.mxu0 0
    %580 = vmatmul.mubr.bf16.gmra.mrb[0].mxu0 %v458
    %v581 = vpop.f32.mrb[0].mxu0
    %v582 = vadd.f32 0.0, %v581
    %v583 = vpop.f32.mrb[0].mxu0
    %v584 = vpop.f32.mrb[0].mxu0
    %v585 = vpop.f32.mrb[0].mxu0
    %586 = vdwg.mxu0
    %v617 = vunpack.c.l.b16 %v182
    %v618 = vunpack.c.h.b16 %v182
    %v619 = vunpack.c.l.b16 %v183
    %v620 = vunpack.c.l.b16 %v184
    %v621 = vunpack.c.h.b16 %v184
    %v622 = vunpack.c.l.b16 %v185
    %v623 = vunpack.c.l.b16 %v186
    %v624 = vunpack.c.h.b16 %v186
    %v625 = vunpack.c.l.b16 %v187
    %v626 = vunpack.c.l.b16 %v188
    %v627 = vunpack.c.h.b16 %v188
    %v628 = vunpack.c.l.b16 %v189
    %v629 = vunpack.c.l.b16 %v190
    %v630 = vunpack.c.h.b16 %v190
    %v631 = vunpack.c.l.b16 %v191
    %v632 = vunpack.c.l.b16 %v192
    %v633 = vunpack.c.h.b16 %v192
    %v634 = vunpack.c.l.b16 %v193
    %v635 = vunpack.c.l.b16 %v194
    %v636 = vunpack.c.h.b16 %v194
    %v637 = vunpack.c.l.b16 %v195
    %v638 = vunpack.c.l.b16 %v196
    %v639 = vunpack.c.h.b16 %v196
    %v640 = vunpack.c.l.b16 %v197
    %v641 = vunpack.c.l.b16 %v198
    %v642 = vunpack.c.h.b16 %v198
    %v643 = vunpack.c.l.b16 %v199
    %v644 = vunpack.c.l.b16 %v200
    %v645 = vunpack.c.h.b16 %v200
    %v646 = vunpack.c.l.b16 %v201
    %v647 = vunpack.c.l.b16 %v202
    %v648 = vunpack.c.h.b16 %v202
    %v649 = vunpack.c.l.b16 %v203
    %v650 = vunpack.c.l.b16 %v204
    %v651 = vunpack.c.h.b16 %v204
    %v652 = vunpack.c.l.b16 %v205
    %v653 = vunpack.c.l.b16 %v206
    %v654 = vunpack.c.h.b16 %v206
    %v655 = vunpack.c.l.b16 %v207
    %v656 = vunpack.c.l.b16 %v208
    %v657 = vunpack.c.h.b16 %v208
    %v658 = vunpack.c.l.b16 %v209
    %v659 = vunpack.c.l.b16 %v210
    %v660 = vunpack.c.h.b16 %v210
    %v661 = vunpack.c.l.b16 %v211
    %v662 = vpack.c.b16 %v620, %v617
    %v663 = vpack.c.b16 %v621, %v618
    %v664 = vpack.c.b16 %v622, %v619
    %v665 = vpack.c.b16 %v626, %v623
    %v666 = vpack.c.b16 %v627, %v624
    %v667 = vpack.c.b16 %v628, %v625
    %v668 = vpack.c.b16 %v632, %v629
    %v669 = vpack.c.b16 %v633, %v630
    %v670 = vpack.c.b16 %v634, %v631
    %v671 = vpack.c.b16 %v638, %v635
    %v672 = vpack.c.b16 %v639, %v636
    %v673 = vpack.c.b16 %v640, %v637
    %v674 = vpack.c.b16 %v644, %v641
    %v675 = vpack.c.b16 %v645, %v642
    %v676 = vpack.c.b16 %v646, %v643
    %v677 = vpack.c.b16 %v650, %v647
    %v678 = vpack.c.b16 %v651, %v648
    %v679 = vpack.c.b16 %v652, %v649
    %v680 = vpack.c.b16 %v656, %v653
    %v681 = vpack.c.b16 %v657, %v654
    %v682 = vpack.c.b16 %v658, %v655
    %v683 = vpack.c.b16 %v659, %v659
    %v684 = vpack.c.b16 %v660, %v660
    %v685 = vpack.c.b16 %v661, %v661
    %v708 = vsel %vm450, %v179, 0
    %v711 = vsel %vm450, %v180, 0
    %v714 = vsel %vm450, %v181, 0
    %v717 = vsel %vm460, %v683, 0
    %v720 = vsel %vm460, %v684, 0
    %v723 = vsel %vm460, %v685, 0
    %725 = vmatprep.subr.bf16.mxu0 %v663
    %726 = vmatpush1.bf16.msra.mxu0 %v662
    %727 = vmatprep.subr.bf16.mxu0 %v666
    %728 = vmatpush1.bf16.msra.mxu0 %v665
    %729 = vmatprep.subr.bf16.mxu0 %v669
    %730 = vmatpush1.bf16.msra.mxu0 %v668
    %731 = vmatprep.subr.bf16.mxu0 %v672
    %732 = vmatpush1.bf16.msra.mxu0 %v671
    %733 = vmatprep.subr.bf16.mxu0 %v675
    %734 = vmatpush1.bf16.msra.mxu0 %v674
    %735 = vmatprep.subr.bf16.mxu0 %v678
    %736 = vmatpush1.bf16.msra.mxu0 %v677
    %737 = vmatprep.subr.bf16.mxu0 %v681
    %738 = vmatpush1.bf16.msra.mxu0 %v680
    %739 = vmatprep.subr.bf16.mxu0 %v720
    %740 = vmatpush1.bf16.msra.mxu0 %v717
    %741 = vmatprep.subr.bf16.mxu0 0
    %742 = vmatpush1.bf16.msra.mxu0 0
    %743 = vmatprep.subr.bf16.mxu0 0
    %744 = vmatpush1.bf16.msra.mxu0 0
    %745 = vmatprep.subr.bf16.mxu0 0
    %746 = vmatpush1.bf16.msra.mxu0 0
    %747 = vmatprep.subr.bf16.mxu0 0
    %748 = vmatpush1.bf16.msra.mxu0 0
    %749 = vmatprep.subr.bf16.mxu0 0
    %750 = vmatpush1.bf16.msra.mxu0 0
    %751 = vmatprep.subr.bf16.mxu0 0
    %752 = vmatpush1.bf16.msra.mxu0 0
    %753 = vmatprep.subr.bf16.mxu0 0
    %754 = vmatpush1.bf16.msra.mxu0 0
    %755 = vmatprep.subr.bf16.mxu0 0
    %756 = vmatpush1.bf16.msra.mxu0 0
    %757 = vmatprep.mubr.bf16.mxu0 0
    %758 = vmatmul.mubr.bf16.gmra.mrb[0].mxu0 %v708
    %v759 = vpop.f32.mrb[0].mxu0
    %v760 = vadd.f32 %v505, %v759
    %v761 = vpop.f32.mrb[0].mxu0
    %v762 = vadd.f32 %v507, %v761
    %v763 = vpop.f32.mrb[0].mxu0
    %v764 = vadd.f32 %v509, %v763
    %v765 = vpop.f32.mrb[0].mxu0
    %v766 = vadd.f32 %v511, %v765
    %767 = vmatprep.mubr.bf16.mxu0 0
    %768 = vmatmul.mubr.bf16.gmra.mrb[0].mxu0 %v711
    %v769 = vpop.f32.mrb[0].mxu0
    %v770 = vadd.f32 %v515, %v769
    %v771 = vpop.f32.mrb[0].mxu0
    %v772 = vadd.f32 %v517, %v771
    %v773 = vpop.f32.mrb[0].mxu0
    %v774 = vadd.f32 %v519, %v773
    %v775 = vpop.f32.mrb[0].mxu0
    %v776 = vadd.f32 %v521, %v775
    %777 = vmatprep.mubr.bf16.mxu0 0
    %778 = vmatmul.mubr.bf16.gmra.mrb[0].mxu0 %v714
    %v779 = vpop.f32.mrb[0].mxu0
    %v780 = vadd.f32 %v525, %v779
    %v781 = vpop.f32.mrb[0].mxu0
    %v782 = vadd.f32 %v527, %v781
    %v783 = vpop.f32.mrb[0].mxu0
    %v784 = vpop.f32.mrb[0].mxu0
    %785 = vdwg.mxu0
    %786 = vmatprep.subr.bf16.mxu0 0
    %787 = vmatpush1.bf16.msra.mxu0 %v664
    %788 = vmatprep.subr.bf16.mxu0 0
    %789 = vmatpush1.bf16.msra.mxu0 %v667
    %790 = vmatprep.subr.bf16.mxu0 0
    %791 = vmatpush1.bf16.msra.mxu0 %v670
    %792 = vmatprep.subr.bf16.mxu0 0
    %793 = vmatpush1.bf16.msra.mxu0 %v673
    %794 = vmatprep.subr.bf16.mxu0 0
    %795 = vmatpush1.bf16.msra.mxu0 %v676
    %796 = vmatprep.subr.bf16.mxu0 0
    %797 = vmatpush1.bf16.msra.mxu0 %v679
    %798 = vmatprep.subr.bf16.mxu0 0
    %799 = vmatpush1.bf16.msra.mxu0 %v682
    %800 = vmatprep.subr.bf16.mxu0 0
    %801 = vmatpush1.bf16.msra.mxu0 %v723
    %802 = vmatprep.subr.bf16.mxu0 0
    %803 = vmatpush1.bf16.msra.mxu0 0
    %804 = vmatprep.subr.bf16.mxu0 0
    %805 = vmatpush1.bf16.msra.mxu0 0
    %806 = vmatprep.subr.bf16.mxu0 0
    %807 = vmatpush1.bf16.msra.mxu0 0
    %808 = vmatprep.subr.bf16.mxu0 0
    %809 = vmatpush1.bf16.msra.mxu0 0
    %810 = vmatprep.subr.bf16.mxu0 0
    %811 = vmatpush1.bf16.msra.mxu0 0
    %812 = vmatprep.subr.bf16.mxu0 0
    %813 = vmatpush1.bf16.msra.mxu0 0
    %814 = vmatprep.subr.bf16.mxu0 0
    %815 = vmatpush1.bf16.msra.mxu0 0
    %816 = vmatprep.subr.bf16.mxu0 0
    %817 = vmatpush1.bf16.msra.mxu0 0
    %818 = vmatprep.mubr.bf16.mxu0 0
    %819 = vmatmul.mubr.bf16.gmra.mrb[0].mxu0 %v708
    %v820 = vpop.f32.mrb[0].mxu0
    %v821 = vadd.f32 %v566, %v820
    %v822 = vpop.f32.mrb[0].mxu0
    %v823 = vpop.f32.mrb[0].mxu0
    %v824 = vadd.f32 %v569, %v823
    %v825 = vpop.f32.mrb[0].mxu0
    %826 = vmatprep.mubr.bf16.mxu0 0
    %827 = vmatmul.mubr.bf16.gmra.mrb[0].mxu0 %v711
    %v828 = vpop.f32.mrb[0].mxu0
    %v829 = vadd.f32 %v574, %v828
    %v830 = vpop.f32.mrb[0].mxu0
    %v831 = vpop.f32.mrb[0].mxu0
    %v832 = vadd.f32 %v577, %v831
    %v833 = vpop.f32.mrb[0].mxu0
    %834 = vmatprep.mubr.bf16.mxu0 0
    %835 = vmatmul.mubr.bf16.gmra.mrb[0].mxu0 %v714
    %v836 = vpop.f32.mrb[0].mxu0
    %v837 = vadd.f32 %v582, %v836
    %v838 = vpop.f32.mrb[0].mxu0
    %v839 = vpop.f32.mrb[0].mxu0
    %v840 = vpop.f32.mrb[0].mxu0
    %841 = vdwg.mxu0
    %s842 = scalar_lea.vmem %s1, 40
    %v843 = vld [vmem:[%s842] sm:$0xf]
    %v844 = vld [vmem:[%s842 + $0x4] sm:$0xf]
    %v845 = vld [vmem:[%s842 + $0x8] sm:$0xf]
    %v846 = vld [vmem:[%s842 + $0xc] sm:$0xf]
    %v847 = vld [vmem:[%s842 + $0x10] sm:$0x3]
    %v853 = vunpack.c.l.b16 %v843
    %v854 = vunpack.c.l.b16 %v844
    %v855 = vunpack.c.l.b16 %v845
    %v856 = vunpack.c.l.b16 %v846
    %v857 = vunpack.c.l.b16 %v847
    %v858 = vpack.c.b16 %v854, %v853
    %v859 = vpack.c.b16 %v856, %v855
    %v860 = vpack.c.b16 %v857, %v857
    %v862 = vsel %vm113, %v858, 0
    %v865 = vsel %vm113, %v859, 0
    %v868 = vsel %vm113, %v860, 0
    %870 = vmatprep.subr.bf16.mxu0 0
    %871 = vmatpush1.bf16.msra.mxu0 %v103
    %872 = vmatprep.subr.bf16.mxu0 0
    %873 = vmatpush1.bf16.msra.mxu0 %v104
    %874 = vmatprep.subr.bf16.mxu0 0
    %875 = vmatpush1.bf16.msra.mxu0 %v105
    %876 = vmatprep.subr.bf16.mxu0 0
    %877 = vmatpush1.bf16.msra.mxu0 %v106
    %878 = vmatprep.subr.bf16.mxu0 0
    %879 = vmatpush1.bf16.msra.mxu0 %v107
    %880 = vmatprep.subr.bf16.mxu0 0
    %881 = vmatpush1.bf16.msra.mxu0 0
    %882 = vmatprep.subr.bf16.mxu0 0
    %883 = vmatpush1.bf16.msra.mxu0 0
    %884 = vmatprep.subr.bf16.mxu0 0
    %885 = vmatpush1.bf16.msra.mxu0 0
    %886 = vmatprep.subr.bf16.mxu0 0
    %887 = vmatpush1.bf16.msra.mxu0 0
    %888 = vmatprep.subr.bf16.mxu0 0
    %889 = vmatpush1.bf16.msra.mxu0 0
    %890 = vmatprep.subr.bf16.mxu0 0
    %891 = vmatpush1.bf16.msra.mxu0 0
    %892 = vmatprep.subr.bf16.mxu0 0
    %893 = vmatpush1.bf16.msra.mxu0 0
    %894 = vmatprep.subr.bf16.mxu0 0
    %895 = vmatpush1.bf16.msra.mxu0 0
    %896 = vmatprep.subr.bf16.mxu0 0
    %897 = vmatpush1.bf16.msra.mxu0 0
    %898 = vmatprep.subr.bf16.mxu0 0
    %899 = vmatpush1.bf16.msra.mxu0 0
    %900 = vmatprep.subr.bf16.mxu0 0
    %901 = vmatpush1.bf16.msra.mxu0 0
    %902 = vmatprep.mubr.bf16.mxu0 0
    %903 = vmatmul.mubr.bf16.gmra.mrb[0].mxu0 %v862
    %v904 = vpop.f32.mrb[0].mxu0
    %v905 = vadd.f32 0.0, %v904
    %v906 = vpop.f32.mrb[0].mxu0
    %v907 = vpop.f32.mrb[0].mxu0
    %v908 = vadd.f32 0.0, %v907
    %v909 = vpop.f32.mrb[0].mxu0
    %910 = vmatprep.mubr.bf16.mxu0 0
    %911 = vmatmul.mubr.bf16.gmra.mrb[0].mxu0 %v865
    %v912 = vpop.f32.mrb[0].mxu0
    %v913 = vadd.f32 0.0, %v912
    %v914 = vpop.f32.mrb[0].mxu0
    %v915 = vpop.f32.mrb[0].mxu0
    %v916 = vadd.f32 0.0, %v915
    %v917 = vpop.f32.mrb[0].mxu0
    %918 = vmatprep.mubr.bf16.mxu0 0
    %919 = vmatmul.mubr.bf16.gmra.mrb[0].mxu0 %v868
    %v920 = vpop.f32.mrb[0].mxu0
    %v921 = vadd.f32 0.0, %v920
    %v922 = vpop.f32.mrb[0].mxu0
    %v923 = vpop.f32.mrb[0].mxu0
    %v924 = vpop.f32.mrb[0].mxu0
    %925 = vdwg.mxu0
    %v926 = vpack.c.bf16 %v908, %v905
    %v927 = vpack.c.bf16 %v916, %v913
    %v928 = vpack.c.bf16 %v921, %v921
    %s929 = scalar_lea.vmem %s2, 360
    %v930 = vld [vmem:[%s929] sm:$0xff]
    %v931 = vld [vmem:[%s929 + $0x8] sm:$0xf]
    %v932 = vld [vmem:[%s929 + $0xc] sm:$0xff]
    %v933 = vld [vmem:[%s929 + $0x14] sm:$0xf]
    %v934 = vld [vmem:[%s929 + $0x18] sm:$0xff]
    %v935 = vld [vmem:[%s929 + $0x20] sm:$0xf]
    %v936 = vld [vmem:[%s929 + $0x24] sm:$0xff]
    %v937 = vld [vmem:[%s929 + $0x2c] sm:$0xf]
    %v938 = vld [vmem:[%s929 + $0x30] sm:$0xff]
    %v939 = vld [vmem:[%s929 + $0x38] sm:$0xf]
    %v940 = vld [vmem:[%s929 + $0x3c] sm:$0xff]
    %v941 = vld [vmem:[%s929 + $0x44] sm:$0xf]
    %v942 = vld [vmem:[%s929 + $0x48] sm:$0xff]
    %v943 = vld [vmem:[%s929 + $0x50] sm:$0xf]
    %v944 = vld [vmem:[%s929 + $0x54] sm:$0xff]
    %v945 = vld [vmem:[%s929 + $0x5c] sm:$0xf]
    %v946 = vld [vmem:[%s929 + $0x60] sm:$0xff]
    %v947 = vld [vmem:[%s929 + $0x68] sm:$0xf]
    %v948 = vld [vmem:[%s929 + $0x6c] sm:$0xff]
    %v949 = vld [vmem:[%s929 + $0x74] sm:$0xf]
    %v950 = vld [vmem:[%s929 + $0x78] sm:$0xff]
    %v951 = vld [vmem:[%s929 + $0x80] sm:$0xf]
    %v952 = vld [vmem:[%s929 + $0x84] sm:$0xff]
    %v953 = vld [vmem:[%s929 + $0x8c] sm:$0xf]
    %v954 = vld [vmem:[%s929 + $0x90] sm:$0xff]
    %v955 = vld [vmem:[%s929 + $0x98] sm:$0xf]
    %v956 = vld [vmem:[%s929 + $0x9c] sm:$0xff]
    %v957 = vld [vmem:[%s929 + $0xa4] sm:$0xf]
    %v958 = vld [vmem:[%s929 + $0xa8] sm:$0xff]
    %v959 = vld [vmem:[%s929 + $0xb0] sm:$0xf]
    %v990 = vunpack.c.l.b16 %v930
    %v991 = vunpack.c.h.b16 %v930
    %v992 = vunpack.c.l.b16 %v931
    %v993 = vunpack.c.l.b16 %v932
    %v994 = vunpack.c.h.b16 %v932
    %v995 = vunpack.c.l.b16 %v933
    %v996 = vunpack.c.l.b16 %v934
    %v997 = vunpack.c.h.b16 %v934
    %v998 = vunpack.c.l.b16 %v935
    %v999 = vunpack.c.l.b16 %v936
    %v1000 = vunpack.c.h.b16 %v936
    %v1001 = vunpack.c.l.b16 %v937
    %v1002 = vunpack.c.l.b16 %v938
    %v1003 = vunpack.c.h.b16 %v938
    %v1004 = vunpack.c.l.b16 %v939
    %v1005 = vunpack.c.l.b16 %v940
    %v1006 = vunpack.c.h.b16 %v940
    %v1007 = vunpack.c.l.b16 %v941
    %v1008 = vunpack.c.l.b16 %v942
    %v1009 = vunpack.c.h.b16 %v942
    %v1010 = vunpack.c.l.b16 %v943
    %v1011 = vunpack.c.l.b16 %v944
    %v1012 = vunpack.c.h.b16 %v944
    %v1013 = vunpack.c.l.b16 %v945
    %v1014 = vunpack.c.l.b16 %v946
    %v1015 = vunpack.c.h.b16 %v946
    %v1016 = vunpack.c.l.b16 %v947
    %v1017 = vunpack.c.l.b16 %v948
    %v1018 = vunpack.c.h.b16 %v948
    %v1019 = vunpack.c.l.b16 %v949
    %v1020 = vunpack.c.l.b16 %v950
    %v1021 = vunpack.c.h.b16 %v950
    %v1022 = vunpack.c.l.b16 %v951
    %v1023 = vunpack.c.l.b16 %v952
    %v1024 = vunpack.c.h.b16 %v952
    %v1025 = vunpack.c.l.b16 %v953
    %v1026 = vunpack.c.l.b16 %v954
    %v1027 = vunpack.c.h.b16 %v954
    %v1028 = vunpack.c.l.b16 %v955
    %v1029 = vunpack.c.l.b16 %v956
    %v1030 = vunpack.c.h.b16 %v956
    %v1031 = vunpack.c.l.b16 %v957
    %v1032 = vunpack.c.l.b16 %v958
    %v1033 = vunpack.c.h.b16 %v958
    %v1034 = vunpack.c.l.b16 %v959
    %v1035 = vpack.c.b16 %v993, %v990
    %v1036 = vpack.c.b16 %v994, %v991
    %v1037 = vpack.c.b16 %v995, %v992
    %v1038 = vpack.c.b16 %v999, %v996
    %v1039 = vpack.c.b16 %v1000, %v997
    %v1040 = vpack.c.b16 %v1001, %v998
    %v1041 = vpack.c.b16 %v1005, %v1002
    %v1042 = vpack.c.b16 %v1006, %v1003
    %v1043 = vpack.c.b16 %v1007, %v1004
    %v1044 = vpack.c.b16 %v1011, %v1008
    %v1045 = vpack.c.b16 %v1012, %v1009
    %v1046 = vpack.c.b16 %v1013, %v1010
    %v1047 = vpack.c.b16 %v1017, %v1014
    %v1048 = vpack.c.b16 %v1018, %v1015
    %v1049 = vpack.c.b16 %v1019, %v1016
    %v1050 = vpack.c.b16 %v1023, %v1020
    %v1051 = vpack.c.b16 %v1024, %v1021
    %v1052 = vpack.c.b16 %v1025, %v1022
    %v1053 = vpack.c.b16 %v1029, %v1026
    %v1054 = vpack.c.b16 %v1030, %v1027
    %v1055 = vpack.c.b16 %v1031, %v1028
    %v1056 = vpack.c.b16 %v1032, %v1032
    %v1057 = vpack.c.b16 %v1033, %v1033
    %v1058 = vpack.c.b16 %v1034, %v1034
    %v1081 = vsel %vm450, %v926, 0
    %v1084 = vsel %vm450, %v927, 0
    %v1087 = vsel %vm450, %v928, 0
    %v1090 = vsel %vm460, %v1056, 0
    %v1093 = vsel %vm460, %v1057, 0
    %v1096 = vsel %vm460, %v1058, 0
    %1098 = vmatprep.subr.bf16.mxu0 %v1036
    %1099 = vmatpush1.bf16.msra.mxu0 %v1035
    %1100 = vmatprep.subr.bf16.mxu0 %v1039
    %1101 = vmatpush1.bf16.msra.mxu0 %v1038
    %1102 = vmatprep.subr.bf16.mxu0 %v1042
    %1103 = vmatpush1.bf16.msra.mxu0 %v1041
    %1104 = vmatprep.subr.bf16.mxu0 %v1045
    %1105 = vmatpush1.bf16.msra.mxu0 %v1044
    %1106 = vmatprep.subr.bf16.mxu0 %v1048
    %1107 = vmatpush1.bf16.msra.mxu0 %v1047
    %1108 = vmatprep.subr.bf16.mxu0 %v1051
    %1109 = vmatpush1.bf16.msra.mxu0 %v1050
    %1110 = vmatprep.subr.bf16.mxu0 %v1054
    %1111 = vmatpush1.bf16.msra.mxu0 %v1053
    %1112 = vmatprep.subr.bf16.mxu0 %v1093
    %1113 = vmatpush1.bf16.msra.mxu0 %v1090
    %1114 = vmatprep.subr.bf16.mxu0 0
    %1115 = vmatpush1.bf16.msra.mxu0 0
    %1116 = vmatprep.subr.bf16.mxu0 0
    %1117 = vmatpush1.bf16.msra.mxu0 0
    %1118 = vmatprep.subr.bf16.mxu0 0
    %1119 = vmatpush1.bf16.msra.mxu0 0
    %1120 = vmatprep.subr.bf16.mxu0 0
    %1121 = vmatpush1.bf16.msra.mxu0 0
    %1122 = vmatprep.subr.bf16.mxu0 0
    %1123 = vmatpush1.bf16.msra.mxu0 0
    %1124 = vmatprep.subr.bf16.mxu0 0
    %1125 = vmatpush1.bf16.msra.mxu0 0
    %1126 = vmatprep.subr.bf16.mxu0 0
    %1127 = vmatpush1.bf16.msra.mxu0 0
    %1128 = vmatprep.subr.bf16.mxu0 0
    %1129 = vmatpush1.bf16.msra.mxu0 0
    %1130 = vmatprep.mubr.bf16.mxu0 0
    %1131 = vmatmul.mubr.bf16.gmra.mrb[0].mxu0 %v1081
    %v1132 = vpop.f32.mrb[0].mxu0
    %v1133 = vadd.f32 0.0, %v1132
    %v1134 = vpop.f32.mrb[0].mxu0
    %v1135 = vadd.f32 0.0, %v1134
    %v1136 = vpop.f32.mrb[0].mxu0
    %v1137 = vadd.f32 0.0, %v1136
    %v1138 = vpop.f32.mrb[0].mxu0
    %v1139 = vadd.f32 0.0, %v1138
    %1140 = vmatprep.mubr.bf16.mxu0 0
    %1141 = vmatmul.mubr.bf16.gmra.mrb[0].mxu0 %v1084
    %v1142 = vpop.f32.mrb[0].mxu0
    %v1143 = vadd.f32 0.0, %v1142
    %v1144 = vpop.f32.mrb[0].mxu0
    %v1145 = vadd.f32 0.0, %v1144
    %v1146 = vpop.f32.mrb[0].mxu0
    %v1147 = vadd.f32 0.0, %v1146
    %v1148 = vpop.f32.mrb[0].mxu0
    %v1149 = vadd.f32 0.0, %v1148
    %1150 = vmatprep.mubr.bf16.mxu0 0
    %1151 = vmatmul.mubr.bf16.gmra.mrb[0].mxu0 %v1087
    %v1152 = vpop.f32.mrb[0].mxu0
    %v1153 = vadd.f32 0.0, %v1152
    %v1154 = vpop.f32.mrb[0].mxu0
    %v1155 = vadd.f32 0.0, %v1154
    %v1156 = vpop.f32.mrb[0].mxu0
    %v1157 = vpop.f32.mrb[0].mxu0
    %1158 = vdwg.mxu0
    %1159 = vmatprep.subr.bf16.mxu0 0
    %1160 = vmatpush1.bf16.msra.mxu0 %v1037
    %1161 = vmatprep.subr.bf16.mxu0 0
    %1162 = vmatpush1.bf16.msra.mxu0 %v1040
    %1163 = vmatprep.subr.bf16.mxu0 0
    %1164 = vmatpush1.bf16.msra.mxu0 %v1043
    %1165 = vmatprep.subr.bf16.mxu0 0
    %1166 = vmatpush1.bf16.msra.mxu0 %v1046
    %1167 = vmatprep.subr.bf16.mxu0 0
    %1168 = vmatpush1.bf16.msra.mxu0 %v1049
    %1169 = vmatprep.subr.bf16.mxu0 0
    %1170 = vmatpush1.bf16.msra.mxu0 %v1052
    %1171 = vmatprep.subr.bf16.mxu0 0
    %1172 = vmatpush1.bf16.msra.mxu0 %v1055
    %1173 = vmatprep.subr.bf16.mxu0 0
    %1174 = vmatpush1.bf16.msra.mxu0 %v1096
    %1175 = vmatprep.subr.bf16.mxu0 0
    %1176 = vmatpush1.bf16.msra.mxu0 0
    %1177 = vmatprep.subr.bf16.mxu0 0
    %1178 = vmatpush1.bf16.msra.mxu0 0
    %1179 = vmatprep.subr.bf16.mxu0 0
    %1180 = vmatpush1.bf16.msra.mxu0 0
    %1181 = vmatprep.subr.bf16.mxu0 0
    %1182 = vmatpush1.bf16.msra.mxu0 0
    %1183 = vmatprep.subr.bf16.mxu0 0
    %1184 = vmatpush1.bf16.msra.mxu0 0
    %1185 = vmatprep.subr.bf16.mxu0 0
    %1186 = vmatpush1.bf16.msra.mxu0 0
    %1187 = vmatprep.subr.bf16.mxu0 0
    %1188 = vmatpush1.bf16.msra.mxu0 0
    %1189 = vmatprep.subr.bf16.mxu0 0
    %1190 = vmatpush1.bf16.msra.mxu0 0
    %1191 = vmatprep.mubr.bf16.mxu0 0
    %1192 = vmatmul.mubr.bf16.gmra.mrb[0].mxu0 %v1081
    %v1193 = vpop.f32.mrb[0].mxu0
    %v1194 = vadd.f32 0.0, %v1193
    %v1195 = vpop.f32.mrb[0].mxu0
    %v1196 = vpop.f32.mrb[0].mxu0
    %v1197 = vadd.f32 0.0, %v1196
    %v1198 = vpop.f32.mrb[0].mxu0
    %1199 = vmatprep.mubr.bf16.mxu0 0
    %1200 = vmatmul.mubr.bf16.gmra.mrb[0].mxu0 %v1084
    %v1201 = vpop.f32.mrb[0].mxu0
    %v1202 = vadd.f32 0.0, %v1201
    %v1203 = vpop.f32.mrb[0].mxu0
    %v1204 = vpop.f32.mrb[0].mxu0
    %v1205 = vadd.f32 0.0, %v1204
    %v1206 = vpop.f32.mrb[0].mxu0
    %1207 = vmatprep.mubr.bf16.mxu0 0
    %1208 = vmatmul.mubr.bf16.gmra.mrb[0].mxu0 %v1087
    %v1209 = vpop.f32.mrb[0].mxu0
    %v1210 = vadd.f32 0.0, %v1209
    %v1211 = vpop.f32.mrb[0].mxu0
    %v1212 = vpop.f32.mrb[0].mxu0
    %v1213 = vpop.f32.mrb[0].mxu0
    %1214 = vdwg.mxu0
    %v1215 = vadd.f32 %v760, %v1133
    %v1216 = vadd.f32 %v762, %v1135
    %v1217 = vadd.f32 %v821, %v1194
    %v1218 = vadd.f32 %v764, %v1137
    %v1219 = vadd.f32 %v766, %v1139
    %v1220 = vadd.f32 %v824, %v1197
    %v1221 = vadd.f32 %v770, %v1143
    %v1222 = vadd.f32 %v772, %v1145
    %v1223 = vadd.f32 %v829, %v1202
    %v1224 = vadd.f32 %v774, %v1147
    %v1225 = vadd.f32 %v776, %v1149
    %v1226 = vadd.f32 %v832, %v1205
    %v1227 = vadd.f32 %v780, %v1153
    %v1228 = vadd.f32 %v782, %v1155
    %v1229 = vadd.f32 %v837, %v1210
    %s1230 = scalar_lea.vmem %s1, 60
    %v1231 = vld [vmem:[%s1230] sm:$0xf]
    %v1232 = vld [vmem:[%s1230 + $0x4] sm:$0xf]
    %v1233 = vld [vmem:[%s1230 + $0x8] sm:$0xf]
    %v1234 = vld [vmem:[%s1230 + $0xc] sm:$0xf]
    %v1235 = vld [vmem:[%s1230 + $0x10] sm:$0x3]
    %v1241 = vunpack.c.l.b16 %v1231
    %v1242 = vunpack.c.l.b16 %v1232
    %v1243 = vunpack.c.l.b16 %v1233
    %v1244 = vunpack.c.l.b16 %v1234
    %v1245 = vunpack.c.l.b16 %v1235
    %v1246 = vpack.c.b16 %v1242, %v1241
    %v1247 = vpack.c.b16 %v1244, %v1243
    %v1248 = vpack.c.b16 %v1245, %v1245
    %v1250 = vsel %vm113, %v1246, 0
    %v1253 = vsel %vm113, %v1247, 0
    %v1256 = vsel %vm113, %v1248, 0
    %1258 = vmatprep.subr.bf16.mxu0 0
    %1259 = vmatpush1.bf16.msra.mxu0 %v103
    %1260 = vmatprep.subr.bf16.mxu0 0
    %1261 = vmatpush1.bf16.msra.mxu0 %v104
    %1262 = vmatprep.subr.bf16.mxu0 0
    %1263 = vmatpush1.bf16.msra.mxu0 %v105
    %1264 = vmatprep.subr.bf16.mxu0 0
    %1265 = vmatpush1.bf16.msra.mxu0 %v106
    %1266 = vmatprep.subr.bf16.mxu0 0
    %1267 = vmatpush1.bf16.msra.mxu0 %v107
    %1268 = vmatprep.subr.bf16.mxu0 0
    %1269 = vmatpush1.bf16.msra.mxu0 0
    %1270 = vmatprep.subr.bf16.mxu0 0
    %1271 = vmatpush1.bf16.msra.mxu0 0
    %1272 = vmatprep.subr.bf16.mxu0 0
    %1273 = vmatpush1.bf16.msra.mxu0 0
    %1274 = vmatprep.subr.bf16.mxu0 0
    %1275 = vmatpush1.bf16.msra.mxu0 0
    %1276 = vmatprep.subr.bf16.mxu0 0
    %1277 = vmatpush1.bf16.msra.mxu0 0
    %1278 = vmatprep.subr.bf16.mxu0 0
    %1279 = vmatpush1.bf16.msra.mxu0 0
    %1280 = vmatprep.subr.bf16.mxu0 0
    %1281 = vmatpush1.bf16.msra.mxu0 0
    %1282 = vmatprep.subr.bf16.mxu0 0
    %1283 = vmatpush1.bf16.msra.mxu0 0
    %1284 = vmatprep.subr.bf16.mxu0 0
    %1285 = vmatpush1.bf16.msra.mxu0 0
    %1286 = vmatprep.subr.bf16.mxu0 0
    %1287 = vmatpush1.bf16.msra.mxu0 0
    %1288 = vmatprep.subr.bf16.mxu0 0
    %1289 = vmatpush1.bf16.msra.mxu0 0
    %1290 = vmatprep.mubr.bf16.mxu0 0
    %1291 = vmatmul.mubr.bf16.gmra.mrb[0].mxu0 %v1250
    %v1292 = vpop.f32.mrb[0].mxu0
    %v1293 = vadd.f32 0.0, %v1292
    %v1294 = vpop.f32.mrb[0].mxu0
    %v1295 = vpop.f32.mrb[0].mxu0
    %v1296 = vadd.f32 0.0, %v1295
    %v1297 = vpop.f32.mrb[0].mxu0
    %1298 = vmatprep.mubr.bf16.mxu0 0
    %1299 = vmatmul.mubr.bf16.gmra.mrb[0].mxu0 %v1253
    %v1300 = vpop.f32.mrb[0].mxu0
    %v1301 = vadd.f32 0.0, %v1300
    %v1302 = vpop.f32.mrb[0].mxu0
    %v1303 = vpop.f32.mrb[0].mxu0
    %v1304 = vadd.f32 0.0, %v1303
    %v1305 = vpop.f32.mrb[0].mxu0
    %1306 = vmatprep.mubr.bf16.mxu0 0
    %1307 = vmatmul.mubr.bf16.gmra.mrb[0].mxu0 %v1256
    %v1308 = vpop.f32.mrb[0].mxu0
    %v1309 = vadd.f32 0.0, %v1308
    %v1310 = vpop.f32.mrb[0].mxu0
    %v1311 = vpop.f32.mrb[0].mxu0
    %v1312 = vpop.f32.mrb[0].mxu0
    %1313 = vdwg.mxu0
    %v1314 = vpack.c.bf16 %v1296, %v1293
    %v1315 = vpack.c.bf16 %v1304, %v1301
    %v1316 = vpack.c.bf16 %v1309, %v1309
    %s1317 = scalar_lea.vmem %s2, 540
    %v1318 = vld [vmem:[%s1317] sm:$0xff]
    %v1319 = vld [vmem:[%s1317 + $0x8] sm:$0xf]
    %v1320 = vld [vmem:[%s1317 + $0xc] sm:$0xff]
    %v1321 = vld [vmem:[%s1317 + $0x14] sm:$0xf]
    %v1322 = vld [vmem:[%s1317 + $0x18] sm:$0xff]
    %v1323 = vld [vmem:[%s1317 + $0x20] sm:$0xf]
    %v1324 = vld [vmem:[%s1317 + $0x24] sm:$0xff]
    %v1325 = vld [vmem:[%s1317 + $0x2c] sm:$0xf]
    %v1326 = vld [vmem:[%s1317 + $0x30] sm:$0xff]
    %v1327 = vld [vmem:[%s1317 + $0x38] sm:$0xf]
    %v1328 = vld [vmem:[%s1317 + $0x3c] sm:$0xff]
    %v1329 = vld [vmem:[%s1317 + $0x44] sm:$0xf]
    %v1330 = vld [vmem:[%s1317 + $0x48] sm:$0xff]
    %v1331 = vld [vmem:[%s1317 + $0x50] sm:$0xf]
    %v1332 = vld [vmem:[%s1317 + $0x54] sm:$0xff]
    %v1333 = vld [vmem:[%s1317 + $0x5c] sm:$0xf]
    %v1334 = vld [vmem:[%s1317 + $0x60] sm:$0xff]
    %v1335 = vld [vmem:[%s1317 + $0x68] sm:$0xf]
    %v1336 = vld [vmem:[%s1317 + $0x6c] sm:$0xff]
    %v1337 = vld [vmem:[%s1317 + $0x74] sm:$0xf]
    %v1338 = vld [vmem:[%s1317 + $0x78] sm:$0xff]
    %v1339 = vld [vmem:[%s1317 + $0x80] sm:$0xf]
    %v1340 = vld [vmem:[%s1317 + $0x84] sm:$0xff]
    %v1341 = vld [vmem:[%s1317 + $0x8c] sm:$0xf]
    %v1342 = vld [vmem:[%s1317 + $0x90] sm:$0xff]
    %v1343 = vld [vmem:[%s1317 + $0x98] sm:$0xf]
    %v1344 = vld [vmem:[%s1317 + $0x9c] sm:$0xff]
    %v1345 = vld [vmem:[%s1317 + $0xa4] sm:$0xf]
    %v1346 = vld [vmem:[%s1317 + $0xa8] sm:$0xff]
    %v1347 = vld [vmem:[%s1317 + $0xb0] sm:$0xf]
    %v1378 = vunpack.c.l.b16 %v1318
    %v1379 = vunpack.c.h.b16 %v1318
    %v1380 = vunpack.c.l.b16 %v1319
    %v1381 = vunpack.c.l.b16 %v1320
    %v1382 = vunpack.c.h.b16 %v1320
    %v1383 = vunpack.c.l.b16 %v1321
    %v1384 = vunpack.c.l.b16 %v1322
    %v1385 = vunpack.c.h.b16 %v1322
    %v1386 = vunpack.c.l.b16 %v1323
    %v1387 = vunpack.c.l.b16 %v1324
    %v1388 = vunpack.c.h.b16 %v1324
    %v1389 = vunpack.c.l.b16 %v1325
    %v1390 = vunpack.c.l.b16 %v1326
    %v1391 = vunpack.c.h.b16 %v1326
    %v1392 = vunpack.c.l.b16 %v1327
    %v1393 = vunpack.c.l.b16 %v1328
    %v1394 = vunpack.c.h.b16 %v1328
    %v1395 = vunpack.c.l.b16 %v1329
    %v1396 = vunpack.c.l.b16 %v1330
    %v1397 = vunpack.c.h.b16 %v1330
    %v1398 = vunpack.c.l.b16 %v1331
    %v1399 = vunpack.c.l.b16 %v1332
    %v1400 = vunpack.c.h.b16 %v1332
    %v1401 = vunpack.c.l.b16 %v1333
    %v1402 = vunpack.c.l.b16 %v1334
    %v1403 = vunpack.c.h.b16 %v1334
    %v1404 = vunpack.c.l.b16 %v1335
    %v1405 = vunpack.c.l.b16 %v1336
    %v1406 = vunpack.c.h.b16 %v1336
    %v1407 = vunpack.c.l.b16 %v1337
    %v1408 = vunpack.c.l.b16 %v1338
    %v1409 = vunpack.c.h.b16 %v1338
    %v1410 = vunpack.c.l.b16 %v1339
    %v1411 = vunpack.c.l.b16 %v1340
    %v1412 = vunpack.c.h.b16 %v1340
    %v1413 = vunpack.c.l.b16 %v1341
    %v1414 = vunpack.c.l.b16 %v1342
    %v1415 = vunpack.c.h.b16 %v1342
    %v1416 = vunpack.c.l.b16 %v1343
    %v1417 = vunpack.c.l.b16 %v1344
    %v1418 = vunpack.c.h.b16 %v1344
    %v1419 = vunpack.c.l.b16 %v1345
    %v1420 = vunpack.c.l.b16 %v1346
    %v1421 = vunpack.c.h.b16 %v1346
    %v1422 = vunpack.c.l.b16 %v1347
    %v1423 = vpack.c.b16 %v1381, %v1378
    %v1424 = vpack.c.b16 %v1382, %v1379
    %v1425 = vpack.c.b16 %v1383, %v1380
    %v1426 = vpack.c.b16 %v1387, %v1384
    %v1427 = vpack.c.b16 %v1388, %v1385
    %v1428 = vpack.c.b16 %v1389, %v1386
    %v1429 = vpack.c.b16 %v1393, %v1390
    %v1430 = vpack.c.b16 %v1394, %v1391
    %v1431 = vpack.c.b16 %v1395, %v1392
    %v1432 = vpack.c.b16 %v1399, %v1396
    %v1433 = vpack.c.b16 %v1400, %v1397
    %v1434 = vpack.c.b16 %v1401, %v1398
    %v1435 = vpack.c.b16 %v1405, %v1402
    %v1436 = vpack.c.b16 %v1406, %v1403
    %v1437 = vpack.c.b16 %v1407, %v1404
    %v1438 = vpack.c.b16 %v1411, %v1408
    %v1439 = vpack.c.b16 %v1412, %v1409
    %v1440 = vpack.c.b16 %v1413, %v1410
    %v1441 = vpack.c.b16 %v1417, %v1414
    %v1442 = vpack.c.b16 %v1418, %v1415
    %v1443 = vpack.c.b16 %v1419, %v1416
    %v1444 = vpack.c.b16 %v1420, %v1420
    %v1445 = vpack.c.b16 %v1421, %v1421
    %v1446 = vpack.c.b16 %v1422, %v1422
    %v1469 = vsel %vm450, %v1314, 0
    %v1472 = vsel %vm450, %v1315, 0
    %v1475 = vsel %vm450, %v1316, 0
    %v1478 = vsel %vm460, %v1444, 0
    %v1481 = vsel %vm460, %v1445, 0
    %v1484 = vsel %vm460, %v1446, 0
    %1486 = vmatprep.subr.bf16.mxu0 %v1424
    %1487 = vmatpush1.bf16.msra.mxu0 %v1423
    %1488 = vmatprep.subr.bf16.mxu0 %v1427
    %1489 = vmatpush1.bf16.msra.mxu0 %v1426
    %1490 = vmatprep.subr.bf16.mxu0 %v1430
    %1491 = vmatpush1.bf16.msra.mxu0 %v1429
    %1492 = vmatprep.subr.bf16.mxu0 %v1433
    %1493 = vmatpush1.bf16.msra.mxu0 %v1432
    %1494 = vmatprep.subr.bf16.mxu0 %v1436
    %1495 = vmatpush1.bf16.msra.mxu0 %v1435
    %1496 = vmatprep.subr.bf16.mxu0 %v1439
    %1497 = vmatpush1.bf16.msra.mxu0 %v1438
    %1498 = vmatprep.subr.bf16.mxu0 %v1442
    %1499 = vmatpush1.bf16.msra.mxu0 %v1441
    %1500 = vmatprep.subr.bf16.mxu0 %v1481
    %1501 = vmatpush1.bf16.msra.mxu0 %v1478
    %1502 = vmatprep.subr.bf16.mxu0 0
    %1503 = vmatpush1.bf16.msra.mxu0 0
    %1504 = vmatprep.subr.bf16.mxu0 0
    %1505 = vmatpush1.bf16.msra.mxu0 0
    %1506 = vmatprep.subr.bf16.mxu0 0
    %1507 = vmatpush1.bf16.msra.mxu0 0
    %1508 = vmatprep.subr.bf16.mxu0 0
    %1509 = vmatpush1.bf16.msra.mxu0 0
    %1510 = vmatprep.subr.bf16.mxu0 0
    %1511 = vmatpush1.bf16.msra.mxu0 0
    %1512 = vmatprep.subr.bf16.mxu0 0
    %1513 = vmatpush1.bf16.msra.mxu0 0
    %1514 = vmatprep.subr.bf16.mxu0 0
    %1515 = vmatpush1.bf16.msra.mxu0 0
    %1516 = vmatprep.subr.bf16.mxu0 0
    %1517 = vmatpush1.bf16.msra.mxu0 0
    %1518 = vmatprep.mubr.bf16.mxu0 0
    %1519 = vmatmul.mubr.bf16.gmra.mrb[0].mxu0 %v1469
    %v1520 = vpop.f32.mrb[0].mxu0
    %v1521 = vadd.f32 0.0, %v1520
    %v1522 = vpop.f32.mrb[0].mxu0
    %v1523 = vadd.f32 0.0, %v1522
    %v1524 = vpop.f32.mrb[0].mxu0
    %v1525 = vadd.f32 0.0, %v1524
    %v1526 = vpop.f32.mrb[0].mxu0
    %v1527 = vadd.f32 0.0, %v1526
    %1528 = vmatprep.mubr.bf16.mxu0 0
    %1529 = vmatmul.mubr.bf16.gmra.mrb[0].mxu0 %v1472
    %v1530 = vpop.f32.mrb[0].mxu0
    %v1531 = vadd.f32 0.0, %v1530
    %v1532 = vpop.f32.mrb[0].mxu0
    %v1533 = vadd.f32 0.0, %v1532
    %v1534 = vpop.f32.mrb[0].mxu0
    %v1535 = vadd.f32 0.0, %v1534
    %v1536 = vpop.f32.mrb[0].mxu0
    %v1537 = vadd.f32 0.0, %v1536
    %1538 = vmatprep.mubr.bf16.mxu0 0
    %1539 = vmatmul.mubr.bf16.gmra.mrb[0].mxu0 %v1475
    %v1540 = vpop.f32.mrb[0].mxu0
    %v1541 = vadd.f32 0.0, %v1540
    %v1542 = vpop.f32.mrb[0].mxu0
    %v1543 = vadd.f32 0.0, %v1542
    %v1544 = vpop.f32.mrb[0].mxu0
    %v1545 = vpop.f32.mrb[0].mxu0
    %1546 = vdwg.mxu0
    %1547 = vmatprep.subr.bf16.mxu0 0
    %1548 = vmatpush1.bf16.msra.mxu0 %v1425
    %1549 = vmatprep.subr.bf16.mxu0 0
    %1550 = vmatpush1.bf16.msra.mxu0 %v1428
    %1551 = vmatprep.subr.bf16.mxu0 0
    %1552 = vmatpush1.bf16.msra.mxu0 %v1431
    %1553 = vmatprep.subr.bf16.mxu0 0
    %1554 = vmatpush1.bf16.msra.mxu0 %v1434
    %1555 = vmatprep.subr.bf16.mxu0 0
    %1556 = vmatpush1.bf16.msra.mxu0 %v1437
    %1557 = vmatprep.subr.bf16.mxu0 0
    %1558 = vmatpush1.bf16.msra.mxu0 %v1440
    %1559 = vmatprep.subr.bf16.mxu0 0
    %1560 = vmatpush1.bf16.msra.mxu0 %v1443
    %1561 = vmatprep.subr.bf16.mxu0 0
    %1562 = vmatpush1.bf16.msra.mxu0 %v1484
    %1563 = vmatprep.subr.bf16.mxu0 0
    %1564 = vmatpush1.bf16.msra.mxu0 0
    %1565 = vmatprep.subr.bf16.mxu0 0
    %1566 = vmatpush1.bf16.msra.mxu0 0
    %1567 = vmatprep.subr.bf16.mxu0 0
    %1568 = vmatpush1.bf16.msra.mxu0 0
    %1569 = vmatprep.subr.bf16.mxu0 0
    %1570 = vmatpush1.bf16.msra.mxu0 0
    %1571 = vmatprep.subr.bf16.mxu0 0
    %1572 = vmatpush1.bf16.msra.mxu0 0
    %1573 = vmatprep.subr.bf16.mxu0 0
    %1574 = vmatpush1.bf16.msra.mxu0 0
    %1575 = vmatprep.subr.bf16.mxu0 0
    %1576 = vmatpush1.bf16.msra.mxu0 0
    %1577 = vmatprep.subr.bf16.mxu0 0
    %1578 = vmatpush1.bf16.msra.mxu0 0
    %1579 = vmatprep.mubr.bf16.mxu0 0
    %1580 = vmatmul.mubr.bf16.gmra.mrb[0].mxu0 %v1469
    %v1581 = vpop.f32.mrb[0].mxu0
    %v1582 = vadd.f32 0.0, %v1581
    %v1583 = vpop.f32.mrb[0].mxu0
    %v1584 = vpop.f32.mrb[0].mxu0
    %v1585 = vadd.f32 0.0, %v1584
    %v1586 = vpop.f32.mrb[0].mxu0
    %1587 = vmatprep.mubr.bf16.mxu0 0
    %1588 = vmatmul.mubr.bf16.gmra.mrb[0].mxu0 %v1472
    %v1589 = vpop.f32.mrb[0].mxu0
    %v1590 = vadd.f32 0.0, %v1589
    %v1591 = vpop.f32.mrb[0].mxu0
    %v1592 = vpop.f32.mrb[0].mxu0
    %v1593 = vadd.f32 0.0, %v1592
    %v1594 = vpop.f32.mrb[0].mxu0
    %1595 = vmatprep.mubr.bf16.mxu0 0
    %1596 = vmatmul.mubr.bf16.gmra.mrb[0].mxu0 %v1475
    %v1597 = vpop.f32.mrb[0].mxu0
    %v1598 = vadd.f32 0.0, %v1597
    %v1599 = vpop.f32.mrb[0].mxu0
    %v1600 = vpop.f32.mrb[0].mxu0
    %v1601 = vpop.f32.mrb[0].mxu0
    %1602 = vdwg.mxu0
    %v1603 = vadd.f32 %v1215, %v1521
    %v1604 = vadd.f32 %v1216, %v1523
    %v1605 = vadd.f32 %v1217, %v1582
    %v1606 = vadd.f32 %v1218, %v1525
    %v1607 = vadd.f32 %v1219, %v1527
    %v1608 = vadd.f32 %v1220, %v1585
    %v1609 = vadd.f32 %v1221, %v1531
    %v1610 = vadd.f32 %v1222, %v1533
    %v1611 = vadd.f32 %v1223, %v1590
    %v1612 = vadd.f32 %v1224, %v1535
    %v1613 = vadd.f32 %v1225, %v1537
    %v1614 = vadd.f32 %v1226, %v1593
    %v1615 = vadd.f32 %v1227, %v1541
    %v1616 = vadd.f32 %v1228, %v1543
    %v1617 = vadd.f32 %v1229, %v1598
    %s1618 = scalar_lea.vmem %s1, 80
    %v1619 = vld [vmem:[%s1618] sm:$0xf]
    %v1620 = vld [vmem:[%s1618 + $0x4] sm:$0xf]
    %v1621 = vld [vmem:[%s1618 + $0x8] sm:$0xf]
    %v1622 = vld [vmem:[%s1618 + $0xc] sm:$0xf]
    %v1623 = vld [vmem:[%s1618 + $0x10] sm:$0x3]
    %v1629 = vunpack.c.l.b16 %v1619
    %v1630 = vunpack.c.l.b16 %v1620
    %v1631 = vunpack.c.l.b16 %v1621
    %v1632 = vunpack.c.l.b16 %v1622
    %v1633 = vunpack.c.l.b16 %v1623
    %v1634 = vpack.c.b16 %v1630, %v1629
    %v1635 = vpack.c.b16 %v1632, %v1631
    %v1636 = vpack.c.b16 %v1633, %v1633
    %v1638 = vsel %vm113, %v1634, 0
    %v1641 = vsel %vm113, %v1635, 0
    %v1644 = vsel %vm113, %v1636, 0
    %1646 = vmatprep.subr.bf16.mxu0 0
    %1647 = vmatpush1.bf16.msra.mxu0 %v103
    %1648 = vmatprep.subr.bf16.mxu0 0
    %1649 = vmatpush1.bf16.msra.mxu0 %v104
    %1650 = vmatprep.subr.bf16.mxu0 0
    %1651 = vmatpush1.bf16.msra.mxu0 %v105
    %1652 = vmatprep.subr.bf16.mxu0 0
    %1653 = vmatpush1.bf16.msra.mxu0 %v106
    %1654 = vmatprep.subr.bf16.mxu0 0
    %1655 = vmatpush1.bf16.msra.mxu0 %v107
    %1656 = vmatprep.subr.bf16.mxu0 0
    %1657 = vmatpush1.bf16.msra.mxu0 0
    %1658 = vmatprep.subr.bf16.mxu0 0
    %1659 = vmatpush1.bf16.msra.mxu0 0
    %1660 = vmatprep.subr.bf16.mxu0 0
    %1661 = vmatpush1.bf16.msra.mxu0 0
    %1662 = vmatprep.subr.bf16.mxu0 0
    %1663 = vmatpush1.bf16.msra.mxu0 0
    %1664 = vmatprep.subr.bf16.mxu0 0
    %1665 = vmatpush1.bf16.msra.mxu0 0
    %1666 = vmatprep.subr.bf16.mxu0 0
    %1667 = vmatpush1.bf16.msra.mxu0 0
    %1668 = vmatprep.subr.bf16.mxu0 0
    %1669 = vmatpush1.bf16.msra.mxu0 0
    %1670 = vmatprep.subr.bf16.mxu0 0
    %1671 = vmatpush1.bf16.msra.mxu0 0
    %1672 = vmatprep.subr.bf16.mxu0 0
    %1673 = vmatpush1.bf16.msra.mxu0 0
    %1674 = vmatprep.subr.bf16.mxu0 0
    %1675 = vmatpush1.bf16.msra.mxu0 0
    %1676 = vmatprep.subr.bf16.mxu0 0
    %1677 = vmatpush1.bf16.msra.mxu0 0
    %1678 = vmatprep.mubr.bf16.mxu0 0
    %1679 = vmatmul.mubr.bf16.gmra.mrb[0].mxu0 %v1638
    %v1680 = vpop.f32.mrb[0].mxu0
    %v1681 = vadd.f32 0.0, %v1680
    %v1682 = vpop.f32.mrb[0].mxu0
    %v1683 = vpop.f32.mrb[0].mxu0
    %v1684 = vadd.f32 0.0, %v1683
    %v1685 = vpop.f32.mrb[0].mxu0
    %1686 = vmatprep.mubr.bf16.mxu0 0
    %1687 = vmatmul.mubr.bf16.gmra.mrb[0].mxu0 %v1641
    %v1688 = vpop.f32.mrb[0].mxu0
    %v1689 = vadd.f32 0.0, %v1688
    %v1690 = vpop.f32.mrb[0].mxu0
    %v1691 = vpop.f32.mrb[0].mxu0
    %v1692 = vadd.f32 0.0, %v1691
    %v1693 = vpop.f32.mrb[0].mxu0
    %1694 = vmatprep.mubr.bf16.mxu0 0
    %1695 = vmatmul.mubr.bf16.gmra.mrb[0].mxu0 %v1644
    %v1696 = vpop.f32.mrb[0].mxu0
    %v1697 = vadd.f32 0.0, %v1696
    %v1698 = vpop.f32.mrb[0].mxu0
    %v1699 = vpop.f32.mrb[0].mxu0
    %v1700 = vpop.f32.mrb[0].mxu0
    %1701 = vdwg.mxu0
    %v1702 = vpack.c.bf16 %v1684, %v1681
    %v1703 = vpack.c.bf16 %v1692, %v1689
    %v1704 = vpack.c.bf16 %v1697, %v1697
    %s1705 = scalar_lea.vmem %s2, 720
    %v1706 = vld [vmem:[%s1705] sm:$0xff]
    %v1707 = vld [vmem:[%s1705 + $0x8] sm:$0xf]
    %v1708 = vld [vmem:[%s1705 + $0xc] sm:$0xff]
    %v1709 = vld [vmem:[%s1705 + $0x14] sm:$0xf]
    %v1710 = vld [vmem:[%s1705 + $0x18] sm:$0xff]
    %v1711 = vld [vmem:[%s1705 + $0x20] sm:$0xf]
    %v1712 = vld [vmem:[%s1705 + $0x24] sm:$0xff]
    %v1713 = vld [vmem:[%s1705 + $0x2c] sm:$0xf]
    %v1714 = vld [vmem:[%s1705 + $0x30] sm:$0xff]
    %v1715 = vld [vmem:[%s1705 + $0x38] sm:$0xf]
    %v1716 = vld [vmem:[%s1705 + $0x3c] sm:$0xff]
    %v1717 = vld [vmem:[%s1705 + $0x44] sm:$0xf]
    %v1718 = vld [vmem:[%s1705 + $0x48] sm:$0xff]
    %v1719 = vld [vmem:[%s1705 + $0x50] sm:$0xf]
    %v1720 = vld [vmem:[%s1705 + $0x54] sm:$0xff]
    %v1721 = vld [vmem:[%s1705 + $0x5c] sm:$0xf]
    %v1722 = vld [vmem:[%s1705 + $0x60] sm:$0xff]
    %v1723 = vld [vmem:[%s1705 + $0x68] sm:$0xf]
    %v1724 = vld [vmem:[%s1705 + $0x6c] sm:$0xff]
    %v1725 = vld [vmem:[%s1705 + $0x74] sm:$0xf]
    %v1726 = vld [vmem:[%s1705 + $0x78] sm:$0xff]
    %v1727 = vld [vmem:[%s1705 + $0x80] sm:$0xf]
    %v1728 = vld [vmem:[%s1705 + $0x84] sm:$0xff]
    %v1729 = vld [vmem:[%s1705 + $0x8c] sm:$0xf]
    %v1730 = vld [vmem:[%s1705 + $0x90] sm:$0xff]
    %v1731 = vld [vmem:[%s1705 + $0x98] sm:$0xf]
    %v1732 = vld [vmem:[%s1705 + $0x9c] sm:$0xff]
    %v1733 = vld [vmem:[%s1705 + $0xa4] sm:$0xf]
    %v1734 = vld [vmem:[%s1705 + $0xa8] sm:$0xff]
    %v1735 = vld [vmem:[%s1705 + $0xb0] sm:$0xf]
    %v1766 = vunpack.c.l.b16 %v1706
    %v1767 = vunpack.c.h.b16 %v1706
    %v1768 = vunpack.c.l.b16 %v1707
    %v1769 = vunpack.c.l.b16 %v1708
    %v1770 = vunpack.c.h.b16 %v1708
    %v1771 = vunpack.c.l.b16 %v1709
    %v1772 = vunpack.c.l.b16 %v1710
    %v1773 = vunpack.c.h.b16 %v1710
    %v1774 = vunpack.c.l.b16 %v1711
    %v1775 = vunpack.c.l.b16 %v1712
    %v1776 = vunpack.c.h.b16 %v1712
    %v1777 = vunpack.c.l.b16 %v1713
    %v1778 = vunpack.c.l.b16 %v1714
    %v1779 = vunpack.c.h.b16 %v1714
    %v1780 = vunpack.c.l.b16 %v1715
    %v1781 = vunpack.c.l.b16 %v1716
    %v1782 = vunpack.c.h.b16 %v1716
    %v1783 = vunpack.c.l.b16 %v1717
    %v1784 = vunpack.c.l.b16 %v1718
    %v1785 = vunpack.c.h.b16 %v1718
    %v1786 = vunpack.c.l.b16 %v1719
    %v1787 = vunpack.c.l.b16 %v1720
    %v1788 = vunpack.c.h.b16 %v1720
    %v1789 = vunpack.c.l.b16 %v1721
    %v1790 = vunpack.c.l.b16 %v1722
    %v1791 = vunpack.c.h.b16 %v1722
    %v1792 = vunpack.c.l.b16 %v1723
    %v1793 = vunpack.c.l.b16 %v1724
    %v1794 = vunpack.c.h.b16 %v1724
    %v1795 = vunpack.c.l.b16 %v1725
    %v1796 = vunpack.c.l.b16 %v1726
    %v1797 = vunpack.c.h.b16 %v1726
    %v1798 = vunpack.c.l.b16 %v1727
    %v1799 = vunpack.c.l.b16 %v1728
    %v1800 = vunpack.c.h.b16 %v1728
    %v1801 = vunpack.c.l.b16 %v1729
    %v1802 = vunpack.c.l.b16 %v1730
    %v1803 = vunpack.c.h.b16 %v1730
    %v1804 = vunpack.c.l.b16 %v1731
    %v1805 = vunpack.c.l.b16 %v1732
    %v1806 = vunpack.c.h.b16 %v1732
    %v1807 = vunpack.c.l.b16 %v1733
    %v1808 = vunpack.c.l.b16 %v1734
    %v1809 = vunpack.c.h.b16 %v1734
    %v1810 = vunpack.c.l.b16 %v1735
    %v1811 = vpack.c.b16 %v1769, %v1766
    %v1812 = vpack.c.b16 %v1770, %v1767
    %v1813 = vpack.c.b16 %v1771, %v1768
    %v1814 = vpack.c.b16 %v1775, %v1772
    %v1815 = vpack.c.b16 %v1776, %v1773
    %v1816 = vpack.c.b16 %v1777, %v1774
    %v1817 = vpack.c.b16 %v1781, %v1778
    %v1818 = vpack.c.b16 %v1782, %v1779
    %v1819 = vpack.c.b16 %v1783, %v1780
    %v1820 = vpack.c.b16 %v1787, %v1784
    %v1821 = vpack.c.b16 %v1788, %v1785
    %v1822 = vpack.c.b16 %v1789, %v1786
    %v1823 = vpack.c.b16 %v1793, %v1790
    %v1824 = vpack.c.b16 %v1794, %v1791
    %v1825 = vpack.c.b16 %v1795, %v1792
    %v1826 = vpack.c.b16 %v1799, %v1796
    %v1827 = vpack.c.b16 %v1800, %v1797
    %v1828 = vpack.c.b16 %v1801, %v1798
    %v1829 = vpack.c.b16 %v1805, %v1802
    %v1830 = vpack.c.b16 %v1806, %v1803
    %v1831 = vpack.c.b16 %v1807, %v1804
    %v1832 = vpack.c.b16 %v1808, %v1808
    %v1833 = vpack.c.b16 %v1809, %v1809
    %v1834 = vpack.c.b16 %v1810, %v1810
    %v1857 = vsel %vm450, %v1702, 0
    %v1860 = vsel %vm450, %v1703, 0
    %v1863 = vsel %vm450, %v1704, 0
    %v1866 = vsel %vm460, %v1832, 0
    %v1869 = vsel %vm460, %v1833, 0
    %v1872 = vsel %vm460, %v1834, 0
    %1874 = vmatprep.subr.bf16.mxu0 %v1812
    %1875 = vmatpush1.bf16.msra.mxu0 %v1811
    %1876 = vmatprep.subr.bf16.mxu0 %v1815
    %1877 = vmatpush1.bf16.msra.mxu0 %v1814
    %1878 = vmatprep.subr.bf16.mxu0 %v1818
    %1879 = vmatpush1.bf16.msra.mxu0 %v1817
    %1880 = vmatprep.subr.bf16.mxu0 %v1821
    %1881 = vmatpush1.bf16.msra.mxu0 %v1820
    %1882 = vmatprep.subr.bf16.mxu0 %v1824
    %1883 = vmatpush1.bf16.msra.mxu0 %v1823
    %1884 = vmatprep.subr.bf16.mxu0 %v1827
    %1885 = vmatpush1.bf16.msra.mxu0 %v1826
    %1886 = vmatprep.subr.bf16.mxu0 %v1830
    %1887 = vmatpush1.bf16.msra.mxu0 %v1829
    %1888 = vmatprep.subr.bf16.mxu0 %v1869
    %1889 = vmatpush1.bf16.msra.mxu0 %v1866
    %1890 = vmatprep.subr.bf16.mxu0 0
    %1891 = vmatpush1.bf16.msra.mxu0 0
    %1892 = vmatprep.subr.bf16.mxu0 0
    %1893 = vmatpush1.bf16.msra.mxu0 0
    %1894 = vmatprep.subr.bf16.mxu0 0
    %1895 = vmatpush1.bf16.msra.mxu0 0
    %1896 = vmatprep.subr.bf16.mxu0 0
    %1897 = vmatpush1.bf16.msra.mxu0 0
    %1898 = vmatprep.subr.bf16.mxu0 0
    %1899 = vmatpush1.bf16.msra.mxu0 0
    %1900 = vmatprep.subr.bf16.mxu0 0
    %1901 = vmatpush1.bf16.msra.mxu0 0
    %1902 = vmatprep.subr.bf16.mxu0 0
    %1903 = vmatpush1.bf16.msra.mxu0 0
    %1904 = vmatprep.subr.bf16.mxu0 0
    %1905 = vmatpush1.bf16.msra.mxu0 0
    %1906 = vmatprep.mubr.bf16.mxu0 0
    %1907 = vmatmul.mubr.bf16.gmra.mrb[0].mxu0 %v1857
    %v1908 = vpop.f32.mrb[0].mxu0
    %v1909 = vadd.f32 0.0, %v1908
    %v1910 = vpop.f32.mrb[0].mxu0
    %v1911 = vadd.f32 0.0, %v1910
    %v1912 = vpop.f32.mrb[0].mxu0
    %v1913 = vadd.f32 0.0, %v1912
    %v1914 = vpop.f32.mrb[0].mxu0
    %v1915 = vadd.f32 0.0, %v1914
    %1916 = vmatprep.mubr.bf16.mxu0 0
    %1917 = vmatmul.mubr.bf16.gmra.mrb[0].mxu0 %v1860
    %v1918 = vpop.f32.mrb[0].mxu0
    %v1919 = vadd.f32 0.0, %v1918
    %v1920 = vpop.f32.mrb[0].mxu0
    %v1921 = vadd.f32 0.0, %v1920
    %v1922 = vpop.f32.mrb[0].mxu0
    %v1923 = vadd.f32 0.0, %v1922
    %v1924 = vpop.f32.mrb[0].mxu0
    %v1925 = vadd.f32 0.0, %v1924
    %1926 = vmatprep.mubr.bf16.mxu0 0
    %1927 = vmatmul.mubr.bf16.gmra.mrb[0].mxu0 %v1863
    %v1928 = vpop.f32.mrb[0].mxu0
    %v1929 = vadd.f32 0.0, %v1928
    %v1930 = vpop.f32.mrb[0].mxu0
    %v1931 = vadd.f32 0.0, %v1930
    %v1932 = vpop.f32.mrb[0].mxu0
    %v1933 = vpop.f32.mrb[0].mxu0
    %1934 = vdwg.mxu0
    %1935 = vmatprep.subr.bf16.mxu0 0
    %1936 = vmatpush1.bf16.msra.mxu0 %v1813
    %1937 = vmatprep.subr.bf16.mxu0 0
    %1938 = vmatpush1.bf16.msra.mxu0 %v1816
    %1939 = vmatprep.subr.bf16.mxu0 0
    %1940 = vmatpush1.bf16.msra.mxu0 %v1819
    %1941 = vmatprep.subr.bf16.mxu0 0
    %1942 = vmatpush1.bf16.msra.mxu0 %v1822
    %1943 = vmatprep.subr.bf16.mxu0 0
    %1944 = vmatpush1.bf16.msra.mxu0 %v1825
    %1945 = vmatprep.subr.bf16.mxu0 0
    %1946 = vmatpush1.bf16.msra.mxu0 %v1828
    %1947 = vmatprep.subr.bf16.mxu0 0
    %1948 = vmatpush1.bf16.msra.mxu0 %v1831
    %1949 = vmatprep.subr.bf16.mxu0 0
    %1950 = vmatpush1.bf16.msra.mxu0 %v1872
    %1951 = vmatprep.subr.bf16.mxu0 0
    %1952 = vmatpush1.bf16.msra.mxu0 0
    %1953 = vmatprep.subr.bf16.mxu0 0
    %1954 = vmatpush1.bf16.msra.mxu0 0
    %1955 = vmatprep.subr.bf16.mxu0 0
    %1956 = vmatpush1.bf16.msra.mxu0 0
    %1957 = vmatprep.subr.bf16.mxu0 0
    %1958 = vmatpush1.bf16.msra.mxu0 0
    %1959 = vmatprep.subr.bf16.mxu0 0
    %1960 = vmatpush1.bf16.msra.mxu0 0
    %1961 = vmatprep.subr.bf16.mxu0 0
    %1962 = vmatpush1.bf16.msra.mxu0 0
    %1963 = vmatprep.subr.bf16.mxu0 0
    %1964 = vmatpush1.bf16.msra.mxu0 0
    %1965 = vmatprep.subr.bf16.mxu0 0
    %1966 = vmatpush1.bf16.msra.mxu0 0
    %1967 = vmatprep.mubr.bf16.mxu0 0
    %1968 = vmatmul.mubr.bf16.gmra.mrb[0].mxu0 %v1857
    %v1969 = vpop.f32.mrb[0].mxu0
    %v1970 = vadd.f32 0.0, %v1969
    %v1971 = vpop.f32.mrb[0].mxu0
    %v1972 = vpop.f32.mrb[0].mxu0
    %v1973 = vadd.f32 0.0, %v1972
    %v1974 = vpop.f32.mrb[0].mxu0
    %1975 = vmatprep.mubr.bf16.mxu0 0
    %1976 = vmatmul.mubr.bf16.gmra.mrb[0].mxu0 %v1860
    %v1977 = vpop.f32.mrb[0].mxu0
    %v1978 = vadd.f32 0.0, %v1977
    %v1979 = vpop.f32.mrb[0].mxu0
    %v1980 = vpop.f32.mrb[0].mxu0
    %v1981 = vadd.f32 0.0, %v1980
    %v1982 = vpop.f32.mrb[0].mxu0
    %1983 = vmatprep.mubr.bf16.mxu0 0
    %1984 = vmatmul.mubr.bf16.gmra.mrb[0].mxu0 %v1863
    %v1985 = vpop.f32.mrb[0].mxu0
    %v1986 = vadd.f32 0.0, %v1985
    %v1987 = vpop.f32.mrb[0].mxu0
    %v1988 = vpop.f32.mrb[0].mxu0
    %v1989 = vpop.f32.mrb[0].mxu0
    %1990 = vdwg.mxu0
    %v1991 = vadd.f32 %v1603, %v1909
    %v1992 = vadd.f32 %v1604, %v1911
    %v1993 = vadd.f32 %v1605, %v1970
    %v1994 = vadd.f32 %v1606, %v1913
    %v1995 = vadd.f32 %v1607, %v1915
    %v1996 = vadd.f32 %v1608, %v1973
    %v1997 = vadd.f32 %v1609, %v1919
    %v1998 = vadd.f32 %v1610, %v1921
    %v1999 = vadd.f32 %v1611, %v1978
    %v2000 = vadd.f32 %v1612, %v1923
    %v2001 = vadd.f32 %v1613, %v1925
    %v2002 = vadd.f32 %v1614, %v1981
    %v2003 = vadd.f32 %v1615, %v1929
    %v2004 = vadd.f32 %v1616, %v1931
    %v2005 = vadd.f32 %v1617, %v1986
    %v2006 = vadd.f32 %v1991, %v1994
    %v2007 = vadd.f32 %v2006, %v1997
    %v2008 = vadd.f32 %v2007, %v2000
    %v2009 = vsel %vm460, %v2003, 0.0
    %v2010 = vadd.f32 %v2008, %v2009
    %v2011 = vrot.slane %v2010, 4
    %v2012 = vadd.f32 %v2010, %v2011
    %v2013 = vrot.slane %v2012, 2
    %v2014 = vadd.f32 %v2012, %v2013
    %v2015 = vrot.slane %v2014, 1
    %v2016 = vadd.f32 %v2014, %v2015
    %v2017 = vadd.f32 %v1992, %v1995
    %v2018 = vadd.f32 %v2017, %v1998
    %v2019 = vadd.f32 %v2018, %v2001
    %v2020 = vsel %vm460, %v2004, 0.0
    %v2021 = vadd.f32 %v2019, %v2020
    %v2022 = vrot.slane %v2021, 4
    %v2023 = vadd.f32 %v2021, %v2022
    %v2024 = vrot.slane %v2023, 2
    %v2025 = vadd.f32 %v2023, %v2024
    %v2026 = vrot.slane %v2025, 1
    %v2027 = vadd.f32 %v2025, %v2026
    %vm2028 = vcmask 261120
    %v2029 = vsel %vm2028, %v1993, 0.0
    %v2030 = vsel %vm2028, %v1996, 0.0
    %v2031 = vadd.f32 %v2029, %v2030
    %v2032 = vsel %vm2028, %v1999, 0.0
    %v2033 = vadd.f32 %v2031, %v2032
    %v2034 = vsel %vm2028, %v2002, 0.0
    %v2035 = vadd.f32 %v2033, %v2034
    %vm2036 = vcmask 257024
    %v2037 = vsel %vm2036, %v2005, 0.0
    %v2038 = vadd.f32 %v2035, %v2037
    %v2039 = vrot.slane %v2038, 4
    %v2040 = vadd.f32 %v2038, %v2039
    %v2041 = vrot.slane %v2040, 2
    %v2042 = vadd.f32 %v2040, %v2041
    %v2043 = vrot.slane %v2042, 1
    %v2044 = vadd.f32 %v2042, %v2043
    %v2045 = vmul.f32 %v1991, %v1991
    %v2046 = vmul.f32 %v1992, %v1992
    %v2047 = vmul.f32 %v1993, %v1993
    %v2048 = vmul.f32 %v1994, %v1994
    %v2049 = vmul.f32 %v1995, %v1995
    %v2050 = vmul.f32 %v1996, %v1996
    %v2051 = vmul.f32 %v1997, %v1997
    %v2052 = vmul.f32 %v1998, %v1998
    %v2053 = vmul.f32 %v1999, %v1999
    %v2054 = vmul.f32 %v2000, %v2000
    %v2055 = vmul.f32 %v2001, %v2001
    %v2056 = vmul.f32 %v2002, %v2002
    %v2057 = vmul.f32 %v2003, %v2003
    %v2058 = vmul.f32 %v2004, %v2004
    %v2059 = vmul.f32 %v2005, %v2005
    %v2060 = vadd.f32 %v2045, %v2048
    %v2061 = vadd.f32 %v2060, %v2051
    %v2062 = vadd.f32 %v2061, %v2054
    %v2063 = vsel %vm460, %v2057, 0.0
    %v2064 = vadd.f32 %v2062, %v2063
    %v2065 = vrot.slane %v2064, 4
    %v2066 = vadd.f32 %v2064, %v2065
    %v2067 = vrot.slane %v2066, 2
    %v2068 = vadd.f32 %v2066, %v2067
    %v2069 = vrot.slane %v2068, 1
    %v2070 = vadd.f32 %v2068, %v2069
    %v2071 = vadd.f32 %v2046, %v2049
    %v2072 = vadd.f32 %v2071, %v2052
    %v2073 = vadd.f32 %v2072, %v2055
    %v2074 = vsel %vm460, %v2058, 0.0
    %v2075 = vadd.f32 %v2073, %v2074
    %v2076 = vrot.slane %v2075, 4
    %v2077 = vadd.f32 %v2075, %v2076
    %v2078 = vrot.slane %v2077, 2
    %v2079 = vadd.f32 %v2077, %v2078
    %v2080 = vrot.slane %v2079, 1
    %v2081 = vadd.f32 %v2079, %v2080
    %v2082 = vsel %vm2028, %v2047, 0.0
    %v2083 = vsel %vm2028, %v2050, 0.0
    %v2084 = vadd.f32 %v2082, %v2083
    %v2085 = vsel %vm2028, %v2053, 0.0
    %v2086 = vadd.f32 %v2084, %v2085
    %v2087 = vsel %vm2028, %v2056, 0.0
    %v2088 = vadd.f32 %v2086, %v2087
    %v2089 = vsel %vm2036, %v2059, 0.0
    %v2090 = vadd.f32 %v2088, %v2089
    %v2091 = vrot.slane %v2090, 4
    %v2092 = vadd.f32 %v2090, %v2091
    %v2093 = vrot.slane %v2092, 2
    %v2094 = vadd.f32 %v2092, %v2093
    %v2095 = vrot.slane %v2094, 1
    %v2096 = vadd.f32 %v2094, %v2095
    %2098 = vrot.lane.b32.xlu0 %v2016, 112
    %v2099 = vpop.permute.xlu0 %2098
    %v2101 = vadd.f32 %v2016, %v2099
    %2103 = vrot.lane.b32.xlu0 %v2070, 112
    %v2104 = vpop.permute.xlu0 %2103
    %v2106 = vadd.f32 %v2070, %v2104
    %2107 = vrot.lane.b32.xlu0 %v2016, 96
    %v2108 = vpop.permute.xlu0 %2107
    %v2110 = vadd.f32 %v2101, %v2108
    %2111 = vrot.lane.b32.xlu0 %v2070, 96
    %v2112 = vpop.permute.xlu0 %2111
    %v2114 = vadd.f32 %v2106, %v2112
    %2115 = vrot.lane.b32.xlu0 %v2016, 80
    %v2116 = vpop.permute.xlu0 %2115
    %v2118 = vadd.f32 %v2110, %v2116
    %2119 = vrot.lane.b32.xlu0 %v2070, 80
    %v2120 = vpop.permute.xlu0 %2119
    %v2122 = vadd.f32 %v2114, %v2120
    %2123 = vrot.lane.b32.xlu0 %v2016, 64
    %v2124 = vpop.permute.xlu0 %2123
    %v2126 = vadd.f32 %v2118, %v2124
    %2127 = vrot.lane.b32.xlu0 %v2070, 64
    %v2128 = vpop.permute.xlu0 %2127
    %v2130 = vadd.f32 %v2122, %v2128
    %2131 = vrot.lane.b32.xlu0 %v2016, 48
    %v2132 = vpop.permute.xlu0 %2131
    %v2134 = vadd.f32 %v2126, %v2132
    %2135 = vrot.lane.b32.xlu0 %v2070, 48
    %v2136 = vpop.permute.xlu0 %2135
    %v2138 = vadd.f32 %v2130, %v2136
    %2139 = vrot.lane.b32.xlu0 %v2016, 32
    %v2140 = vpop.permute.xlu0 %2139
    %v2142 = vadd.f32 %v2134, %v2140
    %2143 = vrot.lane.b32.xlu0 %v2070, 32
    %v2144 = vpop.permute.xlu0 %2143
    %v2146 = vadd.f32 %v2138, %v2144
    %2147 = vrot.lane.b32.xlu0 %v2016, 16
    %v2148 = vpop.permute.xlu0 %2147
    %v2150 = vadd.f32 %v2142, %v2148
    %2151 = vrot.lane.b32.xlu0 %v2070, 16
    %v2152 = vpop.permute.xlu0 %2151
    %v2154 = vadd.f32 %v2146, %v2152
    %v2155 = vadd.f32 %v2150, %v2027
    %v2156 = vadd.f32 %v2154, %v2081
    %2158 = vrot.lane.b32.xlu0 %v2027, 112
    %v2159 = vpop.permute.xlu0 %2158
    %v2161 = vadd.f32 %v2155, %v2159
    %2163 = vrot.lane.b32.xlu0 %v2081, 112
    %v2164 = vpop.permute.xlu0 %2163
    %v2166 = vadd.f32 %v2156, %v2164
    %2167 = vrot.lane.b32.xlu0 %v2027, 96
    %v2168 = vpop.permute.xlu0 %2167
    %v2170 = vadd.f32 %v2161, %v2168
    %2171 = vrot.lane.b32.xlu0 %v2081, 96
    %v2172 = vpop.permute.xlu0 %2171
    %v2174 = vadd.f32 %v2166, %v2172
    %2175 = vrot.lane.b32.xlu0 %v2027, 80
    %v2176 = vpop.permute.xlu0 %2175
    %v2178 = vadd.f32 %v2170, %v2176
    %2179 = vrot.lane.b32.xlu0 %v2081, 80
    %v2180 = vpop.permute.xlu0 %2179
    %v2182 = vadd.f32 %v2174, %v2180
    %2183 = vrot.lane.b32.xlu0 %v2027, 64
    %v2184 = vpop.permute.xlu0 %2183
    %v2186 = vadd.f32 %v2178, %v2184
    %2187 = vrot.lane.b32.xlu0 %v2081, 64
    %v2188 = vpop.permute.xlu0 %2187
    %v2190 = vadd.f32 %v2182, %v2188
    %2191 = vrot.lane.b32.xlu0 %v2027, 48
    %v2192 = vpop.permute.xlu0 %2191
    %v2194 = vadd.f32 %v2186, %v2192
    %2195 = vrot.lane.b32.xlu0 %v2081, 48
    %v2196 = vpop.permute.xlu0 %2195
    %v2198 = vadd.f32 %v2190, %v2196
    %2199 = vrot.lane.b32.xlu0 %v2027, 32
    %v2200 = vpop.permute.xlu0 %2199
    %v2202 = vadd.f32 %v2194, %v2200
    %2203 = vrot.lane.b32.xlu0 %v2081, 32
    %v2204 = vpop.permute.xlu0 %2203
    %v2206 = vadd.f32 %v2198, %v2204
    %2207 = vrot.lane.b32.xlu0 %v2027, 16
    %v2208 = vpop.permute.xlu0 %2207
    %v2210 = vadd.f32 %v2202, %v2208
    %2211 = vrot.lane.b32.xlu0 %v2081, 16
    %v2212 = vpop.permute.xlu0 %2211
    %v2214 = vadd.f32 %v2206, %v2212
    %v2215 = vadd.f32 %v2210, %v2044
    %v2216 = vadd.f32 %v2214, %v2096
    %2218 = vrot.lane.b32.xlu0 %v2044, 112
    %v2219 = vpop.permute.xlu0 %2218
    %v2221 = vadd.f32 %v2215, %v2219
    %2223 = vrot.lane.b32.xlu0 %v2096, 112
    %v2224 = vpop.permute.xlu0 %2223
    %v2226 = vadd.f32 %v2216, %v2224
    %v2227 = vmul.f32 %v2221, 0.0015432099
    %v2228 = vmul.f32 %v2226, 0.0015432099
    %v2229 = vmul.f32 %v2227, %v2227
    %v2230 = vsub.f32 %v2228, %v2229
    %v2231 = vld [vmem:[%s3] sm:$0x1]
    %v2232 = vadd.f32 %v2230, 1e-05
    %v2233 = vrsqrt.pop %v2232
    %v2234 = vmul.f32 %v2231, %v2233
    %v2235 = vld [vmem:[%s4] sm:$0x1]
    %v2236 = vmul.f32 %v2227, %v2234
    %v2237 = vsub.f32 %v2235, %v2236
    %v2239 = vlaneseq
    %v2240 = vshrl.u32 %v2239, 7
    %v2241 = vsub.s32 0, %v2240
    %v2242 = vrot.slane %v2234, %v2241
    %2243 = vrot.lane.b32.xlu0 %v2242, 16
    %v2244 = vpop.permute.xlu0 %2243
    %vm2246 = vcmask 130048
    %v2247 = vsel %vm2246, %v2234, %v2244
    %2249 = vrot.lane.b32.xlu0 %v2247, 32
    %v2250 = vpop.permute.xlu0 %2249
    %v2252 = vsel %vm2028, %v2247, %v2250
    %2254 = vrot.lane.b32.xlu0 %v2252, 64
    %v2255 = vpop.permute.xlu0 %2254
    %vm2257 = vcmask 523264
    %v2258 = vsel %vm2257, %v2252, %v2255
    %2260 = vrot.lane.b32.xlu0 %v2258, 32
    %v2261 = vpop.permute.xlu0 %2260
    %v2263 = vsel %vm2028, %v2247, %v2261
    %v2265 = vlaneseq
    %v2266 = vshrl.u32 %v2265, 7
    %v2267 = vsub.s32 0, %v2266
    %v2268 = vrot.slane %v2237, %v2267
    %2269 = vrot.lane.b32.xlu0 %v2268, 16
    %v2270 = vpop.permute.xlu0 %2269
    %v2272 = vsel %vm2246, %v2237, %v2270
    %2274 = vrot.lane.b32.xlu0 %v2272, 32
    %v2275 = vpop.permute.xlu0 %2274
    %v2277 = vsel %vm2028, %v2272, %v2275
    %2279 = vrot.lane.b32.xlu0 %v2277, 64
    %v2280 = vpop.permute.xlu0 %2279
    %v2282 = vsel %vm2257, %v2277, %v2280
    %2284 = vrot.lane.b32.xlu0 %v2282, 32
    %v2285 = vpop.permute.xlu0 %2284
    %v2287 = vsel %vm2028, %v2272, %v2285
    %v2288 = vlaneseq
    %v2289 = vshrl.u32 %v2288, 7
    %v2290 = vsub.s32 0, %v2289
    %v2291 = vrot.slane %v2263, %v2290
    %v2292 = vlaneseq
    %v2293 = vshrl.u32 %v2292, 7
    %v2294 = vsub.s32 0, %v2293
    %v2295 = vrot.slane %v2261, %v2294
    %v2296 = vmul.f32 %v1991, %v2291
    %v2297 = vmul.f32 %v1992, %v2295
    %v2298 = vmul.f32 %v1993, %v2295
    %v2299 = vmul.f32 %v1994, %v2291
    %v2300 = vmul.f32 %v1995, %v2295
    %v2301 = vmul.f32 %v1996, %v2295
    %v2302 = vmul.f32 %v1997, %v2291
    %v2303 = vmul.f32 %v1998, %v2295
    %v2304 = vmul.f32 %v1999, %v2295
    %v2305 = vmul.f32 %v2000, %v2291
    %v2306 = vmul.f32 %v2001, %v2295
    %v2307 = vmul.f32 %v2002, %v2295
    %v2308 = vmul.f32 %v2003, %v2291
    %v2309 = vmul.f32 %v2004, %v2295
    %v2310 = vmul.f32 %v2005, %v2295
    %v2311 = vlaneseq
    %v2312 = vshrl.u32 %v2311, 7
    %v2313 = vsub.s32 0, %v2312
    %v2314 = vrot.slane %v2287, %v2313
    %v2315 = vlaneseq
    %v2316 = vshrl.u32 %v2315, 7
    %v2317 = vsub.s32 0, %v2316
    %v2318 = vrot.slane %v2285, %v2317
    %v2319 = vadd.f32 %v2296, %v2314
    %v2320 = vadd.f32 %v2297, %v2318
    %v2321 = vadd.f32 %v2298, %v2318
    %v2322 = vadd.f32 %v2299, %v2314
    %v2323 = vadd.f32 %v2300, %v2318
    %v2324 = vadd.f32 %v2301, %v2318
    %v2325 = vadd.f32 %v2302, %v2314
    %v2326 = vadd.f32 %v2303, %v2318
    %v2327 = vadd.f32 %v2304, %v2318
    %v2328 = vadd.f32 %v2305, %v2314
    %v2329 = vadd.f32 %v2306, %v2318
    %v2330 = vadd.f32 %v2307, %v2318
    %v2331 = vadd.f32 %v2308, %v2314
    %v2332 = vadd.f32 %v2309, %v2318
    %v2333 = vadd.f32 %v2310, %v2318
    %v2334 = vpack.c.bf16 %v2322, %v2319
    %v2335 = vpack.c.bf16 %v2323, %v2320
    %v2336 = vpack.c.bf16 %v2324, %v2321
    %v2337 = vpack.c.bf16 %v2328, %v2325
    %v2338 = vpack.c.bf16 %v2329, %v2326
    %v2339 = vpack.c.bf16 %v2330, %v2327
    %v2340 = vpack.c.bf16 %v2331, %v2331
    %v2341 = vpack.c.bf16 %v2332, %v2332
    %v2342 = vpack.c.bf16 %v2333, %v2333
    %v2343 = vld [vmem:[%s5] sm:$0xf]
    %v2344 = vld [vmem:[%s5 + $0x4] sm:$0x7]
    %v2347 = vunpack.c.l.b16 %v2343
    %v2348 = vunpack.c.l.b16 %v2344
    %v2349 = vpack.c.b16 %v2348, %v2347
    %vm2350 = vcmask 293888
    %v2352 = vsel %vm2350, %v2349, 0
    %vm2354 = vcmask 1041408
    %v2356 = vsel %vm2354, %v2340, 0
    %v2359 = vsel %vm2354, %v2341, 0
    %v2362 = vsel %vm2354, %v2342, 0
    %2364 = vmatprep.subr.bf16.mxu0 %v2335
    %2365 = vmatpush1.bf16.msra.mxu0 %v2334
    %2366 = vmatprep.subr.bf16.mxu0 %v2338
    %2367 = vmatpush1.bf16.msra.mxu0 %v2337
    %2368 = vmatprep.subr.bf16.mxu0 %v2359
    %2369 = vmatpush1.bf16.msra.mxu0 %v2356
    %2370 = vmatprep.subr.bf16.mxu0 0
    %2371 = vmatpush1.bf16.msra.mxu0 0
    %2372 = vmatprep.subr.bf16.mxu0 0
    %2373 = vmatpush1.bf16.msra.mxu0 0
    %2374 = vmatprep.subr.bf16.mxu0 0
    %2375 = vmatpush1.bf16.msra.mxu0 0
    %2376 = vmatprep.subr.bf16.mxu0 0
    %2377 = vmatpush1.bf16.msra.mxu0 0
    %2378 = vmatprep.subr.bf16.mxu0 0
    %2379 = vmatpush1.bf16.msra.mxu0 0
    %2380 = vmatprep.subr.bf16.mxu0 0
    %2381 = vmatpush1.bf16.msra.mxu0 0
    %2382 = vmatprep.subr.bf16.mxu0 0
    %2383 = vmatpush1.bf16.msra.mxu0 0
    %2384 = vmatprep.subr.bf16.mxu0 0
    %2385 = vmatpush1.bf16.msra.mxu0 0
    %2386 = vmatprep.subr.bf16.mxu0 0
    %2387 = vmatpush1.bf16.msra.mxu0 0
    %2388 = vmatprep.subr.bf16.mxu0 0
    %2389 = vmatpush1.bf16.msra.mxu0 0
    %2390 = vmatprep.subr.bf16.mxu0 0
    %2391 = vmatpush1.bf16.msra.mxu0 0
    %2392 = vmatprep.subr.bf16.mxu0 0
    %2393 = vmatpush1.bf16.msra.mxu0 0
    %2394 = vmatprep.subr.bf16.mxu0 0
    %2395 = vmatpush1.bf16.msra.mxu0 0
    %2396 = vmatprep.mubr.bf16.mxu0 0
    %2397 = vmatmul.mubr.bf16.gmra.mrb[0].mxu0 %v2352
    %v2398 = vpop.f32.mrb[0].mxu0
    %v2399 = vadd.f32 0.0, %v2398
    %v2400 = vpop.f32.mrb[0].mxu0
    %v2401 = vadd.f32 0.0, %v2400
    %v2402 = vpop.f32.mrb[0].mxu0
    %v2403 = vadd.f32 0.0, %v2402
    %v2404 = vpop.f32.mrb[0].mxu0
    %v2405 = vadd.f32 0.0, %v2404
    %2406 = vdwg.mxu0
    %2407 = vmatprep.subr.bf16.mxu0 0
    %2408 = vmatpush1.bf16.msra.mxu0 %v2336
    %2409 = vmatprep.subr.bf16.mxu0 0
    %2410 = vmatpush1.bf16.msra.mxu0 %v2339
    %2411 = vmatprep.subr.bf16.mxu0 0
    %2412 = vmatpush1.bf16.msra.mxu0 %v2362
    %2413 = vmatprep.subr.bf16.mxu0 0
    %2414 = vmatpush1.bf16.msra.mxu0 0
    %2415 = vmatprep.subr.bf16.mxu0 0
    %2416 = vmatpush1.bf16.msra.mxu0 0
    %2417 = vmatprep.subr.bf16.mxu0 0
    %2418 = vmatpush1.bf16.msra.mxu0 0
    %2419 = vmatprep.subr.bf16.mxu0 0
    %2420 = vmatpush1.bf16.msra.mxu0 0
    %2421 = vmatprep.subr.bf16.mxu0 0
    %2422 = vmatpush1.bf16.msra.mxu0 0
    %2423 = vmatprep.subr.bf16.mxu0 0
    %2424 = vmatpush1.bf16.msra.mxu0 0
    %2425 = vmatprep.subr.bf16.mxu0 0
    %2426 = vmatpush1.bf16.msra.mxu0 0
    %2427 = vmatprep.subr.bf16.mxu0 0
    %2428 = vmatpush1.bf16.msra.mxu0 0
    %2429 = vmatprep.subr.bf16.mxu0 0
    %2430 = vmatpush1.bf16.msra.mxu0 0
    %2431 = vmatprep.subr.bf16.mxu0 0
    %2432 = vmatpush1.bf16.msra.mxu0 0
    %2433 = vmatprep.subr.bf16.mxu0 0
    %2434 = vmatpush1.bf16.msra.mxu0 0
    %2435 = vmatprep.subr.bf16.mxu0 0
    %2436 = vmatpush1.bf16.msra.mxu0 0
    %2437 = vmatprep.subr.bf16.mxu0 0
    %2438 = vmatpush1.bf16.msra.mxu0 0
    %2439 = vmatprep.mubr.bf16.mxu0 0
    %2440 = vmatmul.mubr.bf16.gmra.mrb[0].mxu0 %v2352
    %v2441 = vpop.f32.mrb[0].mxu0
    %v2442 = vadd.f32 0.0, %v2441
    %v2443 = vpop.f32.mrb[0].mxu0
    %v2444 = vpop.f32.mrb[0].mxu0
    %v2445 = vadd.f32 0.0, %v2444
    %v2446 = vpop.f32.mrb[0].mxu0
    %2447 = vdwg.mxu0
    %v2448 = vpack.c.bf16 %v2403, %v2399
    %v2449 = vpack.c.bf16 %v2405, %v2401
    %v2450 = vpack.c.bf16 %v2445, %v2442
    %v2451 = vld [vmem:[%s6] sm:$0xff]
    %v2452 = vld [vmem:[%s6 + $0x8] sm:$0xff]
    %v2453 = vld [vmem:[%s6 + $0x10] sm:$0xff]
    %v2454 = vld [vmem:[%s6 + $0x18] sm:$0xff]
    %v2455 = vld [vmem:[%s6 + $0x20] sm:$0xff]
    %v2456 = vld [vmem:[%s6 + $0x28] sm:$0xff]
    %v2457 = vld [vmem:[%s6 + $0x30] sm:$0xff]
    %v2458 = vld [vmem:[%s6 + $0x38] sm:$0xff]
    %v2459 = vld [vmem:[%s6 + $0x40] sm:$0xff]
    %v2460 = vld [vmem:[%s6 + $0x48] sm:$0xff]
    %v2461 = vld [vmem:[%s6 + $0x50] sm:$0xff]
    %v2462 = vld [vmem:[%s6 + $0x58] sm:$0xff]
    %v2463 = vld [vmem:[%s6 + $0x60] sm:$0xff]
    %v2464 = vld [vmem:[%s6 + $0x68] sm:$0xff]
    %v2465 = vld [vmem:[%s6 + $0x70] sm:$0xff]
    %v2466 = vld [vmem:[%s6 + $0x78] sm:$0xff]
    %v2467 = vld [vmem:[%s6 + $0x80] sm:$0xff]
    %v2468 = vld [vmem:[%s6 + $0x88] sm:$0xff]
    %v2469 = vld [vmem:[%s6 + $0x90] sm:$0xff]
    %v2470 = vld [vmem:[%s6 + $0x98] sm:$0xff]
    %v2471 = vld [vmem:[%s6 + $0xa0] sm:$0xff]
    %v2472 = vld [vmem:[%s6 + $0xa8] sm:$0xff]
    %v2473 = vld [vmem:[%s6 + $0xb0] sm:$0xff]
    %v2474 = vld [vmem:[%s6 + $0xb8] sm:$0xff]
    %v2475 = vld [vmem:[%s6 + $0xc0] sm:$0xff]
    %v2476 = vld [vmem:[%s6 + $0xc8] sm:$0xff]
    %v2477 = vld [vmem:[%s6 + $0xd0] sm:$0xff]
    %v2478 = vld [vmem:[%s6 + $0xd8] sm:$0xff]
    %v2479 = vld [vmem:[%s6 + $0xe0] sm:$0xff]
    %v2480 = vld [vmem:[%s6 + $0xe8] sm:$0xff]
    %v2481 = vld [vmem:[%s6 + $0xf0] sm:$0xff]
    %v2482 = vld [vmem:[%s6 + $0xf8] sm:$0xff]
    %v2483 = vld [vmem:[%s6 + $0x100] sm:$0xff]
    %v2484 = vld [vmem:[%s6 + $0x108] sm:$0xff]
    %v2485 = vld [vmem:[%s6 + $0x110] sm:$0xff]
    %v2486 = vld [vmem:[%s6 + $0x118] sm:$0xff]
    %s2487 = scalar_lea.vmem %s5, 8
    %v2488 = vld [vmem:[%s2487] sm:$0xf]
    %v2489 = vld [vmem:[%s2487 + $0x4] sm:$0x7]
    %v2492 = vunpack.c.l.b16 %v2488
    %v2493 = vunpack.c.l.b16 %v2489
    %v2494 = vpack.c.b16 %v2493, %v2492
    %v2496 = vsel %vm2350, %v2494, 0
    %2498 = vmatprep.subr.bf16.mxu0 %v2335
    %2499 = vmatpush1.bf16.msra.mxu0 %v2334
    %2500 = vmatprep.subr.bf16.mxu0 %v2338
    %2501 = vmatpush1.bf16.msra.mxu0 %v2337
    %2502 = vmatprep.subr.bf16.mxu0 %v2359
    %2503 = vmatpush1.bf16.msra.mxu0 %v2356
    %2504 = vmatprep.subr.bf16.mxu0 0
    %2505 = vmatpush1.bf16.msra.mxu0 0
    %2506 = vmatprep.subr.bf16.mxu0 0
    %2507 = vmatpush1.bf16.msra.mxu0 0
    %2508 = vmatprep.subr.bf16.mxu0 0
    %2509 = vmatpush1.bf16.msra.mxu0 0
    %2510 = vmatprep.subr.bf16.mxu0 0
    %2511 = vmatpush1.bf16.msra.mxu0 0
    %2512 = vmatprep.subr.bf16.mxu0 0
    %2513 = vmatpush1.bf16.msra.mxu0 0
    %2514 = vmatprep.subr.bf16.mxu0 0
    %2515 = vmatpush1.bf16.msra.mxu0 0
    %2516 = vmatprep.subr.bf16.mxu0 0
    %2517 = vmatpush1.bf16.msra.mxu0 0
    %2518 = vmatprep.subr.bf16.mxu0 0
    %2519 = vmatpush1.bf16.msra.mxu0 0
    %2520 = vmatprep.subr.bf16.mxu0 0
    %2521 = vmatpush1.bf16.msra.mxu0 0
    %2522 = vmatprep.subr.bf16.mxu0 0
    %2523 = vmatpush1.bf16.msra.mxu0 0
    %2524 = vmatprep.subr.bf16.mxu0 0
    %2525 = vmatpush1.bf16.msra.mxu0 0
    %2526 = vmatprep.subr.bf16.mxu0 0
    %2527 = vmatpush1.bf16.msra.mxu0 0
    %2528 = vmatprep.subr.bf16.mxu0 0
    %2529 = vmatpush1.bf16.msra.mxu0 0
    %2530 = vmatprep.mubr.bf16.mxu0 0
    %2531 = vmatmul.mubr.bf16.gmra.mrb[0].mxu0 %v2496
    %v2532 = vpop.f32.mrb[0].mxu0
    %v2533 = vadd.f32 0.0, %v2532
    %v2534 = vpop.f32.mrb[0].mxu0
    %v2535 = vadd.f32 0.0, %v2534
    %v2536 = vpop.f32.mrb[0].mxu0
    %v2537 = vadd.f32 0.0, %v2536
    %v2538 = vpop.f32.mrb[0].mxu0
    %v2539 = vadd.f32 0.0, %v2538
    %2540 = vdwg.mxu0
    %2541 = vmatprep.subr.bf16.mxu0 0
    %2542 = vmatpush1.bf16.msra.mxu0 %v2336
    %2543 = vmatprep.subr.bf16.mxu0 0
    %2544 = vmatpush1.bf16.msra.mxu0 %v2339
    %2545 = vmatprep.subr.bf16.mxu0 0
    %2546 = vmatpush1.bf16.msra.mxu0 %v2362
    %2547 = vmatprep.subr.bf16.mxu0 0
    %2548 = vmatpush1.bf16.msra.mxu0 0
    %2549 = vmatprep.subr.bf16.mxu0 0
    %2550 = vmatpush1.bf16.msra.mxu0 0
    %2551 = vmatprep.subr.bf16.mxu0 0
    %2552 = vmatpush1.bf16.msra.mxu0 0
    %2553 = vmatprep.subr.bf16.mxu0 0
    %2554 = vmatpush1.bf16.msra.mxu0 0
    %2555 = vmatprep.subr.bf16.mxu0 0
    %2556 = vmatpush1.bf16.msra.mxu0 0
    %2557 = vmatprep.subr.bf16.mxu0 0
    %2558 = vmatpush1.bf16.msra.mxu0 0
    %2559 = vmatprep.subr.bf16.mxu0 0
    %2560 = vmatpush1.bf16.msra.mxu0 0
    %2561 = vmatprep.subr.bf16.mxu0 0
    %2562 = vmatpush1.bf16.msra.mxu0 0
    %2563 = vmatprep.subr.bf16.mxu0 0
    %2564 = vmatpush1.bf16.msra.mxu0 0
    %2565 = vmatprep.subr.bf16.mxu0 0
    %2566 = vmatpush1.bf16.msra.mxu0 0
    %2567 = vmatprep.subr.bf16.mxu0 0
    %2568 = vmatpush1.bf16.msra.mxu0 0
    %2569 = vmatprep.subr.bf16.mxu0 0
    %2570 = vmatpush1.bf16.msra.mxu0 0
    %2571 = vmatprep.subr.bf16.mxu0 0
    %2572 = vmatpush1.bf16.msra.mxu0 0
    %2573 = vmatprep.mubr.bf16.mxu0 0
    %2574 = vmatmul.mubr.bf16.gmra.mrb[0].mxu0 %v2496
    %v2575 = vpop.f32.mrb[0].mxu0
    %v2576 = vadd.f32 0.0, %v2575
    %v2577 = vpop.f32.mrb[0].mxu0
    %v2578 = vpop.f32.mrb[0].mxu0
    %v2579 = vadd.f32 0.0, %v2578
    %v2580 = vpop.f32.mrb[0].mxu0
    %2581 = vdwg.mxu0
    %v2582 = vpack.c.bf16 %v2537, %v2533
    %v2583 = vpack.c.bf16 %v2539, %v2535
    %v2584 = vpack.c.bf16 %v2579, %v2576
    %s2585 = scalar_lea.vmem %s6, 288
    %v2586 = vld [vmem:[%s2585] sm:$0xff]
    %v2587 = vld [vmem:[%s2585 + $0x8] sm:$0xff]
    %v2588 = vld [vmem:[%s2585 + $0x10] sm:$0xff]
    %v2589 = vld [vmem:[%s2585 + $0x18] sm:$0xff]
    %v2590 = vld [vmem:[%s2585 + $0x20] sm:$0xff]
    %v2591 = vld [vmem:[%s2585 + $0x28] sm:$0xff]
    %v2592 = vld [vmem:[%s2585 + $0x30] sm:$0xff]
    %v2593 = vld [vmem:[%s2585 + $0x38] sm:$0xff]
    %v2594 = vld [vmem:[%s2585 + $0x40] sm:$0xff]
    %v2595 = vld [vmem:[%s2585 + $0x48] sm:$0xff]
    %v2596 = vld [vmem:[%s2585 + $0x50] sm:$0xff]
    %v2597 = vld [vmem:[%s2585 + $0x58] sm:$0xff]
    %v2598 = vld [vmem:[%s2585 + $0x60] sm:$0xff]
    %v2599 = vld [vmem:[%s2585 + $0x68] sm:$0xff]
    %v2600 = vld [vmem:[%s2585 + $0x70] sm:$0xff]
    %v2601 = vld [vmem:[%s2585 + $0x78] sm:$0xff]
    %v2602 = vld [vmem:[%s2585 + $0x80] sm:$0xff]
    %v2603 = vld [vmem:[%s2585 + $0x88] sm:$0xff]
    %v2604 = vld [vmem:[%s2585 + $0x90] sm:$0xff]
    %v2605 = vld [vmem:[%s2585 + $0x98] sm:$0xff]
    %v2606 = vld [vmem:[%s2585 + $0xa0] sm:$0xff]
    %v2607 = vld [vmem:[%s2585 + $0xa8] sm:$0xff]
    %v2608 = vld [vmem:[%s2585 + $0xb0] sm:$0xff]
    %v2609 = vld [vmem:[%s2585 + $0xb8] sm:$0xff]
    %v2610 = vld [vmem:[%s2585 + $0xc0] sm:$0xff]
    %v2611 = vld [vmem:[%s2585 + $0xc8] sm:$0xff]
    %v2612 = vld [vmem:[%s2585 + $0xd0] sm:$0xff]
    %v2613 = vld [vmem:[%s2585 + $0xd8] sm:$0xff]
    %v2614 = vld [vmem:[%s2585 + $0xe0] sm:$0xff]
    %v2615 = vld [vmem:[%s2585 + $0xe8] sm:$0xff]
    %v2616 = vld [vmem:[%s2585 + $0xf0] sm:$0xff]
    %v2617 = vld [vmem:[%s2585 + $0xf8] sm:$0xff]
    %v2618 = vld [vmem:[%s2585 + $0x100] sm:$0xff]
    %v2619 = vld [vmem:[%s2585 + $0x108] sm:$0xff]
    %v2620 = vld [vmem:[%s2585 + $0x110] sm:$0xff]
    %v2621 = vld [vmem:[%s2585 + $0x118] sm:$0xff]
    %v2658 = vunpack.c.l.b16 %v2586
    %v2659 = vunpack.c.h.b16 %v2586
    %v2660 = vunpack.c.l.b16 %v2587
    %v2661 = vunpack.c.h.b16 %v2587
    %v2662 = vunpack.c.l.b16 %v2588
    %v2663 = vunpack.c.h.b16 %v2588
    %v2664 = vunpack.c.l.b16 %v2589
    %v2665 = vunpack.c.h.b16 %v2589
    %v2666 = vunpack.c.l.b16 %v2590
    %v2667 = vunpack.c.h.b16 %v2590
    %v2668 = vunpack.c.l.b16 %v2591
    %v2669 = vunpack.c.h.b16 %v2591
    %v2670 = vunpack.c.l.b16 %v2592
    %v2671 = vunpack.c.h.b16 %v2592
    %v2672 = vunpack.c.l.b16 %v2593
    %v2673 = vunpack.c.h.b16 %v2593
    %v2674 = vunpack.c.l.b16 %v2594
    %v2675 = vunpack.c.h.b16 %v2594
    %v2676 = vunpack.c.l.b16 %v2595
    %v2677 = vunpack.c.h.b16 %v2595
    %v2678 = vunpack.c.l.b16 %v2596
    %v2679 = vunpack.c.h.b16 %v2596
    %v2680 = vunpack.c.l.b16 %v2597
    %v2681 = vunpack.c.h.b16 %v2597
    %v2682 = vunpack.c.l.b16 %v2598
    %v2683 = vunpack.c.h.b16 %v2598
    %v2684 = vunpack.c.l.b16 %v2599
    %v2685 = vunpack.c.h.b16 %v2599
    %v2686 = vunpack.c.l.b16 %v2600
    %v2687 = vunpack.c.h.b16 %v2600
    %v2688 = vunpack.c.l.b16 %v2601
    %v2689 = vunpack.c.h.b16 %v2601
    %v2690 = vunpack.c.l.b16 %v2602
    %v2691 = vunpack.c.h.b16 %v2602
    %v2692 = vunpack.c.l.b16 %v2603
    %v2693 = vunpack.c.h.b16 %v2603
    %v2694 = vunpack.c.l.b16 %v2604
    %v2695 = vunpack.c.h.b16 %v2604
    %v2696 = vunpack.c.l.b16 %v2605
    %v2697 = vunpack.c.h.b16 %v2605
    %v2698 = vunpack.c.l.b16 %v2606
    %v2699 = vunpack.c.h.b16 %v2606
    %v2700 = vunpack.c.l.b16 %v2607
    %v2701 = vunpack.c.h.b16 %v2607
    %v2702 = vunpack.c.l.b16 %v2608
    %v2703 = vunpack.c.h.b16 %v2608
    %v2704 = vunpack.c.l.b16 %v2609
    %v2705 = vunpack.c.h.b16 %v2609
    %v2706 = vunpack.c.l.b16 %v2610
    %v2707 = vunpack.c.h.b16 %v2610
    %v2708 = vunpack.c.l.b16 %v2611
    %v2709 = vunpack.c.h.b16 %v2611
    %v2710 = vunpack.c.l.b16 %v2612
    %v2711 = vunpack.c.h.b16 %v2612
    %v2712 = vunpack.c.l.b16 %v2613
    %v2713 = vunpack.c.h.b16 %v2613
    %v2714 = vunpack.c.l.b16 %v2614
    %v2715 = vunpack.c.h.b16 %v2614
    %v2716 = vunpack.c.l.b16 %v2615
    %v2717 = vunpack.c.h.b16 %v2615
    %v2718 = vunpack.c.l.b16 %v2616
    %v2719 = vunpack.c.h.b16 %v2616
    %v2720 = vunpack.c.l.b16 %v2617
    %v2721 = vunpack.c.h.b16 %v2617
    %v2722 = vunpack.c.l.b16 %v2618
    %v2723 = vunpack.c.h.b16 %v2618
    %v2724 = vunpack.c.l.b16 %v2619
    %v2725 = vunpack.c.h.b16 %v2619
    %v2726 = vunpack.c.l.b16 %v2620
    %v2727 = vunpack.c.h.b16 %v2620
    %v2728 = vunpack.c.l.b16 %v2621
    %v2729 = vunpack.c.h.b16 %v2621
    %v2730 = vpack.c.b16 %v2660, %v2658
    %v2731 = vpack.c.b16 %v2661, %v2659
    %v2732 = vpack.c.b16 %v2664, %v2662
    %v2733 = vpack.c.b16 %v2665, %v2663
    %v2734 = vpack.c.b16 %v2668, %v2666
    %v2735 = vpack.c.b16 %v2669, %v2667
    %v2736 = vpack.c.b16 %v2672, %v2670
    %v2737 = vpack.c.b16 %v2673, %v2671
    %v2738 = vpack.c.b16 %v2676, %v2674
    %v2739 = vpack.c.b16 %v2677, %v2675
    %v2740 = vpack.c.b16 %v2680, %v2678
    %v2741 = vpack.c.b16 %v2681, %v2679
    %v2742 = vpack.c.b16 %v2684, %v2682
    %v2743 = vpack.c.b16 %v2685, %v2683
    %v2744 = vpack.c.b16 %v2688, %v2686
    %v2745 = vpack.c.b16 %v2689, %v2687
    %v2746 = vpack.c.b16 %v2692, %v2690
    %v2747 = vpack.c.b16 %v2693, %v2691
    %v2748 = vpack.c.b16 %v2696, %v2694
    %v2749 = vpack.c.b16 %v2697, %v2695
    %v2750 = vpack.c.b16 %v2700, %v2698
    %v2751 = vpack.c.b16 %v2701, %v2699
    %v2752 = vpack.c.b16 %v2704, %v2702
    %v2753 = vpack.c.b16 %v2705, %v2703
    %v2754 = vpack.c.b16 %v2708, %v2706
    %v2755 = vpack.c.b16 %v2709, %v2707
    %v2756 = vpack.c.b16 %v2712, %v2710
    %v2757 = vpack.c.b16 %v2713, %v2711
    %v2758 = vpack.c.b16 %v2716, %v2714
    %v2759 = vpack.c.b16 %v2717, %v2715
    %v2760 = vpack.c.b16 %v2720, %v2718
    %v2761 = vpack.c.b16 %v2721, %v2719
    %v2762 = vpack.c.b16 %v2724, %v2722
    %v2763 = vpack.c.b16 %v2725, %v2723
    %v2764 = vpack.c.b16 %v2728, %v2726
    %v2765 = vpack.c.b16 %v2729, %v2727
    %v2803 = vsel %vm2028, %v2584, 0
    %2805 = vmatprep.subr.bf16.mxu0 %v2731
    %2806 = vmatpush1.bf16.msra.mxu0 %v2730
    %2807 = vmatprep.subr.bf16.mxu0 %v2733
    %2808 = vmatpush1.bf16.msra.mxu0 %v2732
    %2809 = vmatprep.subr.bf16.mxu0 %v2735
    %2810 = vmatpush1.bf16.msra.mxu0 %v2734
    %2811 = vmatprep.subr.bf16.mxu0 %v2737
    %2812 = vmatpush1.bf16.msra.mxu0 %v2736
    %2813 = vmatprep.subr.bf16.mxu0 %v2739
    %2814 = vmatpush1.bf16.msra.mxu0 %v2738
    %2815 = vmatprep.subr.bf16.mxu0 %v2741
    %2816 = vmatpush1.bf16.msra.mxu0 %v2740
    %2817 = vmatprep.subr.bf16.mxu0 %v2743
    %2818 = vmatpush1.bf16.msra.mxu0 %v2742
    %2819 = vmatprep.subr.bf16.mxu0 %v2745
    %2820 = vmatpush1.bf16.msra.mxu0 %v2744
    %2821 = vmatprep.subr.bf16.mxu0 %v2747
    %2822 = vmatpush1.bf16.msra.mxu0 %v2746
    %2823 = vmatprep.subr.bf16.mxu0 %v2749
    %2824 = vmatpush1.bf16.msra.mxu0 %v2748
    %2825 = vmatprep.subr.bf16.mxu0 %v2751
    %2826 = vmatpush1.bf16.msra.mxu0 %v2750
    %2827 = vmatprep.subr.bf16.mxu0 %v2753
    %2828 = vmatpush1.bf16.msra.mxu0 %v2752
    %2829 = vmatprep.subr.bf16.mxu0 %v2755
    %2830 = vmatpush1.bf16.msra.mxu0 %v2754
    %2831 = vmatprep.subr.bf16.mxu0 %v2757
    %2832 = vmatpush1.bf16.msra.mxu0 %v2756
    %2833 = vmatprep.subr.bf16.mxu0 %v2759
    %2834 = vmatpush1.bf16.msra.mxu0 %v2758
    %2835 = vmatprep.subr.bf16.mxu0 %v2761
    %2836 = vmatpush1.bf16.msra.mxu0 %v2760
    %2837 = vmatprep.mubr.bf16.mxu0 %v2583
    %2838 = vmatmul.mubr.bf16.gmra.mrb[0].mxu0 %v2582
    %v2839 = vpop.f32.mrb[0].mxu0
    %v2840 = vadd.f32 0.0, %v2839
    %v2841 = vpop.f32.mrb[0].mxu0
    %v2842 = vadd.f32 0.0, %v2841
    %v2843 = vpop.f32.mrb[0].mxu0
    %v2844 = vadd.f32 0.0, %v2843
    %v2845 = vpop.f32.mrb[0].mxu0
    %v2846 = vadd.f32 0.0, %v2845
    %2847 = vdwg.mxu0
    %2848 = vmatprep.subr.bf16.mxu0 %v2763
    %2849 = vmatpush1.bf16.msra.mxu0 %v2762
    %2850 = vmatprep.subr.bf16.mxu0 %v2765
    %2851 = vmatpush1.bf16.msra.mxu0 %v2764
    %2852 = vmatprep.subr.bf16.mxu0 0
    %2853 = vmatpush1.bf16.msra.mxu0 0
    %2854 = vmatprep.subr.bf16.mxu0 0
    %2855 = vmatpush1.bf16.msra.mxu0 0
    %2856 = vmatprep.subr.bf16.mxu0 0
    %2857 = vmatpush1.bf16.msra.mxu0 0
    %2858 = vmatprep.subr.bf16.mxu0 0
    %2859 = vmatpush1.bf16.msra.mxu0 0
    %2860 = vmatprep.subr.bf16.mxu0 0
    %2861 = vmatpush1.bf16.msra.mxu0 0
    %2862 = vmatprep.subr.bf16.mxu0 0
    %2863 = vmatpush1.bf16.msra.mxu0 0
    %2864 = vmatprep.subr.bf16.mxu0 0
    %2865 = vmatpush1.bf16.msra.mxu0 0
    %2866 = vmatprep.subr.bf16.mxu0 0
    %2867 = vmatpush1.bf16.msra.mxu0 0
    %2868 = vmatprep.subr.bf16.mxu0 0
    %2869 = vmatpush1.bf16.msra.mxu0 0
    %2870 = vmatprep.subr.bf16.mxu0 0
    %2871 = vmatpush1.bf16.msra.mxu0 0
    %2872 = vmatprep.subr.bf16.mxu0 0
    %2873 = vmatpush1.bf16.msra.mxu0 0
    %2874 = vmatprep.subr.bf16.mxu0 0
    %2875 = vmatpush1.bf16.msra.mxu0 0
    %2876 = vmatprep.subr.bf16.mxu0 0
    %2877 = vmatpush1.bf16.msra.mxu0 0
    %2878 = vmatprep.subr.bf16.mxu0 0
    %2879 = vmatpush1.bf16.msra.mxu0 0
    %2880 = vmatprep.mubr.bf16.mxu0 0
    %2881 = vmatmul.mubr.bf16.gmra.mrb[0].mxu0 %v2803
    %v2882 = vpop.f32.mrb[0].mxu0
    %v2883 = vadd.f32 %v2840, %v2882
    %v2884 = vpop.f32.mrb[0].mxu0
    %v2885 = vadd.f32 %v2842, %v2884
    %v2886 = vpop.f32.mrb[0].mxu0
    %v2887 = vadd.f32 %v2844, %v2886
    %v2888 = vpop.f32.mrb[0].mxu0
    %v2889 = vadd.f32 %v2846, %v2888
    %2890 = vdwg.mxu0
    %v2927 = vunpack.c.l.b16 %v2451
    %v2928 = vunpack.c.h.b16 %v2451
    %v2929 = vunpack.c.l.b16 %v2452
    %v2930 = vunpack.c.h.b16 %v2452
    %v2931 = vunpack.c.l.b16 %v2453
    %v2932 = vunpack.c.h.b16 %v2453
    %v2933 = vunpack.c.l.b16 %v2454
    %v2934 = vunpack.c.h.b16 %v2454
    %v2935 = vunpack.c.l.b16 %v2455
    %v2936 = vunpack.c.h.b16 %v2455
    %v2937 = vunpack.c.l.b16 %v2456
    %v2938 = vunpack.c.h.b16 %v2456
    %v2939 = vunpack.c.l.b16 %v2457
    %v2940 = vunpack.c.h.b16 %v2457
    %v2941 = vunpack.c.l.b16 %v2458
    %v2942 = vunpack.c.h.b16 %v2458
    %v2943 = vunpack.c.l.b16 %v2459
    %v2944 = vunpack.c.h.b16 %v2459
    %v2945 = vunpack.c.l.b16 %v2460
    %v2946 = vunpack.c.h.b16 %v2460
    %v2947 = vunpack.c.l.b16 %v2461
    %v2948 = vunpack.c.h.b16 %v2461
    %v2949 = vunpack.c.l.b16 %v2462
    %v2950 = vunpack.c.h.b16 %v2462
    %v2951 = vunpack.c.l.b16 %v2463
    %v2952 = vunpack.c.h.b16 %v2463
    %v2953 = vunpack.c.l.b16 %v2464
    %v2954 = vunpack.c.h.b16 %v2464
    %v2955 = vunpack.c.l.b16 %v2465
    %v2956 = vunpack.c.h.b16 %v2465
    %v2957 = vunpack.c.l.b16 %v2466
    %v2958 = vunpack.c.h.b16 %v2466
    %v2959 = vunpack.c.l.b16 %v2467
    %v2960 = vunpack.c.h.b16 %v2467
    %v2961 = vunpack.c.l.b16 %v2468
    %v2962 = vunpack.c.h.b16 %v2468
    %v2963 = vunpack.c.l.b16 %v2469
    %v2964 = vunpack.c.h.b16 %v2469
    %v2965 = vunpack.c.l.b16 %v2470
    %v2966 = vunpack.c.h.b16 %v2470
    %v2967 = vunpack.c.l.b16 %v2471
    %v2968 = vunpack.c.h.b16 %v2471
    %v2969 = vunpack.c.l.b16 %v2472
    %v2970 = vunpack.c.h.b16 %v2472
    %v2971 = vunpack.c.l.b16 %v2473
    %v2972 = vunpack.c.h.b16 %v2473
    %v2973 = vunpack.c.l.b16 %v2474
    %v2974 = vunpack.c.h.b16 %v2474
    %v2975 = vunpack.c.l.b16 %v2475
    %v2976 = vunpack.c.h.b16 %v2475
    %v2977 = vunpack.c.l.b16 %v2476
    %v2978 = vunpack.c.h.b16 %v2476
    %v2979 = vunpack.c.l.b16 %v2477
    %v2980 = vunpack.c.h.b16 %v2477
    %v2981 = vunpack.c.l.b16 %v2478
    %v2982 = vunpack.c.h.b16 %v2478
    %v2983 = vunpack.c.l.b16 %v2479
    %v2984 = vunpack.c.h.b16 %v2479
    %v2985 = vunpack.c.l.b16 %v2480
    %v2986 = vunpack.c.h.b16 %v2480
    %v2987 = vunpack.c.l.b16 %v2481
    %v2988 = vunpack.c.h.b16 %v2481
    %v2989 = vunpack.c.l.b16 %v2482
    %v2990 = vunpack.c.h.b16 %v2482
    %v2991 = vunpack.c.l.b16 %v2483
    %v2992 = vunpack.c.h.b16 %v2483
    %v2993 = vunpack.c.l.b16 %v2484
    %v2994 = vunpack.c.h.b16 %v2484
    %v2995 = vunpack.c.l.b16 %v2485
    %v2996 = vunpack.c.h.b16 %v2485
    %v2997 = vunpack.c.l.b16 %v2486
    %v2998 = vunpack.c.h.b16 %v2486
    %v2999 = vpack.c.b16 %v2929, %v2927
    %v3000 = vpack.c.b16 %v2930, %v2928
    %v3001 = vpack.c.b16 %v2933, %v2931
    %v3002 = vpack.c.b16 %v2934, %v2932
    %v3003 = vpack.c.b16 %v2937, %v2935
    %v3004 = vpack.c.b16 %v2938, %v2936
    %v3005 = vpack.c.b16 %v2941, %v2939
    %v3006 = vpack.c.b16 %v2942, %v2940
    %v3007 = vpack.c.b16 %v2945, %v2943
    %v3008 = vpack.c.b16 %v2946, %v2944
    %v3009 = vpack.c.b16 %v2949, %v2947
    %v3010 = vpack.c.b16 %v2950, %v2948
    %v3011 = vpack.c.b16 %v2953, %v2951
    %v3012 = vpack.c.b16 %v2954, %v2952
    %v3013 = vpack.c.b16 %v2957, %v2955
    %v3014 = vpack.c.b16 %v2958, %v2956
    %v3015 = vpack.c.b16 %v2961, %v2959
    %v3016 = vpack.c.b16 %v2962, %v2960
    %v3017 = vpack.c.b16 %v2965, %v2963
    %v3018 = vpack.c.b16 %v2966, %v2964
    %v3019 = vpack.c.b16 %v2969, %v2967
    %v3020 = vpack.c.b16 %v2970, %v2968
    %v3021 = vpack.c.b16 %v2973, %v2971
    %v3022 = vpack.c.b16 %v2974, %v2972
    %v3023 = vpack.c.b16 %v2977, %v2975
    %v3024 = vpack.c.b16 %v2978, %v2976
    %v3025 = vpack.c.b16 %v2981, %v2979
    %v3026 = vpack.c.b16 %v2982, %v2980
    %v3027 = vpack.c.b16 %v2985, %v2983
    %v3028 = vpack.c.b16 %v2986, %v2984
    %v3029 = vpack.c.b16 %v2989, %v2987
    %v3030 = vpack.c.b16 %v2990, %v2988
    %v3031 = vpack.c.b16 %v2993, %v2991
    %v3032 = vpack.c.b16 %v2994, %v2992
    %v3033 = vpack.c.b16 %v2997, %v2995
    %v3034 = vpack.c.b16 %v2998, %v2996
    %v3072 = vsel %vm2028, %v2450, 0
    %3074 = vmatprep.subr.bf16.mxu0 %v3000
    %3075 = vmatpush1.bf16.msra.mxu0 %v2999
    %3076 = vmatprep.subr.bf16.mxu0 %v3002
    %3077 = vmatpush1.bf16.msra.mxu0 %v3001
    %3078 = vmatprep.subr.bf16.mxu0 %v3004
    %3079 = vmatpush1.bf16.msra.mxu0 %v3003
    %3080 = vmatprep.subr.bf16.mxu0 %v3006
    %3081 = vmatpush1.bf16.msra.mxu0 %v3005
    %3082 = vmatprep.subr.bf16.mxu0 %v3008
    %3083 = vmatpush1.bf16.msra.mxu0 %v3007
    %3084 = vmatprep.subr.bf16.mxu0 %v3010
    %3085 = vmatpush1.bf16.msra.mxu0 %v3009
    %3086 = vmatprep.subr.bf16.mxu0 %v3012
    %3087 = vmatpush1.bf16.msra.mxu0 %v3011
    %3088 = vmatprep.subr.bf16.mxu0 %v3014
    %3089 = vmatpush1.bf16.msra.mxu0 %v3013
    %3090 = vmatprep.subr.bf16.mxu0 %v3016
    %3091 = vmatpush1.bf16.msra.mxu0 %v3015
    %3092 = vmatprep.subr.bf16.mxu0 %v3018
    %3093 = vmatpush1.bf16.msra.mxu0 %v3017
    %3094 = vmatprep.subr.bf16.mxu0 %v3020
    %3095 = vmatpush1.bf16.msra.mxu0 %v3019
    %3096 = vmatprep.subr.bf16.mxu0 %v3022
    %3097 = vmatpush1.bf16.msra.mxu0 %v3021
    %3098 = vmatprep.subr.bf16.mxu0 %v3024
    %3099 = vmatpush1.bf16.msra.mxu0 %v3023
    %3100 = vmatprep.subr.bf16.mxu0 %v3026
    %3101 = vmatpush1.bf16.msra.mxu0 %v3025
    %3102 = vmatprep.subr.bf16.mxu0 %v3028
    %3103 = vmatpush1.bf16.msra.mxu0 %v3027
    %3104 = vmatprep.subr.bf16.mxu0 %v3030
    %3105 = vmatpush1.bf16.msra.mxu0 %v3029
    %3106 = vmatprep.mubr.bf16.mxu0 %v2449
    %3107 = vmatmul.mubr.bf16.gmra.mrb[0].mxu0 %v2448
    %v3108 = vpop.f32.mrb[0].mxu0
    %v3109 = vadd.f32 %v2883, %v3108
    %v3110 = vpop.f32.mrb[0].mxu0
    %v3111 = vadd.f32 %v2885, %v3110
    %v3112 = vpop.f32.mrb[0].mxu0
    %v3113 = vadd.f32 %v2887, %v3112
    %v3114 = vpop.f32.mrb[0].mxu0
    %v3115 = vadd.f32 %v2889, %v3114
    %3116 = vdwg.mxu0
    %3117 = vmatprep.subr.bf16.mxu0 %v3032
    %3118 = vmatpush1.bf16.msra.mxu0 %v3031
    %3119 = vmatprep.subr.bf16.mxu0 %v3034
    %3120 = vmatpush1.bf16.msra.mxu0 %v3033
    %3121 = vmatprep.subr.bf16.mxu0 0
    %3122 = vmatpush1.bf16.msra.mxu0 0
    %3123 = vmatprep.subr.bf16.mxu0 0
    %3124 = vmatpush1.bf16.msra.mxu0 0
    %3125 = vmatprep.subr.bf16.mxu0 0
    %3126 = vmatpush1.bf16.msra.mxu0 0
    %3127 = vmatprep.subr.bf16.mxu0 0
    %3128 = vmatpush1.bf16.msra.mxu0 0
    %3129 = vmatprep.subr.bf16.mxu0 0
    %3130 = vmatpush1.bf16.msra.mxu0 0
    %3131 = vmatprep.subr.bf16.mxu0 0
    %3132 = vmatpush1.bf16.msra.mxu0 0
    %3133 = vmatprep.subr.bf16.mxu0 0
    %3134 = vmatpush1.bf16.msra.mxu0 0
    %3135 = vmatprep.subr.bf16.mxu0 0
    %3136 = vmatpush1.bf16.msra.mxu0 0
    %3137 = vmatprep.subr.bf16.mxu0 0
    %3138 = vmatpush1.bf16.msra.mxu0 0
    %3139 = vmatprep.subr.bf16.mxu0 0
    %3140 = vmatpush1.bf16.msra.mxu0 0
    %3141 = vmatprep.subr.bf16.mxu0 0
    %3142 = vmatpush1.bf16.msra.mxu0 0
    %3143 = vmatprep.subr.bf16.mxu0 0
    %3144 = vmatpush1.bf16.msra.mxu0 0
    %3145 = vmatprep.subr.bf16.mxu0 0
    %3146 = vmatpush1.bf16.msra.mxu0 0
    %3147 = vmatprep.subr.bf16.mxu0 0
    %3148 = vmatpush1.bf16.msra.mxu0 0
    %3149 = vmatprep.mubr.bf16.mxu0 0
    %3150 = vmatmul.mubr.bf16.gmra.mrb[0].mxu0 %v3072
    %v3151 = vpop.f32.mrb[0].mxu0
    %v3152 = vadd.f32 %v3109, %v3151
    %v3153 = vpop.f32.mrb[0].mxu0
    %v3154 = vadd.f32 %v3111, %v3153
    %v3155 = vpop.f32.mrb[0].mxu0
    %v3156 = vadd.f32 %v3113, %v3155
    %v3157 = vpop.f32.mrb[0].mxu0
    %v3158 = vadd.f32 %v3115, %v3157
    %3159 = vdwg.mxu0
    %s3160 = scalar_lea.vmem %s5, 16
    %v3161 = vld [vmem:[%s3160] sm:$0xf]
    %v3162 = vld [vmem:[%s3160 + $0x4] sm:$0x7]
    %v3165 = vunpack.c.l.b16 %v3161
    %v3166 = vunpack.c.l.b16 %v3162
    %v3167 = vpack.c.b16 %v3166, %v3165
    %v3169 = vsel %vm2350, %v3167, 0
    %3171 = vmatprep.subr.bf16.mxu0 %v2335
    %3172 = vmatpush1.bf16.msra.mxu0 %v2334
    %3173 = vmatprep.subr.bf16.mxu0 %v2338
    %3174 = vmatpush1.bf16.msra.mxu0 %v2337
    %3175 = vmatprep.subr.bf16.mxu0 %v2359
    %3176 = vmatpush1.bf16.msra.mxu0 %v2356
    %3177 = vmatprep.subr.bf16.mxu0 0
    %3178 = vmatpush1.bf16.msra.mxu0 0
    %3179 = vmatprep.subr.bf16.mxu0 0
    %3180 = vmatpush1.bf16.msra.mxu0 0
    %3181 = vmatprep.subr.bf16.mxu0 0
    %3182 = vmatpush1.bf16.msra.mxu0 0
    %3183 = vmatprep.subr.bf16.mxu0 0
    %3184 = vmatpush1.bf16.msra.mxu0 0
    %3185 = vmatprep.subr.bf16.mxu0 0
    %3186 = vmatpush1.bf16.msra.mxu0 0
    %3187 = vmatprep.subr.bf16.mxu0 0
    %3188 = vmatpush1.bf16.msra.mxu0 0
    %3189 = vmatprep.subr.bf16.mxu0 0
    %3190 = vmatpush1.bf16.msra.mxu0 0
    %3191 = vmatprep.subr.bf16.mxu0 0
    %3192 = vmatpush1.bf16.msra.mxu0 0
    %3193 = vmatprep.subr.bf16.mxu0 0
    %3194 = vmatpush1.bf16.msra.mxu0 0
    %3195 = vmatprep.subr.bf16.mxu0 0
    %3196 = vmatpush1.bf16.msra.mxu0 0
    %3197 = vmatprep.subr.bf16.mxu0 0
    %3198 = vmatpush1.bf16.msra.mxu0 0
    %3199 = vmatprep.subr.bf16.mxu0 0
    %3200 = vmatpush1.bf16.msra.mxu0 0
    %3201 = vmatprep.subr.bf16.mxu0 0
    %3202 = vmatpush1.bf16.msra.mxu0 0
    %3203 = vmatprep.mubr.bf16.mxu0 0
    %3204 = vmatmul.mubr.bf16.gmra.mrb[0].mxu0 %v3169
    %v3205 = vpop.f32.mrb[0].mxu0
    %v3206 = vadd.f32 0.0, %v3205
    %v3207 = vpop.f32.mrb[0].mxu0
    %v3208 = vadd.f32 0.0, %v3207
    %v3209 = vpop.f32.mrb[0].mxu0
    %v3210 = vadd.f32 0.0, %v3209
    %v3211 = vpop.f32.mrb[0].mxu0
    %v3212 = vadd.f32 0.0, %v3211
    %3213 = vdwg.mxu0
    %3214 = vmatprep.subr.bf16.mxu0 0
    %3215 = vmatpush1.bf16.msra.mxu0 %v2336
    %3216 = vmatprep.subr.bf16.mxu0 0
    %3217 = vmatpush1.bf16.msra.mxu0 %v2339
    %3218 = vmatprep.subr.bf16.mxu0 0
    %3219 = vmatpush1.bf16.msra.mxu0 %v2362
    %3220 = vmatprep.subr.bf16.mxu0 0
    %3221 = vmatpush1.bf16.msra.mxu0 0
    %3222 = vmatprep.subr.bf16.mxu0 0
    %3223 = vmatpush1.bf16.msra.mxu0 0
    %3224 = vmatprep.subr.bf16.mxu0 0
    %3225 = vmatpush1.bf16.msra.mxu0 0
    %3226 = vmatprep.subr.bf16.mxu0 0
    %3227 = vmatpush1.bf16.msra.mxu0 0
    %3228 = vmatprep.subr.bf16.mxu0 0
    %3229 = vmatpush1.bf16.msra.mxu0 0
    %3230 = vmatprep.subr.bf16.mxu0 0
    %3231 = vmatpush1.bf16.msra.mxu0 0
    %3232 = vmatprep.subr.bf16.mxu0 0
    %3233 = vmatpush1.bf16.msra.mxu0 0
    %3234 = vmatprep.subr.bf16.mxu0 0
    %3235 = vmatpush1.bf16.msra.mxu0 0
    %3236 = vmatprep.subr.bf16.mxu0 0
    %3237 = vmatpush1.bf16.msra.mxu0 0
    %3238 = vmatprep.subr.bf16.mxu0 0
    %3239 = vmatpush1.bf16.msra.mxu0 0
    %3240 = vmatprep.subr.bf16.mxu0 0
    %3241 = vmatpush1.bf16.msra.mxu0 0
    %3242 = vmatprep.subr.bf16.mxu0 0
    %3243 = vmatpush1.bf16.msra.mxu0 0
    %3244 = vmatprep.subr.bf16.mxu0 0
    %3245 = vmatpush1.bf16.msra.mxu0 0
    %3246 = vmatprep.mubr.bf16.mxu0 0
    %3247 = vmatmul.mubr.bf16.gmra.mrb[0].mxu0 %v3169
    %v3248 = vpop.f32.mrb[0].mxu0
    %v3249 = vadd.f32 0.0, %v3248
    %v3250 = vpop.f32.mrb[0].mxu0
    %v3251 = vpop.f32.mrb[0].mxu0
    %v3252 = vadd.f32 0.0, %v3251
    %v3253 = vpop.f32.mrb[0].mxu0
    %3254 = vdwg.mxu0
    %v3255 = vpack.c.bf16 %v3210, %v3206
    %v3256 = vpack.c.bf16 %v3212, %v3208
    %v3257 = vpack.c.bf16 %v3252, %v3249
    %s3258 = scalar_lea.vmem %s6, 576
    %v3259 = vld [vmem:[%s3258] sm:$0xff]
    %v3260 = vld [vmem:[%s3258 + $0x8] sm:$0xff]
    %v3261 = vld [vmem:[%s3258 + $0x10] sm:$0xff]
    %v3262 = vld [vmem:[%s3258 + $0x18] sm:$0xff]
    %v3263 = vld [vmem:[%s3258 + $0x20] sm:$0xff]
    %v3264 = vld [vmem:[%s3258 + $0x28] sm:$0xff]
    %v3265 = vld [vmem:[%s3258 + $0x30] sm:$0xff]
    %v3266 = vld [vmem:[%s3258 + $0x38] sm:$0xff]
    %v3267 = vld [vmem:[%s3258 + $0x40] sm:$0xff]
    %v3268 = vld [vmem:[%s3258 + $0x48] sm:$0xff]
    %v3269 = vld [vmem:[%s3258 + $0x50] sm:$0xff]
    %v3270 = vld [vmem:[%s3258 + $0x58] sm:$0xff]
    %v3271 = vld [vmem:[%s3258 + $0x60] sm:$0xff]
    %v3272 = vld [vmem:[%s3258 + $0x68] sm:$0xff]
    %v3273 = vld [vmem:[%s3258 + $0x70] sm:$0xff]
    %v3274 = vld [vmem:[%s3258 + $0x78] sm:$0xff]
    %v3275 = vld [vmem:[%s3258 + $0x80] sm:$0xff]
    %v3276 = vld [vmem:[%s3258 + $0x88] sm:$0xff]
    %v3277 = vld [vmem:[%s3258 + $0x90] sm:$0xff]
    %v3278 = vld [vmem:[%s3258 + $0x98] sm:$0xff]
    %v3279 = vld [vmem:[%s3258 + $0xa0] sm:$0xff]
    %v3280 = vld [vmem:[%s3258 + $0xa8] sm:$0xff]
    %v3281 = vld [vmem:[%s3258 + $0xb0] sm:$0xff]
    %v3282 = vld [vmem:[%s3258 + $0xb8] sm:$0xff]
    %v3283 = vld [vmem:[%s3258 + $0xc0] sm:$0xff]
    %v3284 = vld [vmem:[%s3258 + $0xc8] sm:$0xff]
    %v3285 = vld [vmem:[%s3258 + $0xd0] sm:$0xff]
    %v3286 = vld [vmem:[%s3258 + $0xd8] sm:$0xff]
    %v3287 = vld [vmem:[%s3258 + $0xe0] sm:$0xff]
    %v3288 = vld [vmem:[%s3258 + $0xe8] sm:$0xff]
    %v3289 = vld [vmem:[%s3258 + $0xf0] sm:$0xff]
    %v3290 = vld [vmem:[%s3258 + $0xf8] sm:$0xff]
    %v3291 = vld [vmem:[%s3258 + $0x100] sm:$0xff]
    %v3292 = vld [vmem:[%s3258 + $0x108] sm:$0xff]
    %v3293 = vld [vmem:[%s3258 + $0x110] sm:$0xff]
    %v3294 = vld [vmem:[%s3258 + $0x118] sm:$0xff]
    %v3331 = vunpack.c.l.b16 %v3259
    %v3332 = vunpack.c.h.b16 %v3259
    %v3333 = vunpack.c.l.b16 %v3260
    %v3334 = vunpack.c.h.b16 %v3260
    %v3335 = vunpack.c.l.b16 %v3261
    %v3336 = vunpack.c.h.b16 %v3261
    %v3337 = vunpack.c.l.b16 %v3262
    %v3338 = vunpack.c.h.b16 %v3262
    %v3339 = vunpack.c.l.b16 %v3263
    %v3340 = vunpack.c.h.b16 %v3263
    %v3341 = vunpack.c.l.b16 %v3264
    %v3342 = vunpack.c.h.b16 %v3264
    %v3343 = vunpack.c.l.b16 %v3265
    %v3344 = vunpack.c.h.b16 %v3265
    %v3345 = vunpack.c.l.b16 %v3266
    %v3346 = vunpack.c.h.b16 %v3266
    %v3347 = vunpack.c.l.b16 %v3267
    %v3348 = vunpack.c.h.b16 %v3267
    %v3349 = vunpack.c.l.b16 %v3268
    %v3350 = vunpack.c.h.b16 %v3268
    %v3351 = vunpack.c.l.b16 %v3269
    %v3352 = vunpack.c.h.b16 %v3269
    %v3353 = vunpack.c.l.b16 %v3270
    %v3354 = vunpack.c.h.b16 %v3270
    %v3355 = vunpack.c.l.b16 %v3271
    %v3356 = vunpack.c.h.b16 %v3271
    %v3357 = vunpack.c.l.b16 %v3272
    %v3358 = vunpack.c.h.b16 %v3272
    %v3359 = vunpack.c.l.b16 %v3273
    %v3360 = vunpack.c.h.b16 %v3273
    %v3361 = vunpack.c.l.b16 %v3274
    %v3362 = vunpack.c.h.b16 %v3274
    %v3363 = vunpack.c.l.b16 %v3275
    %v3364 = vunpack.c.h.b16 %v3275
    %v3365 = vunpack.c.l.b16 %v3276
    %v3366 = vunpack.c.h.b16 %v3276
    %v3367 = vunpack.c.l.b16 %v3277
    %v3368 = vunpack.c.h.b16 %v3277
    %v3369 = vunpack.c.l.b16 %v3278
    %v3370 = vunpack.c.h.b16 %v3278
    %v3371 = vunpack.c.l.b16 %v3279
    %v3372 = vunpack.c.h.b16 %v3279
    %v3373 = vunpack.c.l.b16 %v3280
    %v3374 = vunpack.c.h.b16 %v3280
    %v3375 = vunpack.c.l.b16 %v3281
    %v3376 = vunpack.c.h.b16 %v3281
    %v3377 = vunpack.c.l.b16 %v3282
    %v3378 = vunpack.c.h.b16 %v3282
    %v3379 = vunpack.c.l.b16 %v3283
    %v3380 = vunpack.c.h.b16 %v3283
    %v3381 = vunpack.c.l.b16 %v3284
    %v3382 = vunpack.c.h.b16 %v3284
    %v3383 = vunpack.c.l.b16 %v3285
    %v3384 = vunpack.c.h.b16 %v3285
    %v3385 = vunpack.c.l.b16 %v3286
    %v3386 = vunpack.c.h.b16 %v3286
    %v3387 = vunpack.c.l.b16 %v3287
    %v3388 = vunpack.c.h.b16 %v3287
    %v3389 = vunpack.c.l.b16 %v3288
    %v3390 = vunpack.c.h.b16 %v3288
    %v3391 = vunpack.c.l.b16 %v3289
    %v3392 = vunpack.c.h.b16 %v3289
    %v3393 = vunpack.c.l.b16 %v3290
    %v3394 = vunpack.c.h.b16 %v3290
    %v3395 = vunpack.c.l.b16 %v3291
    %v3396 = vunpack.c.h.b16 %v3291
    %v3397 = vunpack.c.l.b16 %v3292
    %v3398 = vunpack.c.h.b16 %v3292
    %v3399 = vunpack.c.l.b16 %v3293
    %v3400 = vunpack.c.h.b16 %v3293
    %v3401 = vunpack.c.l.b16 %v3294
    %v3402 = vunpack.c.h.b16 %v3294
    %v3403 = vpack.c.b16 %v3333, %v3331
    %v3404 = vpack.c.b16 %v3334, %v3332
    %v3405 = vpack.c.b16 %v3337, %v3335
    %v3406 = vpack.c.b16 %v3338, %v3336
    %v3407 = vpack.c.b16 %v3341, %v3339
    %v3408 = vpack.c.b16 %v3342, %v3340
    %v3409 = vpack.c.b16 %v3345, %v3343
    %v3410 = vpack.c.b16 %v3346, %v3344
    %v3411 = vpack.c.b16 %v3349, %v3347
    %v3412 = vpack.c.b16 %v3350, %v3348
    %v3413 = vpack.c.b16 %v3353, %v3351
    %v3414 = vpack.c.b16 %v3354, %v3352
    %v3415 = vpack.c.b16 %v3357, %v3355
    %v3416 = vpack.c.b16 %v3358, %v3356
    %v3417 = vpack.c.b16 %v3361, %v3359
    %v3418 = vpack.c.b16 %v3362, %v3360
    %v3419 = vpack.c.b16 %v3365, %v3363
    %v3420 = vpack.c.b16 %v3366, %v3364
    %v3421 = vpack.c.b16 %v3369, %v3367
    %v3422 = vpack.c.b16 %v3370, %v3368
    %v3423 = vpack.c.b16 %v3373, %v3371
    %v3424 = vpack.c.b16 %v3374, %v3372
    %v3425 = vpack.c.b16 %v3377, %v3375
    %v3426 = vpack.c.b16 %v3378, %v3376
    %v3427 = vpack.c.b16 %v3381, %v3379
    %v3428 = vpack.c.b16 %v3382, %v3380
    %v3429 = vpack.c.b16 %v3385, %v3383
    %v3430 = vpack.c.b16 %v3386, %v3384
    %v3431 = vpack.c.b16 %v3389, %v3387
    %v3432 = vpack.c.b16 %v3390, %v3388
    %v3433 = vpack.c.b16 %v3393, %v3391
    %v3434 = vpack.c.b16 %v3394, %v3392
    %v3435 = vpack.c.b16 %v3397, %v3395
    %v3436 = vpack.c.b16 %v3398, %v3396
    %v3437 = vpack.c.b16 %v3401, %v3399
    %v3438 = vpack.c.b16 %v3402, %v3400
    %v3476 = vsel %vm2028, %v3257, 0
    %3478 = vmatprep.subr.bf16.mxu0 %v3404
    %3479 = vmatpush1.bf16.msra.mxu0 %v3403
    %3480 = vmatprep.subr.bf16.mxu0 %v3406
    %3481 = vmatpush1.bf16.msra.mxu0 %v3405
    %3482 = vmatprep.subr.bf16.mxu0 %v3408
    %3483 = vmatpush1.bf16.msra.mxu0 %v3407
    %3484 = vmatprep.subr.bf16.mxu0 %v3410
    %3485 = vmatpush1.bf16.msra.mxu0 %v3409
    %3486 = vmatprep.subr.bf16.mxu0 %v3412
    %3487 = vmatpush1.bf16.msra.mxu0 %v3411
    %3488 = vmatprep.subr.bf16.mxu0 %v3414
    %3489 = vmatpush1.bf16.msra.mxu0 %v3413
    %3490 = vmatprep.subr.bf16.mxu0 %v3416
    %3491 = vmatpush1.bf16.msra.mxu0 %v3415
    %3492 = vmatprep.subr.bf16.mxu0 %v3418
    %3493 = vmatpush1.bf16.msra.mxu0 %v3417
    %3494 = vmatprep.subr.bf16.mxu0 %v3420
    %3495 = vmatpush1.bf16.msra.mxu0 %v3419
    %3496 = vmatprep.subr.bf16.mxu0 %v3422
    %3497 = vmatpush1.bf16.msra.mxu0 %v3421
    %3498 = vmatprep.subr.bf16.mxu0 %v3424
    %3499 = vmatpush1.bf16.msra.mxu0 %v3423
    %3500 = vmatprep.subr.bf16.mxu0 %v3426
    %3501 = vmatpush1.bf16.msra.mxu0 %v3425
    %3502 = vmatprep.subr.bf16.mxu0 %v3428
    %3503 = vmatpush1.bf16.msra.mxu0 %v3427
    %3504 = vmatprep.subr.bf16.mxu0 %v3430
    %3505 = vmatpush1.bf16.msra.mxu0 %v3429
    %3506 = vmatprep.subr.bf16.mxu0 %v3432
    %3507 = vmatpush1.bf16.msra.mxu0 %v3431
    %3508 = vmatprep.subr.bf16.mxu0 %v3434
    %3509 = vmatpush1.bf16.msra.mxu0 %v3433
    %3510 = vmatprep.mubr.bf16.mxu0 %v3256
    %3511 = vmatmul.mubr.bf16.gmra.mrb[0].mxu0 %v3255
    %v3512 = vpop.f32.mrb[0].mxu0
    %v3513 = vadd.f32 0.0, %v3512
    %v3514 = vpop.f32.mrb[0].mxu0
    %v3515 = vadd.f32 0.0, %v3514
    %v3516 = vpop.f32.mrb[0].mxu0
    %v3517 = vadd.f32 0.0, %v3516
    %v3518 = vpop.f32.mrb[0].mxu0
    %v3519 = vadd.f32 0.0, %v3518
    %3520 = vdwg.mxu0
    %3521 = vmatprep.subr.bf16.mxu0 %v3436
    %3522 = vmatpush1.bf16.msra.mxu0 %v3435
    %3523 = vmatprep.subr.bf16.mxu0 %v3438
    %3524 = vmatpush1.bf16.msra.mxu0 %v3437
    %3525 = vmatprep.subr.bf16.mxu0 0
    %3526 = vmatpush1.bf16.msra.mxu0 0
    %3527 = vmatprep.subr.bf16.mxu0 0
    %3528 = vmatpush1.bf16.msra.mxu0 0
    %3529 = vmatprep.subr.bf16.mxu0 0
    %3530 = vmatpush1.bf16.msra.mxu0 0
    %3531 = vmatprep.subr.bf16.mxu0 0
    %3532 = vmatpush1.bf16.msra.mxu0 0
    %3533 = vmatprep.subr.bf16.mxu0 0
    %3534 = vmatpush1.bf16.msra.mxu0 0
    %3535 = vmatprep.subr.bf16.mxu0 0
    %3536 = vmatpush1.bf16.msra.mxu0 0
    %3537 = vmatprep.subr.bf16.mxu0 0
    %3538 = vmatpush1.bf16.msra.mxu0 0
    %3539 = vmatprep.subr.bf16.mxu0 0
    %3540 = vmatpush1.bf16.msra.mxu0 0
    %3541 = vmatprep.subr.bf16.mxu0 0
    %3542 = vmatpush1.bf16.msra.mxu0 0
    %3543 = vmatprep.subr.bf16.mxu0 0
    %3544 = vmatpush1.bf16.msra.mxu0 0
    %3545 = vmatprep.subr.bf16.mxu0 0
    %3546 = vmatpush1.bf16.msra.mxu0 0
    %3547 = vmatprep.subr.bf16.mxu0 0
    %3548 = vmatpush1.bf16.msra.mxu0 0
    %3549 = vmatprep.subr.bf16.mxu0 0
    %3550 = vmatpush1.bf16.msra.mxu0 0
    %3551 = vmatprep.subr.bf16.mxu0 0
    %3552 = vmatpush1.bf16.msra.mxu0 0
    %3553 = vmatprep.mubr.bf16.mxu0 0
    %3554 = vmatmul.mubr.bf16.gmra.mrb[0].mxu0 %v3476
    %v3555 = vpop.f32.mrb[0].mxu0
    %v3556 = vadd.f32 %v3513, %v3555
    %v3557 = vpop.f32.mrb[0].mxu0
    %v3558 = vadd.f32 %v3515, %v3557
    %v3559 = vpop.f32.mrb[0].mxu0
    %v3560 = vadd.f32 %v3517, %v3559
    %v3561 = vpop.f32.mrb[0].mxu0
    %v3562 = vadd.f32 %v3519, %v3561
    %3563 = vdwg.mxu0
    %v3564 = vadd.f32 %v3152, %v3556
    %v3565 = vadd.f32 %v3154, %v3558
    %v3566 = vadd.f32 %v3156, %v3560
    %v3567 = vadd.f32 %v3158, %v3562
    %s3568 = scalar_lea.vmem %s5, 24
    %v3569 = vld [vmem:[%s3568] sm:$0xf]
    %v3570 = vld [vmem:[%s3568 + $0x4] sm:$0x7]
    %v3573 = vunpack.c.l.b16 %v3569
    %v3574 = vunpack.c.l.b16 %v3570
    %v3575 = vpack.c.b16 %v3574, %v3573
    %v3577 = vsel %vm2350, %v3575, 0
    %3579 = vmatprep.subr.bf16.mxu0 %v2335
    %3580 = vmatpush1.bf16.msra.mxu0 %v2334
    %3581 = vmatprep.subr.bf16.mxu0 %v2338
    %3582 = vmatpush1.bf16.msra.mxu0 %v2337
    %3583 = vmatprep.subr.bf16.mxu0 %v2359
    %3584 = vmatpush1.bf16.msra.mxu0 %v2356
    %3585 = vmatprep.subr.bf16.mxu0 0
    %3586 = vmatpush1.bf16.msra.mxu0 0
    %3587 = vmatprep.subr.bf16.mxu0 0
    %3588 = vmatpush1.bf16.msra.mxu0 0
    %3589 = vmatprep.subr.bf16.mxu0 0
    %3590 = vmatpush1.bf16.msra.mxu0 0
    %3591 = vmatprep.subr.bf16.mxu0 0
    %3592 = vmatpush1.bf16.msra.mxu0 0
    %3593 = vmatprep.subr.bf16.mxu0 0
    %3594 = vmatpush1.bf16.msra.mxu0 0
    %3595 = vmatprep.subr.bf16.mxu0 0
    %3596 = vmatpush1.bf16.msra.mxu0 0
    %3597 = vmatprep.subr.bf16.mxu0 0
    %3598 = vmatpush1.bf16.msra.mxu0 0
    %3599 = vmatprep.subr.bf16.mxu0 0
    %3600 = vmatpush1.bf16.msra.mxu0 0
    %3601 = vmatprep.subr.bf16.mxu0 0
    %3602 = vmatpush1.bf16.msra.mxu0 0
    %3603 = vmatprep.subr.bf16.mxu0 0
    %3604 = vmatpush1.bf16.msra.mxu0 0
    %3605 = vmatprep.subr.bf16.mxu0 0
    %3606 = vmatpush1.bf16.msra.mxu0 0
    %3607 = vmatprep.subr.bf16.mxu0 0
    %3608 = vmatpush1.bf16.msra.mxu0 0
    %3609 = vmatprep.subr.bf16.mxu0 0
    %3610 = vmatpush1.bf16.msra.mxu0 0
    %3611 = vmatprep.mubr.bf16.mxu0 0
    %3612 = vmatmul.mubr.bf16.gmra.mrb[0].mxu0 %v3577
    %v3613 = vpop.f32.mrb[0].mxu0
    %v3614 = vadd.f32 0.0, %v3613
    %v3615 = vpop.f32.mrb[0].mxu0
    %v3616 = vadd.f32 0.0, %v3615
    %v3617 = vpop.f32.mrb[0].mxu0
    %v3618 = vadd.f32 0.0, %v3617
    %v3619 = vpop.f32.mrb[0].mxu0
    %v3620 = vadd.f32 0.0, %v3619
    %3621 = vdwg.mxu0
    %3622 = vmatprep.subr.bf16.mxu0 0
    %3623 = vmatpush1.bf16.msra.mxu0 %v2336
    %3624 = vmatprep.subr.bf16.mxu0 0
    %3625 = vmatpush1.bf16.msra.mxu0 %v2339
    %3626 = vmatprep.subr.bf16.mxu0 0
    %3627 = vmatpush1.bf16.msra.mxu0 %v2362
    %3628 = vmatprep.subr.bf16.mxu0 0
    %3629 = vmatpush1.bf16.msra.mxu0 0
    %3630 = vmatprep.subr.bf16.mxu0 0
    %3631 = vmatpush1.bf16.msra.mxu0 0
    %3632 = vmatprep.subr.bf16.mxu0 0
    %3633 = vmatpush1.bf16.msra.mxu0 0
    %3634 = vmatprep.subr.bf16.mxu0 0
    %3635 = vmatpush1.bf16.msra.mxu0 0
    %3636 = vmatprep.subr.bf16.mxu0 0
    %3637 = vmatpush1.bf16.msra.mxu0 0
    %3638 = vmatprep.subr.bf16.mxu0 0
    %3639 = vmatpush1.bf16.msra.mxu0 0
    %3640 = vmatprep.subr.bf16.mxu0 0
    %3641 = vmatpush1.bf16.msra.mxu0 0
    %3642 = vmatprep.subr.bf16.mxu0 0
    %3643 = vmatpush1.bf16.msra.mxu0 0
    %3644 = vmatprep.subr.bf16.mxu0 0
    %3645 = vmatpush1.bf16.msra.mxu0 0
    %3646 = vmatprep.subr.bf16.mxu0 0
    %3647 = vmatpush1.bf16.msra.mxu0 0
    %3648 = vmatprep.subr.bf16.mxu0 0
    %3649 = vmatpush1.bf16.msra.mxu0 0
    %3650 = vmatprep.subr.bf16.mxu0 0
    %3651 = vmatpush1.bf16.msra.mxu0 0
    %3652 = vmatprep.subr.bf16.mxu0 0
    %3653 = vmatpush1.bf16.msra.mxu0 0
    %3654 = vmatprep.mubr.bf16.mxu0 0
    %3655 = vmatmul.mubr.bf16.gmra.mrb[0].mxu0 %v3577
    %v3656 = vpop.f32.mrb[0].mxu0
    %v3657 = vadd.f32 0.0, %v3656
    %v3658 = vpop.f32.mrb[0].mxu0
    %v3659 = vpop.f32.mrb[0].mxu0
    %v3660 = vadd.f32 0.0, %v3659
    %v3661 = vpop.f32.mrb[0].mxu0
    %3662 = vdwg.mxu0
    %v3663 = vpack.c.bf16 %v3618, %v3614
    %v3664 = vpack.c.bf16 %v3620, %v3616
    %v3665 = vpack.c.bf16 %v3660, %v3657
    %s3666 = scalar_lea.vmem %s6, 864
    %v3667 = vld [vmem:[%s3666] sm:$0xff]
    %v3668 = vld [vmem:[%s3666 + $0x8] sm:$0xff]
    %v3669 = vld [vmem:[%s3666 + $0x10] sm:$0xff]
    %v3670 = vld [vmem:[%s3666 + $0x18] sm:$0xff]
    %v3671 = vld [vmem:[%s3666 + $0x20] sm:$0xff]
    %v3672 = vld [vmem:[%s3666 + $0x28] sm:$0xff]
    %v3673 = vld [vmem:[%s3666 + $0x30] sm:$0xff]
    %v3674 = vld [vmem:[%s3666 + $0x38] sm:$0xff]
    %v3675 = vld [vmem:[%s3666 + $0x40] sm:$0xff]
    %v3676 = vld [vmem:[%s3666 + $0x48] sm:$0xff]
    %v3677 = vld [vmem:[%s3666 + $0x50] sm:$0xff]
    %v3678 = vld [vmem:[%s3666 + $0x58] sm:$0xff]
    %v3679 = vld [vmem:[%s3666 + $0x60] sm:$0xff]
    %v3680 = vld [vmem:[%s3666 + $0x68] sm:$0xff]
    %v3681 = vld [vmem:[%s3666 + $0x70] sm:$0xff]
    %v3682 = vld [vmem:[%s3666 + $0x78] sm:$0xff]
    %v3683 = vld [vmem:[%s3666 + $0x80] sm:$0xff]
    %v3684 = vld [vmem:[%s3666 + $0x88] sm:$0xff]
    %v3685 = vld [vmem:[%s3666 + $0x90] sm:$0xff]
    %v3686 = vld [vmem:[%s3666 + $0x98] sm:$0xff]
    %v3687 = vld [vmem:[%s3666 + $0xa0] sm:$0xff]
    %v3688 = vld [vmem:[%s3666 + $0xa8] sm:$0xff]
    %v3689 = vld [vmem:[%s3666 + $0xb0] sm:$0xff]
    %v3690 = vld [vmem:[%s3666 + $0xb8] sm:$0xff]
    %v3691 = vld [vmem:[%s3666 + $0xc0] sm:$0xff]
    %v3692 = vld [vmem:[%s3666 + $0xc8] sm:$0xff]
    %v3693 = vld [vmem:[%s3666 + $0xd0] sm:$0xff]
    %v3694 = vld [vmem:[%s3666 + $0xd8] sm:$0xff]
    %v3695 = vld [vmem:[%s3666 + $0xe0] sm:$0xff]
    %v3696 = vld [vmem:[%s3666 + $0xe8] sm:$0xff]
    %v3697 = vld [vmem:[%s3666 + $0xf0] sm:$0xff]
    %v3698 = vld [vmem:[%s3666 + $0xf8] sm:$0xff]
    %v3699 = vld [vmem:[%s3666 + $0x100] sm:$0xff]
    %v3700 = vld [vmem:[%s3666 + $0x108] sm:$0xff]
    %v3701 = vld [vmem:[%s3666 + $0x110] sm:$0xff]
    %v3702 = vld [vmem:[%s3666 + $0x118] sm:$0xff]
    %v3739 = vunpack.c.l.b16 %v3667
    %v3740 = vunpack.c.h.b16 %v3667
    %v3741 = vunpack.c.l.b16 %v3668
    %v3742 = vunpack.c.h.b16 %v3668
    %v3743 = vunpack.c.l.b16 %v3669
    %v3744 = vunpack.c.h.b16 %v3669
    %v3745 = vunpack.c.l.b16 %v3670
    %v3746 = vunpack.c.h.b16 %v3670
    %v3747 = vunpack.c.l.b16 %v3671
    %v3748 = vunpack.c.h.b16 %v3671
    %v3749 = vunpack.c.l.b16 %v3672
    %v3750 = vunpack.c.h.b16 %v3672
    %v3751 = vunpack.c.l.b16 %v3673
    %v3752 = vunpack.c.h.b16 %v3673
    %v3753 = vunpack.c.l.b16 %v3674
    %v3754 = vunpack.c.h.b16 %v3674
    %v3755 = vunpack.c.l.b16 %v3675
    %v3756 = vunpack.c.h.b16 %v3675
    %v3757 = vunpack.c.l.b16 %v3676
    %v3758 = vunpack.c.h.b16 %v3676
    %v3759 = vunpack.c.l.b16 %v3677
    %v3760 = vunpack.c.h.b16 %v3677
    %v3761 = vunpack.c.l.b16 %v3678
    %v3762 = vunpack.c.h.b16 %v3678
    %v3763 = vunpack.c.l.b16 %v3679
    %v3764 = vunpack.c.h.b16 %v3679
    %v3765 = vunpack.c.l.b16 %v3680
    %v3766 = vunpack.c.h.b16 %v3680
    %v3767 = vunpack.c.l.b16 %v3681
    %v3768 = vunpack.c.h.b16 %v3681
    %v3769 = vunpack.c.l.b16 %v3682
    %v3770 = vunpack.c.h.b16 %v3682
    %v3771 = vunpack.c.l.b16 %v3683
    %v3772 = vunpack.c.h.b16 %v3683
    %v3773 = vunpack.c.l.b16 %v3684
    %v3774 = vunpack.c.h.b16 %v3684
    %v3775 = vunpack.c.l.b16 %v3685
    %v3776 = vunpack.c.h.b16 %v3685
    %v3777 = vunpack.c.l.b16 %v3686
    %v3778 = vunpack.c.h.b16 %v3686
    %v3779 = vunpack.c.l.b16 %v3687
    %v3780 = vunpack.c.h.b16 %v3687
    %v3781 = vunpack.c.l.b16 %v3688
    %v3782 = vunpack.c.h.b16 %v3688
    %v3783 = vunpack.c.l.b16 %v3689
    %v3784 = vunpack.c.h.b16 %v3689
    %v3785 = vunpack.c.l.b16 %v3690
    %v3786 = vunpack.c.h.b16 %v3690
    %v3787 = vunpack.c.l.b16 %v3691
    %v3788 = vunpack.c.h.b16 %v3691
    %v3789 = vunpack.c.l.b16 %v3692
    %v3790 = vunpack.c.h.b16 %v3692
    %v3791 = vunpack.c.l.b16 %v3693
    %v3792 = vunpack.c.h.b16 %v3693
    %v3793 = vunpack.c.l.b16 %v3694
    %v3794 = vunpack.c.h.b16 %v3694
    %v3795 = vunpack.c.l.b16 %v3695
    %v3796 = vunpack.c.h.b16 %v3695
    %v3797 = vunpack.c.l.b16 %v3696
    %v3798 = vunpack.c.h.b16 %v3696
    %v3799 = vunpack.c.l.b16 %v3697
    %v3800 = vunpack.c.h.b16 %v3697
    %v3801 = vunpack.c.l.b16 %v3698
    %v3802 = vunpack.c.h.b16 %v3698
    %v3803 = vunpack.c.l.b16 %v3699
    %v3804 = vunpack.c.h.b16 %v3699
    %v3805 = vunpack.c.l.b16 %v3700
    %v3806 = vunpack.c.h.b16 %v3700
    %v3807 = vunpack.c.l.b16 %v3701
    %v3808 = vunpack.c.h.b16 %v3701
    %v3809 = vunpack.c.l.b16 %v3702
    %v3810 = vunpack.c.h.b16 %v3702
    %v3811 = vpack.c.b16 %v3741, %v3739
    %v3812 = vpack.c.b16 %v3742, %v3740
    %v3813 = vpack.c.b16 %v3745, %v3743
    %v3814 = vpack.c.b16 %v3746, %v3744
    %v3815 = vpack.c.b16 %v3749, %v3747
    %v3816 = vpack.c.b16 %v3750, %v3748
    %v3817 = vpack.c.b16 %v3753, %v3751
    %v3818 = vpack.c.b16 %v3754, %v3752
    %v3819 = vpack.c.b16 %v3757, %v3755
    %v3820 = vpack.c.b16 %v3758, %v3756
    %v3821 = vpack.c.b16 %v3761, %v3759
    %v3822 = vpack.c.b16 %v3762, %v3760
    %v3823 = vpack.c.b16 %v3765, %v3763
    %v3824 = vpack.c.b16 %v3766, %v3764
    %v3825 = vpack.c.b16 %v3769, %v3767
    %v3826 = vpack.c.b16 %v3770, %v3768
    %v3827 = vpack.c.b16 %v3773, %v3771
    %v3828 = vpack.c.b16 %v3774, %v3772
    %v3829 = vpack.c.b16 %v3777, %v3775
    %v3830 = vpack.c.b16 %v3778, %v3776
    %v3831 = vpack.c.b16 %v3781, %v3779
    %v3832 = vpack.c.b16 %v3782, %v3780
    %v3833 = vpack.c.b16 %v3785, %v3783
    %v3834 = vpack.c.b16 %v3786, %v3784
    %v3835 = vpack.c.b16 %v3789, %v3787
    %v3836 = vpack.c.b16 %v3790, %v3788
    %v3837 = vpack.c.b16 %v3793, %v3791
    %v3838 = vpack.c.b16 %v3794, %v3792
    %v3839 = vpack.c.b16 %v3797, %v3795
    %v3840 = vpack.c.b16 %v3798, %v3796
    %v3841 = vpack.c.b16 %v3801, %v3799
    %v3842 = vpack.c.b16 %v3802, %v3800
    %v3843 = vpack.c.b16 %v3805, %v3803
    %v3844 = vpack.c.b16 %v3806, %v3804
    %v3845 = vpack.c.b16 %v3809, %v3807
    %v3846 = vpack.c.b16 %v3810, %v3808
    %v3884 = vsel %vm2028, %v3665, 0
    %3886 = vmatprep.subr.bf16.mxu0 %v3812
    %3887 = vmatpush1.bf16.msra.mxu0 %v3811
    %3888 = vmatprep.subr.bf16.mxu0 %v3814
    %3889 = vmatpush1.bf16.msra.mxu0 %v3813
    %3890 = vmatprep.subr.bf16.mxu0 %v3816
    %3891 = vmatpush1.bf16.msra.mxu0 %v3815
    %3892 = vmatprep.subr.bf16.mxu0 %v3818
    %3893 = vmatpush1.bf16.msra.mxu0 %v3817
    %3894 = vmatprep.subr.bf16.mxu0 %v3820
    %3895 = vmatpush1.bf16.msra.mxu0 %v3819
    %3896 = vmatprep.subr.bf16.mxu0 %v3822
    %3897 = vmatpush1.bf16.msra.mxu0 %v3821
    %3898 = vmatprep.subr.bf16.mxu0 %v3824
    %3899 = vmatpush1.bf16.msra.mxu0 %v3823
    %3900 = vmatprep.subr.bf16.mxu0 %v3826
    %3901 = vmatpush1.bf16.msra.mxu0 %v3825
    %3902 = vmatprep.subr.bf16.mxu0 %v3828
    %3903 = vmatpush1.bf16.msra.mxu0 %v3827
    %3904 = vmatprep.subr.bf16.mxu0 %v3830
    %3905 = vmatpush1.bf16.msra.mxu0 %v3829
    %3906 = vmatprep.subr.bf16.mxu0 %v3832
    %3907 = vmatpush1.bf16.msra.mxu0 %v3831
    %3908 = vmatprep.subr.bf16.mxu0 %v3834
    %3909 = vmatpush1.bf16.msra.mxu0 %v3833
    %3910 = vmatprep.subr.bf16.mxu0 %v3836
    %3911 = vmatpush1.bf16.msra.mxu0 %v3835
    %3912 = vmatprep.subr.bf16.mxu0 %v3838
    %3913 = vmatpush1.bf16.msra.mxu0 %v3837
    %3914 = vmatprep.subr.bf16.mxu0 %v3840
    %3915 = vmatpush1.bf16.msra.mxu0 %v3839
    %3916 = vmatprep.subr.bf16.mxu0 %v3842
    %3917 = vmatpush1.bf16.msra.mxu0 %v3841
    %3918 = vmatprep.mubr.bf16.mxu0 %v3664
    %3919 = vmatmul.mubr.bf16.gmra.mrb[0].mxu0 %v3663
    %v3920 = vpop.f32.mrb[0].mxu0
    %v3921 = vadd.f32 0.0, %v3920
    %v3922 = vpop.f32.mrb[0].mxu0
    %v3923 = vadd.f32 0.0, %v3922
    %v3924 = vpop.f32.mrb[0].mxu0
    %v3925 = vadd.f32 0.0, %v3924
    %v3926 = vpop.f32.mrb[0].mxu0
    %v3927 = vadd.f32 0.0, %v3926
    %3928 = vdwg.mxu0
    %3929 = vmatprep.subr.bf16.mxu0 %v3844
    %3930 = vmatpush1.bf16.msra.mxu0 %v3843
    %3931 = vmatprep.subr.bf16.mxu0 %v3846
    %3932 = vmatpush1.bf16.msra.mxu0 %v3845
    %3933 = vmatprep.subr.bf16.mxu0 0
    %3934 = vmatpush1.bf16.msra.mxu0 0
    %3935 = vmatprep.subr.bf16.mxu0 0
    %3936 = vmatpush1.bf16.msra.mxu0 0
    %3937 = vmatprep.subr.bf16.mxu0 0
    %3938 = vmatpush1.bf16.msra.mxu0 0
    %3939 = vmatprep.subr.bf16.mxu0 0
    %3940 = vmatpush1.bf16.msra.mxu0 0
    %3941 = vmatprep.subr.bf16.mxu0 0
    %3942 = vmatpush1.bf16.msra.mxu0 0
    %3943 = vmatprep.subr.bf16.mxu0 0
    %3944 = vmatpush1.bf16.msra.mxu0 0
    %3945 = vmatprep.subr.bf16.mxu0 0
    %3946 = vmatpush1.bf16.msra.mxu0 0
    %3947 = vmatprep.subr.bf16.mxu0 0
    %3948 = vmatpush1.bf16.msra.mxu0 0
    %3949 = vmatprep.subr.bf16.mxu0 0
    %3950 = vmatpush1.bf16.msra.mxu0 0
    %3951 = vmatprep.subr.bf16.mxu0 0
    %3952 = vmatpush1.bf16.msra.mxu0 0
    %3953 = vmatprep.subr.bf16.mxu0 0
    %3954 = vmatpush1.bf16.msra.mxu0 0
    %3955 = vmatprep.subr.bf16.mxu0 0
    %3956 = vmatpush1.bf16.msra.mxu0 0
    %3957 = vmatprep.subr.bf16.mxu0 0
    %3958 = vmatpush1.bf16.msra.mxu0 0
    %3959 = vmatprep.subr.bf16.mxu0 0
    %3960 = vmatpush1.bf16.msra.mxu0 0
    %3961 = vmatprep.mubr.bf16.mxu0 0
    %3962 = vmatmul.mubr.bf16.gmra.mrb[0].mxu0 %v3884
    %v3963 = vpop.f32.mrb[0].mxu0
    %v3964 = vadd.f32 %v3921, %v3963
    %v3965 = vpop.f32.mrb[0].mxu0
    %v3966 = vadd.f32 %v3923, %v3965
    %v3967 = vpop.f32.mrb[0].mxu0
    %v3968 = vadd.f32 %v3925, %v3967
    %v3969 = vpop.f32.mrb[0].mxu0
    %v3970 = vadd.f32 %v3927, %v3969
    %3971 = vdwg.mxu0
    %v3972 = vadd.f32 %v3564, %v3964
    %v3973 = vadd.f32 %v3565, %v3966
    %v3974 = vadd.f32 %v3566, %v3968
    %v3975 = vadd.f32 %v3567, %v3970
    %s3976 = scalar_lea.vmem %s5, 32
    %v3977 = vld [vmem:[%s3976] sm:$0xf]
    %v3978 = vld [vmem:[%s3976 + $0x4] sm:$0x7]
    %v3981 = vunpack.c.l.b16 %v3977
    %v3982 = vunpack.c.l.b16 %v3978
    %v3983 = vpack.c.b16 %v3982, %v3981
    %v3985 = vsel %vm2350, %v3983, 0
    %3987 = vmatprep.subr.bf16.mxu0 %v2335
    %3988 = vmatpush1.bf16.msra.mxu0 %v2334
    %3989 = vmatprep.subr.bf16.mxu0 %v2338
    %3990 = vmatpush1.bf16.msra.mxu0 %v2337
    %3991 = vmatprep.subr.bf16.mxu0 %v2359
    %3992 = vmatpush1.bf16.msra.mxu0 %v2356
    %3993 = vmatprep.subr.bf16.mxu0 0
    %3994 = vmatpush1.bf16.msra.mxu0 0
    %3995 = vmatprep.subr.bf16.mxu0 0
    %3996 = vmatpush1.bf16.msra.mxu0 0
    %3997 = vmatprep.subr.bf16.mxu0 0
    %3998 = vmatpush1.bf16.msra.mxu0 0
    %3999 = vmatprep.subr.bf16.mxu0 0
    %4000 = vmatpush1.bf16.msra.mxu0 0
    %4001 = vmatprep.subr.bf16.mxu0 0
    %4002 = vmatpush1.bf16.msra.mxu0 0
    %4003 = vmatprep.subr.bf16.mxu0 0
    %4004 = vmatpush1.bf16.msra.mxu0 0
    %4005 = vmatprep.subr.bf16.mxu0 0
    %4006 = vmatpush1.bf16.msra.mxu0 0
    %4007 = vmatprep.subr.bf16.mxu0 0
    %4008 = vmatpush1.bf16.msra.mxu0 0
    %4009 = vmatprep.subr.bf16.mxu0 0
    %4010 = vmatpush1.bf16.msra.mxu0 0
    %4011 = vmatprep.subr.bf16.mxu0 0
    %4012 = vmatpush1.bf16.msra.mxu0 0
    %4013 = vmatprep.subr.bf16.mxu0 0
    %4014 = vmatpush1.bf16.msra.mxu0 0
    %4015 = vmatprep.subr.bf16.mxu0 0
    %4016 = vmatpush1.bf16.msra.mxu0 0
    %4017 = vmatprep.subr.bf16.mxu0 0
    %4018 = vmatpush1.bf16.msra.mxu0 0
    %4019 = vmatprep.mubr.bf16.mxu0 0
    %4020 = vmatmul.mubr.bf16.gmra.mrb[0].mxu0 %v3985
    %v4021 = vpop.f32.mrb[0].mxu0
    %v4022 = vadd.f32 0.0, %v4021
    %v4023 = vpop.f32.mrb[0].mxu0
    %v4024 = vadd.f32 0.0, %v4023
    %v4025 = vpop.f32.mrb[0].mxu0
    %v4026 = vadd.f32 0.0, %v4025
    %v4027 = vpop.f32.mrb[0].mxu0
    %v4028 = vadd.f32 0.0, %v4027
    %4029 = vdwg.mxu0
    %4030 = vmatprep.subr.bf16.mxu0 0
    %4031 = vmatpush1.bf16.msra.mxu0 %v2336
    %4032 = vmatprep.subr.bf16.mxu0 0
    %4033 = vmatpush1.bf16.msra.mxu0 %v2339
    %4034 = vmatprep.subr.bf16.mxu0 0
    %4035 = vmatpush1.bf16.msra.mxu0 %v2362
    %4036 = vmatprep.subr.bf16.mxu0 0
    %4037 = vmatpush1.bf16.msra.mxu0 0
    %4038 = vmatprep.subr.bf16.mxu0 0
    %4039 = vmatpush1.bf16.msra.mxu0 0
    %4040 = vmatprep.subr.bf16.mxu0 0
    %4041 = vmatpush1.bf16.msra.mxu0 0
    %4042 = vmatprep.subr.bf16.mxu0 0
    %4043 = vmatpush1.bf16.msra.mxu0 0
    %4044 = vmatprep.subr.bf16.mxu0 0
    %4045 = vmatpush1.bf16.msra.mxu0 0
    %4046 = vmatprep.subr.bf16.mxu0 0
    %4047 = vmatpush1.bf16.msra.mxu0 0
    %4048 = vmatprep.subr.bf16.mxu0 0
    %4049 = vmatpush1.bf16.msra.mxu0 0
    %4050 = vmatprep.subr.bf16.mxu0 0
    %4051 = vmatpush1.bf16.msra.mxu0 0
    %4052 = vmatprep.subr.bf16.mxu0 0
    %4053 = vmatpush1.bf16.msra.mxu0 0
    %4054 = vmatprep.subr.bf16.mxu0 0
    %4055 = vmatpush1.bf16.msra.mxu0 0
    %4056 = vmatprep.subr.bf16.mxu0 0
    %4057 = vmatpush1.bf16.msra.mxu0 0
    %4058 = vmatprep.subr.bf16.mxu0 0
    %4059 = vmatpush1.bf16.msra.mxu0 0
    %4060 = vmatprep.subr.bf16.mxu0 0
    %4061 = vmatpush1.bf16.msra.mxu0 0
    %4062 = vmatprep.mubr.bf16.mxu0 0
    %4063 = vmatmul.mubr.bf16.gmra.mrb[0].mxu0 %v3985
    %v4064 = vpop.f32.mrb[0].mxu0
    %v4065 = vadd.f32 0.0, %v4064
    %v4066 = vpop.f32.mrb[0].mxu0
    %v4067 = vpop.f32.mrb[0].mxu0
    %v4068 = vadd.f32 0.0, %v4067
    %v4069 = vpop.f32.mrb[0].mxu0
    %4070 = vdwg.mxu0
    %v4071 = vpack.c.bf16 %v4026, %v4022
    %v4072 = vpack.c.bf16 %v4028, %v4024
    %v4073 = vpack.c.bf16 %v4068, %v4065
    %s4074 = scalar_lea.vmem %s6, 1152
    %v4075 = vld [vmem:[%s4074] sm:$0xff]
    %v4076 = vld [vmem:[%s4074 + $0x8] sm:$0xff]
    %v4077 = vld [vmem:[%s4074 + $0x10] sm:$0xff]
    %v4078 = vld [vmem:[%s4074 + $0x18] sm:$0xff]
    %v4079 = vld [vmem:[%s4074 + $0x20] sm:$0xff]
    %v4080 = vld [vmem:[%s4074 + $0x28] sm:$0xff]
    %v4081 = vld [vmem:[%s4074 + $0x30] sm:$0xff]
    %v4082 = vld [vmem:[%s4074 + $0x38] sm:$0xff]
    %v4083 = vld [vmem:[%s4074 + $0x40] sm:$0xff]
    %v4084 = vld [vmem:[%s4074 + $0x48] sm:$0xff]
    %v4085 = vld [vmem:[%s4074 + $0x50] sm:$0xff]
    %v4086 = vld [vmem:[%s4074 + $0x58] sm:$0xff]
    %v4087 = vld [vmem:[%s4074 + $0x60] sm:$0xff]
    %v4088 = vld [vmem:[%s4074 + $0x68] sm:$0xff]
    %v4089 = vld [vmem:[%s4074 + $0x70] sm:$0xff]
    %v4090 = vld [vmem:[%s4074 + $0x78] sm:$0xff]
    %v4091 = vld [vmem:[%s4074 + $0x80] sm:$0xff]
    %v4092 = vld [vmem:[%s4074 + $0x88] sm:$0xff]
    %v4093 = vld [vmem:[%s4074 + $0x90] sm:$0xff]
    %v4094 = vld [vmem:[%s4074 + $0x98] sm:$0xff]
    %v4095 = vld [vmem:[%s4074 + $0xa0] sm:$0xff]
    %v4096 = vld [vmem:[%s4074 + $0xa8] sm:$0xff]
    %v4097 = vld [vmem:[%s4074 + $0xb0] sm:$0xff]
    %v4098 = vld [vmem:[%s4074 + $0xb8] sm:$0xff]
    %v4099 = vld [vmem:[%s4074 + $0xc0] sm:$0xff]
    %v4100 = vld [vmem:[%s4074 + $0xc8] sm:$0xff]
    %v4101 = vld [vmem:[%s4074 + $0xd0] sm:$0xff]
    %v4102 = vld [vmem:[%s4074 + $0xd8] sm:$0xff]
    %v4103 = vld [vmem:[%s4074 + $0xe0] sm:$0xff]
    %v4104 = vld [vmem:[%s4074 + $0xe8] sm:$0xff]
    %v4105 = vld [vmem:[%s4074 + $0xf0] sm:$0xff]
    %v4106 = vld [vmem:[%s4074 + $0xf8] sm:$0xff]
    %v4107 = vld [vmem:[%s4074 + $0x100] sm:$0xff]
    %v4108 = vld [vmem:[%s4074 + $0x108] sm:$0xff]
    %v4109 = vld [vmem:[%s4074 + $0x110] sm:$0xff]
    %v4110 = vld [vmem:[%s4074 + $0x118] sm:$0xff]
    %v4147 = vunpack.c.l.b16 %v4075
    %v4148 = vunpack.c.h.b16 %v4075
    %v4149 = vunpack.c.l.b16 %v4076
    %v4150 = vunpack.c.h.b16 %v4076
    %v4151 = vunpack.c.l.b16 %v4077
    %v4152 = vunpack.c.h.b16 %v4077
    %v4153 = vunpack.c.l.b16 %v4078
    %v4154 = vunpack.c.h.b16 %v4078
    %v4155 = vunpack.c.l.b16 %v4079
    %v4156 = vunpack.c.h.b16 %v4079
    %v4157 = vunpack.c.l.b16 %v4080
    %v4158 = vunpack.c.h.b16 %v4080
    %v4159 = vunpack.c.l.b16 %v4081
    %v4160 = vunpack.c.h.b16 %v4081
    %v4161 = vunpack.c.l.b16 %v4082
    %v4162 = vunpack.c.h.b16 %v4082
    %v4163 = vunpack.c.l.b16 %v4083
    %v4164 = vunpack.c.h.b16 %v4083
    %v4165 = vunpack.c.l.b16 %v4084
    %v4166 = vunpack.c.h.b16 %v4084
    %v4167 = vunpack.c.l.b16 %v4085
    %v4168 = vunpack.c.h.b16 %v4085
    %v4169 = vunpack.c.l.b16 %v4086
    %v4170 = vunpack.c.h.b16 %v4086
    %v4171 = vunpack.c.l.b16 %v4087
    %v4172 = vunpack.c.h.b16 %v4087
    %v4173 = vunpack.c.l.b16 %v4088
    %v4174 = vunpack.c.h.b16 %v4088
    %v4175 = vunpack.c.l.b16 %v4089
    %v4176 = vunpack.c.h.b16 %v4089
    %v4177 = vunpack.c.l.b16 %v4090
    %v4178 = vunpack.c.h.b16 %v4090
    %v4179 = vunpack.c.l.b16 %v4091
    %v4180 = vunpack.c.h.b16 %v4091
    %v4181 = vunpack.c.l.b16 %v4092
    %v4182 = vunpack.c.h.b16 %v4092
    %v4183 = vunpack.c.l.b16 %v4093
    %v4184 = vunpack.c.h.b16 %v4093
    %v4185 = vunpack.c.l.b16 %v4094
    %v4186 = vunpack.c.h.b16 %v4094
    %v4187 = vunpack.c.l.b16 %v4095
    %v4188 = vunpack.c.h.b16 %v4095
    %v4189 = vunpack.c.l.b16 %v4096
    %v4190 = vunpack.c.h.b16 %v4096
    %v4191 = vunpack.c.l.b16 %v4097
    %v4192 = vunpack.c.h.b16 %v4097
    %v4193 = vunpack.c.l.b16 %v4098
    %v4194 = vunpack.c.h.b16 %v4098
    %v4195 = vunpack.c.l.b16 %v4099
    %v4196 = vunpack.c.h.b16 %v4099
    %v4197 = vunpack.c.l.b16 %v4100
    %v4198 = vunpack.c.h.b16 %v4100
    %v4199 = vunpack.c.l.b16 %v4101
    %v4200 = vunpack.c.h.b16 %v4101
    %v4201 = vunpack.c.l.b16 %v4102
    %v4202 = vunpack.c.h.b16 %v4102
    %v4203 = vunpack.c.l.b16 %v4103
    %v4204 = vunpack.c.h.b16 %v4103
    %v4205 = vunpack.c.l.b16 %v4104
    %v4206 = vunpack.c.h.b16 %v4104
    %v4207 = vunpack.c.l.b16 %v4105
    %v4208 = vunpack.c.h.b16 %v4105
    %v4209 = vunpack.c.l.b16 %v4106
    %v4210 = vunpack.c.h.b16 %v4106
    %v4211 = vunpack.c.l.b16 %v4107
    %v4212 = vunpack.c.h.b16 %v4107
    %v4213 = vunpack.c.l.b16 %v4108
    %v4214 = vunpack.c.h.b16 %v4108
    %v4215 = vunpack.c.l.b16 %v4109
    %v4216 = vunpack.c.h.b16 %v4109
    %v4217 = vunpack.c.l.b16 %v4110
    %v4218 = vunpack.c.h.b16 %v4110
    %v4219 = vpack.c.b16 %v4149, %v4147
    %v4220 = vpack.c.b16 %v4150, %v4148
    %v4221 = vpack.c.b16 %v4153, %v4151
    %v4222 = vpack.c.b16 %v4154, %v4152
    %v4223 = vpack.c.b16 %v4157, %v4155
    %v4224 = vpack.c.b16 %v4158, %v4156
    %v4225 = vpack.c.b16 %v4161, %v4159
    %v4226 = vpack.c.b16 %v4162, %v4160
    %v4227 = vpack.c.b16 %v4165, %v4163
    %v4228 = vpack.c.b16 %v4166, %v4164
    %v4229 = vpack.c.b16 %v4169, %v4167
    %v4230 = vpack.c.b16 %v4170, %v4168
    %v4231 = vpack.c.b16 %v4173, %v4171
    %v4232 = vpack.c.b16 %v4174, %v4172
    %v4233 = vpack.c.b16 %v4177, %v4175
    %v4234 = vpack.c.b16 %v4178, %v4176
    %v4235 = vpack.c.b16 %v4181, %v4179
    %v4236 = vpack.c.b16 %v4182, %v4180
    %v4237 = vpack.c.b16 %v4185, %v4183
    %v4238 = vpack.c.b16 %v4186, %v4184
    %v4239 = vpack.c.b16 %v4189, %v4187
    %v4240 = vpack.c.b16 %v4190, %v4188
    %v4241 = vpack.c.b16 %v4193, %v4191
    %v4242 = vpack.c.b16 %v4194, %v4192
    %v4243 = vpack.c.b16 %v4197, %v4195
    %v4244 = vpack.c.b16 %v4198, %v4196
    %v4245 = vpack.c.b16 %v4201, %v4199
    %v4246 = vpack.c.b16 %v4202, %v4200
    %v4247 = vpack.c.b16 %v4205, %v4203
    %v4248 = vpack.c.b16 %v4206, %v4204
    %v4249 = vpack.c.b16 %v4209, %v4207
    %v4250 = vpack.c.b16 %v4210, %v4208
    %v4251 = vpack.c.b16 %v4213, %v4211
    %v4252 = vpack.c.b16 %v4214, %v4212
    %v4253 = vpack.c.b16 %v4217, %v4215
    %v4254 = vpack.c.b16 %v4218, %v4216
    %v4292 = vsel %vm2028, %v4073, 0
    %4294 = vmatprep.subr.bf16.mxu0 %v4220
    %4295 = vmatpush1.bf16.msra.mxu0 %v4219
    %4296 = vmatprep.subr.bf16.mxu0 %v4222
    %4297 = vmatpush1.bf16.msra.mxu0 %v4221
    %4298 = vmatprep.subr.bf16.mxu0 %v4224
    %4299 = vmatpush1.bf16.msra.mxu0 %v4223
    %4300 = vmatprep.subr.bf16.mxu0 %v4226
    %4301 = vmatpush1.bf16.msra.mxu0 %v4225
    %4302 = vmatprep.subr.bf16.mxu0 %v4228
    %4303 = vmatpush1.bf16.msra.mxu0 %v4227
    %4304 = vmatprep.subr.bf16.mxu0 %v4230
    %4305 = vmatpush1.bf16.msra.mxu0 %v4229
    %4306 = vmatprep.subr.bf16.mxu0 %v4232
    %4307 = vmatpush1.bf16.msra.mxu0 %v4231
    %4308 = vmatprep.subr.bf16.mxu0 %v4234
    %4309 = vmatpush1.bf16.msra.mxu0 %v4233
    %4310 = vmatprep.subr.bf16.mxu0 %v4236
    %4311 = vmatpush1.bf16.msra.mxu0 %v4235
    %4312 = vmatprep.subr.bf16.mxu0 %v4238
    %4313 = vmatpush1.bf16.msra.mxu0 %v4237
    %4314 = vmatprep.subr.bf16.mxu0 %v4240
    %4315 = vmatpush1.bf16.msra.mxu0 %v4239
    %4316 = vmatprep.subr.bf16.mxu0 %v4242
    %4317 = vmatpush1.bf16.msra.mxu0 %v4241
    %4318 = vmatprep.subr.bf16.mxu0 %v4244
    %4319 = vmatpush1.bf16.msra.mxu0 %v4243
    %4320 = vmatprep.subr.bf16.mxu0 %v4246
    %4321 = vmatpush1.bf16.msra.mxu0 %v4245
    %4322 = vmatprep.subr.bf16.mxu0 %v4248
    %4323 = vmatpush1.bf16.msra.mxu0 %v4247
    %4324 = vmatprep.subr.bf16.mxu0 %v4250
    %4325 = vmatpush1.bf16.msra.mxu0 %v4249
    %4326 = vmatprep.mubr.bf16.mxu0 %v4072
    %4327 = vmatmul.mubr.bf16.gmra.mrb[0].mxu0 %v4071
    %v4328 = vpop.f32.mrb[0].mxu0
    %v4329 = vadd.f32 0.0, %v4328
    %v4330 = vpop.f32.mrb[0].mxu0
    %v4331 = vadd.f32 0.0, %v4330
    %v4332 = vpop.f32.mrb[0].mxu0
    %v4333 = vadd.f32 0.0, %v4332
    %v4334 = vpop.f32.mrb[0].mxu0
    %v4335 = vadd.f32 0.0, %v4334
    %4336 = vdwg.mxu0
    %4337 = vmatprep.subr.bf16.mxu0 %v4252
    %4338 = vmatpush1.bf16.msra.mxu0 %v4251
    %4339 = vmatprep.subr.bf16.mxu0 %v4254
    %4340 = vmatpush1.bf16.msra.mxu0 %v4253
    %4341 = vmatprep.subr.bf16.mxu0 0
    %4342 = vmatpush1.bf16.msra.mxu0 0
    %4343 = vmatprep.subr.bf16.mxu0 0
    %4344 = vmatpush1.bf16.msra.mxu0 0
    %4345 = vmatprep.subr.bf16.mxu0 0
    %4346 = vmatpush1.bf16.msra.mxu0 0
    %4347 = vmatprep.subr.bf16.mxu0 0
    %4348 = vmatpush1.bf16.msra.mxu0 0
    %4349 = vmatprep.subr.bf16.mxu0 0
    %4350 = vmatpush1.bf16.msra.mxu0 0
    %4351 = vmatprep.subr.bf16.mxu0 0
    %4352 = vmatpush1.bf16.msra.mxu0 0
    %4353 = vmatprep.subr.bf16.mxu0 0
    %4354 = vmatpush1.bf16.msra.mxu0 0
    %4355 = vmatprep.subr.bf16.mxu0 0
    %4356 = vmatpush1.bf16.msra.mxu0 0
    %4357 = vmatprep.subr.bf16.mxu0 0
    %4358 = vmatpush1.bf16.msra.mxu0 0
    %4359 = vmatprep.subr.bf16.mxu0 0
    %4360 = vmatpush1.bf16.msra.mxu0 0
    %4361 = vmatprep.subr.bf16.mxu0 0
    %4362 = vmatpush1.bf16.msra.mxu0 0
    %4363 = vmatprep.subr.bf16.mxu0 0
    %4364 = vmatpush1.bf16.msra.mxu0 0
    %4365 = vmatprep.subr.bf16.mxu0 0
    %4366 = vmatpush1.bf16.msra.mxu0 0
    %4367 = vmatprep.subr.bf16.mxu0 0
    %4368 = vmatpush1.bf16.msra.mxu0 0
    %4369 = vmatprep.mubr.bf16.mxu0 0
    %4370 = vmatmul.mubr.bf16.gmra.mrb[0].mxu0 %v4292
    %v4371 = vpop.f32.mrb[0].mxu0
    %v4372 = vadd.f32 %v4329, %v4371
    %v4373 = vpop.f32.mrb[0].mxu0
    %v4374 = vadd.f32 %v4331, %v4373
    %v4375 = vpop.f32.mrb[0].mxu0
    %v4376 = vadd.f32 %v4333, %v4375
    %v4377 = vpop.f32.mrb[0].mxu0
    %v4378 = vadd.f32 %v4335, %v4377
    %4379 = vdwg.mxu0
    %v4380 = vadd.f32 %v3972, %v4372
    %v4381 = vadd.f32 %v3973, %v4374
    %v4382 = vadd.f32 %v3974, %v4376
    %v4383 = vadd.f32 %v3975, %v4378
    %vm4384 = vcmask 1045504
    %v4385 = vsel %vm4384, %v4382, 0.0
    %v4386 = vadd.f32 %v4380, %v4385
    %v4387 = vrot.slane %v4386, 4
    %v4388 = vadd.f32 %v4386, %v4387
    %v4389 = vrot.slane %v4388, 2
    %v4390 = vadd.f32 %v4388, %v4389
    %v4391 = vrot.slane %v4390, 1
    %v4392 = vadd.f32 %v4390, %v4391
    %vm4393 = vcmask 785408
    %v4394 = vsel %vm4393, %v4381, 0.0
    %vm4395 = vcmask 783360
    %v4396 = vsel %vm4395, %v4383, 0.0
    %v4397 = vadd.f32 %v4394, %v4396
    %v4398 = vrot.slane %v4397, 4
    %v4399 = vadd.f32 %v4397, %v4398
    %v4400 = vrot.slane %v4399, 2
    %v4401 = vadd.f32 %v4399, %v4400
    %v4402 = vrot.slane %v4401, 1
    %v4403 = vadd.f32 %v4401, %v4402
    %v4404 = vmul.f32 %v4380, %v4380
    %v4405 = vmul.f32 %v4381, %v4381
    %v4406 = vmul.f32 %v4382, %v4382
    %v4407 = vmul.f32 %v4383, %v4383
    %v4408 = vsel %vm4384, %v4406, 0.0
    %v4409 = vadd.f32 %v4404, %v4408
    %v4410 = vrot.slane %v4409, 4
    %v4411 = vadd.f32 %v4409, %v4410
    %v4412 = vrot.slane %v4411, 2
    %v4413 = vadd.f32 %v4411, %v4412
    %v4414 = vrot.slane %v4413, 1
    %v4415 = vadd.f32 %v4413, %v4414
    %v4416 = vsel %vm4393, %v4405, 0.0
    %v4417 = vsel %vm4395, %v4407, 0.0
    %v4418 = vadd.f32 %v4416, %v4417
    %v4419 = vrot.slane %v4418, 4
    %v4420 = vadd.f32 %v4418, %v4419
    %v4421 = vrot.slane %v4420, 2
    %v4422 = vadd.f32 %v4420, %v4421
    %v4423 = vrot.slane %v4422, 1
    %v4424 = vadd.f32 %v4422, %v4423
    %4426 = vrot.lane.b32.xlu0 %v4392, 96
    %v4427 = vpop.permute.xlu0 %4426
    %v4429 = vadd.f32 %v4392, %v4427
    %4431 = vrot.lane.b32.xlu0 %v4415, 96
    %v4432 = vpop.permute.xlu0 %4431
    %v4434 = vadd.f32 %v4415, %v4432
    %4435 = vrot.lane.b32.xlu0 %v4392, 64
    %v4436 = vpop.permute.xlu0 %4435
    %v4438 = vadd.f32 %v4429, %v4436
    %4439 = vrot.lane.b32.xlu0 %v4415, 64
    %v4440 = vpop.permute.xlu0 %4439
    %v4442 = vadd.f32 %v4434, %v4440
    %4443 = vrot.lane.b32.xlu0 %v4392, 32
    %v4444 = vpop.permute.xlu0 %4443
    %v4446 = vadd.f32 %v4438, %v4444
    %4447 = vrot.lane.b32.xlu0 %v4415, 32
    %v4448 = vpop.permute.xlu0 %4447
    %v4450 = vadd.f32 %v4442, %v4448
    %v4451 = vadd.f32 %v4446, %v4403
    %v4452 = vadd.f32 %v4450, %v4424
    %4454 = vrot.lane.b32.xlu0 %v4403, 96
    %v4455 = vpop.permute.xlu0 %4454
    %v4457 = vadd.f32 %v4451, %v4455
    %4459 = vrot.lane.b32.xlu0 %v4424, 96
    %v4460 = vpop.permute.xlu0 %4459
    %v4462 = vadd.f32 %v4452, %v4460
    %4463 = vrot.lane.b32.xlu0 %v4403, 64
    %v4464 = vpop.permute.xlu0 %4463
    %v4466 = vadd.f32 %v4457, %v4464
    %4467 = vrot.lane.b32.xlu0 %v4424, 64
    %v4468 = vpop.permute.xlu0 %4467
    %v4470 = vadd.f32 %v4462, %v4468
    %v4471 = vmul.f32 %v4466, 0.010204081
    %v4472 = vmul.f32 %v4470, 0.010204081
    %v4473 = vmul.f32 %v4471, %v4471
    %v4474 = vsub.f32 %v4472, %v4473
    %v4475 = vld [vmem:[%s7] sm:$0x1]
    %v4476 = vadd.f32 %v4474, 1e-05
    %v4477 = vrsqrt.pop %v4476
    %v4478 = vmul.f32 %v4475, %v4477
    %v4479 = vld [vmem:[%s8] sm:$0x1]
    %v4480 = vmul.f32 %v4471, %v4478
    %v4481 = vsub.f32 %v4479, %v4480
    %v4483 = vlaneseq
    %v4484 = vshrl.u32 %v4483, 7
    %v4485 = vsub.s32 0, %v4484
    %v4486 = vrot.slane %v4478, %v4485
    %4487 = vrot.lane.b32.xlu0 %v4486, 32
    %v4488 = vpop.permute.xlu0 %4487
    %v4490 = vsel %vm2028, %v4478, %v4488
    %4492 = vrot.lane.b32.xlu0 %v4490, 32
    %v4493 = vpop.permute.xlu0 %4492
    %v4495 = vsel %vm2028, %v4478, %v4493
    %4496 = vrot.lane.b32.xlu0 %v4490, 64
    %v4497 = vpop.permute.xlu0 %4496
    %v4499 = vsel %vm2257, %v4490, %v4497
    %4501 = vrot.lane.b32.xlu0 %v4499, 96
    %v4502 = vpop.permute.xlu0 %4501
    %v4504 = vsel %vm4393, %v4495, %v4502
    %v4506 = vlaneseq
    %v4507 = vshrl.u32 %v4506, 7
    %v4508 = vsub.s32 0, %v4507
    %v4509 = vrot.slane %v4481, %v4508
    %4510 = vrot.lane.b32.xlu0 %v4509, 32
    %v4511 = vpop.permute.xlu0 %4510
    %v4513 = vsel %vm2028, %v4481, %v4511
    %4515 = vrot.lane.b32.xlu0 %v4513, 32
    %v4516 = vpop.permute.xlu0 %4515
    %v4518 = vsel %vm2028, %v4481, %v4516
    %4519 = vrot.lane.b32.xlu0 %v4513, 64
    %v4520 = vpop.permute.xlu0 %4519
    %v4522 = vsel %vm2257, %v4513, %v4520
    %4524 = vrot.lane.b32.xlu0 %v4522, 96
    %v4525 = vpop.permute.xlu0 %4524
    %v4527 = vsel %vm4393, %v4518, %v4525
    %v4528 = vlaneseq
    %v4529 = vshrl.u32 %v4528, 7
    %v4530 = vsub.s32 0, %v4529
    %v4531 = vrot.slane %v4504, %v4530
    %v4532 = vlaneseq
    %v4533 = vshrl.u32 %v4532, 7
    %v4534 = vsub.s32 0, %v4533
    %v4535 = vrot.slane %v4502, %v4534
    %v4536 = vmul.f32 %v4380, %v4531
    %v4537 = vmul.f32 %v4381, %v4535
    %v4538 = vmul.f32 %v4382, %v4531
    %v4539 = vmul.f32 %v4383, %v4535
    %v4540 = vlaneseq
    %v4541 = vshrl.u32 %v4540, 7
    %v4542 = vsub.s32 0, %v4541
    %v4543 = vrot.slane %v4527, %v4542
    %v4544 = vlaneseq
    %v4545 = vshrl.u32 %v4544, 7
    %v4546 = vsub.s32 0, %v4545
    %v4547 = vrot.slane %v4525, %v4546
    %v4548 = vadd.f32 %v4536, %v4543
    %v4549 = vadd.f32 %v4537, %v4547
    %v4550 = vadd.f32 %v4538, %v4543
    %v4551 = vadd.f32 %v4539, %v4547
    %v4552 = vpack.c.bf16 %v4550, %v4548
    %v4553 = vpack.c.bf16 %v4551, %v4549
    %v4554 = vld [vmem:[%s9] sm:$0x3]
    %vm4555 = vcmask 113664
    %v4557 = vsel %vm4555, %v4554, 0
    %vm4559 = vcmask 1046528
    %v4561 = vsel %vm4559, %v4552, 0
    %v4564 = vsel %vm4559, %v4553, 0
    %4566 = vmatprep.subr.bf16.mxu0 %v4564
    %4567 = vmatpush1.bf16.msra.mxu0 %v4561
    %4568 = vmatprep.subr.bf16.mxu0 0
    %4569 = vmatpush1.bf16.msra.mxu0 0
    %4570 = vmatprep.subr.bf16.mxu0 0
    %4571 = vmatpush1.bf16.msra.mxu0 0
    %4572 = vmatprep.subr.bf16.mxu0 0
    %4573 = vmatpush1.bf16.msra.mxu0 0
    %4574 = vmatprep.subr.bf16.mxu0 0
    %4575 = vmatpush1.bf16.msra.mxu0 0
    %4576 = vmatprep.subr.bf16.mxu0 0
    %4577 = vmatpush1.bf16.msra.mxu0 0
    %4578 = vmatprep.subr.bf16.mxu0 0
    %4579 = vmatpush1.bf16.msra.mxu0 0
    %4580 = vmatprep.subr.bf16.mxu0 0
    %4581 = vmatpush1.bf16.msra.mxu0 0
    %4582 = vmatprep.subr.bf16.mxu0 0
    %4583 = vmatpush1.bf16.msra.mxu0 0
    %4584 = vmatprep.subr.bf16.mxu0 0
    %4585 = vmatpush1.bf16.msra.mxu0 0
    %4586 = vmatprep.subr.bf16.mxu0 0
    %4587 = vmatpush1.bf16.msra.mxu0 0
    %4588 = vmatprep.subr.bf16.mxu0 0
    %4589 = vmatpush1.bf16.msra.mxu0 0
    %4590 = vmatprep.subr.bf16.mxu0 0
    %4591 = vmatpush1.bf16.msra.mxu0 0
    %4592 = vmatprep.subr.bf16.mxu0 0
    %4593 = vmatpush1.bf16.msra.mxu0 0
    %4594 = vmatprep.subr.bf16.mxu0 0
    %4595 = vmatpush1.bf16.msra.mxu0 0
    %4596 = vmatprep.subr.bf16.mxu0 0
    %4597 = vmatpush1.bf16.msra.mxu0 0
    %4598 = vmatprep.mubr.bf16.mxu0 0
    %4599 = vmatmul.mubr.bf16.gmra.mrb[0].mxu0 %v4557
    %v4600 = vpop.f32.mrb[0].mxu0
    %v4601 = vadd.f32 0.0, %v4600
    %v4602 = vpop.f32.mrb[0].mxu0
    %v4603 = vadd.f32 0.0, %v4602
    %v4604 = vpop.f32.mrb[0].mxu0
    %v4605 = vpop.f32.mrb[0].mxu0
    %4606 = vdwg.mxu0
    %v4607 = vpack.c.bf16 %v4601, %v4601
    %v4608 = vpack.c.bf16 %v4603, %v4603
    %v4609 = vld [vmem:[%s10] sm:$0xf]
    %v4610 = vld [vmem:[%s10 + $0x4] sm:$0xf]
    %v4611 = vld [vmem:[%s10 + $0x8] sm:$0xf]
    %v4612 = vld [vmem:[%s10 + $0xc] sm:$0xf]
    %v4613 = vld [vmem:[%s10 + $0x10] sm:$0xf]
    %v4614 = vld [vmem:[%s10 + $0x14] sm:$0xf]
    %v4615 = vld [vmem:[%s10 + $0x18] sm:$0xf]
    %v4616 = vld [vmem:[%s10 + $0x1c] sm:$0xf]
    %v4617 = vld [vmem:[%s10 + $0x20] sm:$0xf]
    %v4618 = vld [vmem:[%s10 + $0x24] sm:$0xf]
    %v4619 = vld [vmem:[%s10 + $0x28] sm:$0xf]
    %v4620 = vld [vmem:[%s10 + $0x2c] sm:$0xf]
    %v4621 = vld [vmem:[%s10 + $0x30] sm:$0xf]
    %v4622 = vld [vmem:[%s10 + $0x34] sm:$0xf]
    %v4623 = vld [vmem:[%s10 + $0x38] sm:$0xf]
    %v4624 = vld [vmem:[%s10 + $0x3c] sm:$0xf]
    %v4625 = vld [vmem:[%s10 + $0x40] sm:$0xf]
    %v4626 = vld [vmem:[%s10 + $0x44] sm:$0xf]
    %v4627 = vld [vmem:[%s10 + $0x48] sm:$0xf]
    %v4628 = vld [vmem:[%s10 + $0x4c] sm:$0xf]
    %v4629 = vld [vmem:[%s10 + $0x50] sm:$0xf]
    %v4630 = vld [vmem:[%s10 + $0x54] sm:$0xf]
    %v4631 = vld [vmem:[%s10 + $0x58] sm:$0xf]
    %v4632 = vld [vmem:[%s10 + $0x5c] sm:$0xf]
    %v4633 = vld [vmem:[%s10 + $0x60] sm:$0xf]
    %v4634 = vld [vmem:[%s10 + $0x64] sm:$0xf]
    %v4635 = vld [vmem:[%s10 + $0x68] sm:$0xf]
    %v4636 = vld [vmem:[%s10 + $0x6c] sm:$0xf]
    %s4637 = scalar_lea.vmem %s9, 2
    %v4638 = vld [vmem:[%s4637] sm:$0x3]
    %v4640 = vsel %vm4555, %v4638, 0
    %4642 = vmatprep.subr.bf16.mxu0 %v4564
    %4643 = vmatpush1.bf16.msra.mxu0 %v4561
    %4644 = vmatprep.subr.bf16.mxu0 0
    %4645 = vmatpush1.bf16.msra.mxu0 0
    %4646 = vmatprep.subr.bf16.mxu0 0
    %4647 = vmatpush1.bf16.msra.mxu0 0
    %4648 = vmatprep.subr.bf16.mxu0 0
    %4649 = vmatpush1.bf16.msra.mxu0 0
    %4650 = vmatprep.subr.bf16.mxu0 0
    %4651 = vmatpush1.bf16.msra.mxu0 0
    %4652 = vmatprep.subr.bf16.mxu0 0
    %4653 = vmatpush1.bf16.msra.mxu0 0
    %4654 = vmatprep.subr.bf16.mxu0 0
    %4655 = vmatpush1.bf16.msra.mxu0 0
    %4656 = vmatprep.subr.bf16.mxu0 0
    %4657 = vmatpush1.bf16.msra.mxu0 0
    %4658 = vmatprep.subr.bf16.mxu0 0
    %4659 = vmatpush1.bf16.msra.mxu0 0
    %4660 = vmatprep.subr.bf16.mxu0 0
    %4661 = vmatpush1.bf16.msra.mxu0 0
    %4662 = vmatprep.subr.bf16.mxu0 0
    %4663 = vmatpush1.bf16.msra.mxu0 0
    %4664 = vmatprep.subr.bf16.mxu0 0
    %4665 = vmatpush1.bf16.msra.mxu0 0
    %4666 = vmatprep.subr.bf16.mxu0 0
    %4667 = vmatpush1.bf16.msra.mxu0 0
    %4668 = vmatprep.subr.bf16.mxu0 0
    %4669 = vmatpush1.bf16.msra.mxu0 0
    %4670 = vmatprep.subr.bf16.mxu0 0
    %4671 = vmatpush1.bf16.msra.mxu0 0
    %4672 = vmatprep.subr.bf16.mxu0 0
    %4673 = vmatpush1.bf16.msra.mxu0 0
    %4674 = vmatprep.mubr.bf16.mxu0 0
    %4675 = vmatmul.mubr.bf16.gmra.mrb[0].mxu0 %v4640
    %v4676 = vpop.f32.mrb[0].mxu0
    %v4677 = vadd.f32 0.0, %v4676
    %v4678 = vpop.f32.mrb[0].mxu0
    %v4679 = vadd.f32 0.0, %v4678
    %v4680 = vpop.f32.mrb[0].mxu0
    %v4681 = vpop.f32.mrb[0].mxu0
    %4682 = vdwg.mxu0
    %v4683 = vpack.c.bf16 %v4677, %v4677
    %v4684 = vpack.c.bf16 %v4679, %v4679
    %s4685 = scalar_lea.vmem %s10, 112
    %v4686 = vld [vmem:[%s4685] sm:$0xf]
    %v4687 = vld [vmem:[%s4685 + $0x4] sm:$0xf]
    %v4688 = vld [vmem:[%s4685 + $0x8] sm:$0xf]
    %v4689 = vld [vmem:[%s4685 + $0xc] sm:$0xf]
    %v4690 = vld [vmem:[%s4685 + $0x10] sm:$0xf]
    %v4691 = vld [vmem:[%s4685 + $0x14] sm:$0xf]
    %v4692 = vld [vmem:[%s4685 + $0x18] sm:$0xf]
    %v4693 = vld [vmem:[%s4685 + $0x1c] sm:$0xf]
    %v4694 = vld [vmem:[%s4685 + $0x20] sm:$0xf]
    %v4695 = vld [vmem:[%s4685 + $0x24] sm:$0xf]
    %v4696 = vld [vmem:[%s4685 + $0x28] sm:$0xf]
    %v4697 = vld [vmem:[%s4685 + $0x2c] sm:$0xf]
    %v4698 = vld [vmem:[%s4685 + $0x30] sm:$0xf]
    %v4699 = vld [vmem:[%s4685 + $0x34] sm:$0xf]
    %v4700 = vld [vmem:[%s4685 + $0x38] sm:$0xf]
    %v4701 = vld [vmem:[%s4685 + $0x3c] sm:$0xf]
    %v4702 = vld [vmem:[%s4685 + $0x40] sm:$0xf]
    %v4703 = vld [vmem:[%s4685 + $0x44] sm:$0xf]
    %v4704 = vld [vmem:[%s4685 + $0x48] sm:$0xf]
    %v4705 = vld [vmem:[%s4685 + $0x4c] sm:$0xf]
    %v4706 = vld [vmem:[%s4685 + $0x50] sm:$0xf]
    %v4707 = vld [vmem:[%s4685 + $0x54] sm:$0xf]
    %v4708 = vld [vmem:[%s4685 + $0x58] sm:$0xf]
    %v4709 = vld [vmem:[%s4685 + $0x5c] sm:$0xf]
    %v4710 = vld [vmem:[%s4685 + $0x60] sm:$0xf]
    %v4711 = vld [vmem:[%s4685 + $0x64] sm:$0xf]
    %v4712 = vld [vmem:[%s4685 + $0x68] sm:$0xf]
    %v4713 = vld [vmem:[%s4685 + $0x6c] sm:$0xf]
    %v4742 = vunpack.c.l.b16 %v4686
    %v4743 = vunpack.c.l.b16 %v4687
    %v4744 = vunpack.c.l.b16 %v4688
    %v4745 = vunpack.c.l.b16 %v4689
    %v4746 = vunpack.c.l.b16 %v4690
    %v4747 = vunpack.c.l.b16 %v4691
    %v4748 = vunpack.c.l.b16 %v4692
    %v4749 = vunpack.c.l.b16 %v4693
    %v4750 = vunpack.c.l.b16 %v4694
    %v4751 = vunpack.c.l.b16 %v4695
    %v4752 = vunpack.c.l.b16 %v4696
    %v4753 = vunpack.c.l.b16 %v4697
    %v4754 = vunpack.c.l.b16 %v4698
    %v4755 = vunpack.c.l.b16 %v4699
    %v4756 = vunpack.c.l.b16 %v4700
    %v4757 = vunpack.c.l.b16 %v4701
    %v4758 = vunpack.c.l.b16 %v4702
    %v4759 = vunpack.c.l.b16 %v4703
    %v4760 = vunpack.c.l.b16 %v4704
    %v4761 = vunpack.c.l.b16 %v4705
    %v4762 = vunpack.c.l.b16 %v4706
    %v4763 = vunpack.c.l.b16 %v4707
    %v4764 = vunpack.c.l.b16 %v4708
    %v4765 = vunpack.c.l.b16 %v4709
    %v4766 = vunpack.c.l.b16 %v4710
    %v4767 = vunpack.c.l.b16 %v4711
    %v4768 = vunpack.c.l.b16 %v4712
    %v4769 = vunpack.c.l.b16 %v4713
    %v4770 = vpack.c.b16 %v4743, %v4742
    %v4771 = vpack.c.b16 %v4745, %v4744
    %v4772 = vpack.c.b16 %v4747, %v4746
    %v4773 = vpack.c.b16 %v4749, %v4748
    %v4774 = vpack.c.b16 %v4751, %v4750
    %v4775 = vpack.c.b16 %v4753, %v4752
    %v4776 = vpack.c.b16 %v4755, %v4754
    %v4777 = vpack.c.b16 %v4757, %v4756
    %v4778 = vpack.c.b16 %v4759, %v4758
    %v4779 = vpack.c.b16 %v4761, %v4760
    %v4780 = vpack.c.b16 %v4763, %v4762
    %v4781 = vpack.c.b16 %v4765, %v4764
    %v4782 = vpack.c.b16 %v4767, %v4766
    %v4783 = vpack.c.b16 %v4769, %v4768
    %v4799 = vsel %vm4393, %v4684, 0
    %4801 = vmatprep.subr.bf16.mxu0 0
    %4802 = vmatpush1.bf16.msra.mxu0 %v4770
    %4803 = vmatprep.subr.bf16.mxu0 0
    %4804 = vmatpush1.bf16.msra.mxu0 %v4771
    %4805 = vmatprep.subr.bf16.mxu0 0
    %4806 = vmatpush1.bf16.msra.mxu0 %v4772
    %4807 = vmatprep.subr.bf16.mxu0 0
    %4808 = vmatpush1.bf16.msra.mxu0 %v4773
    %4809 = vmatprep.subr.bf16.mxu0 0
    %4810 = vmatpush1.bf16.msra.mxu0 %v4774
    %4811 = vmatprep.subr.bf16.mxu0 0
    %4812 = vmatpush1.bf16.msra.mxu0 %v4775
    %4813 = vmatprep.subr.bf16.mxu0 0
    %4814 = vmatpush1.bf16.msra.mxu0 %v4776
    %4815 = vmatprep.subr.bf16.mxu0 0
    %4816 = vmatpush1.bf16.msra.mxu0 %v4777
    %4817 = vmatprep.subr.bf16.mxu0 0
    %4818 = vmatpush1.bf16.msra.mxu0 %v4778
    %4819 = vmatprep.subr.bf16.mxu0 0
    %4820 = vmatpush1.bf16.msra.mxu0 %v4779
    %4821 = vmatprep.subr.bf16.mxu0 0
    %4822 = vmatpush1.bf16.msra.mxu0 %v4780
    %4823 = vmatprep.subr.bf16.mxu0 0
    %4824 = vmatpush1.bf16.msra.mxu0 %v4781
    %4825 = vmatprep.subr.bf16.mxu0 0
    %4826 = vmatpush1.bf16.msra.mxu0 %v4782
    %4827 = vmatprep.subr.bf16.mxu0 0
    %4828 = vmatpush1.bf16.msra.mxu0 %v4783
    %4829 = vmatprep.subr.bf16.mxu0 0
    %4830 = vmatpush1.bf16.msra.mxu0 0
    %4831 = vmatprep.subr.bf16.mxu0 0
    %4832 = vmatpush1.bf16.msra.mxu0 0
    %4833 = vmatprep.mubr.bf16.mxu0 %v4799
    %4834 = vmatmul.mubr.bf16.gmra.mrb[0].mxu0 %v4683
    %v4835 = vpop.f32.mrb[0].mxu0
    %v4836 = vadd.f32 0.0, %v4835
    %v4837 = vpop.f32.mrb[0].mxu0
    %v4838 = vpop.f32.mrb[0].mxu0
    %v4839 = vpop.f32.mrb[0].mxu0
    %4840 = vdwg.mxu0
    %v4869 = vunpack.c.l.b16 %v4609
    %v4870 = vunpack.c.l.b16 %v4610
    %v4871 = vunpack.c.l.b16 %v4611
    %v4872 = vunpack.c.l.b16 %v4612
    %v4873 = vunpack.c.l.b16 %v4613
    %v4874 = vunpack.c.l.b16 %v4614
    %v4875 = vunpack.c.l.b16 %v4615
    %v4876 = vunpack.c.l.b16 %v4616
    %v4877 = vunpack.c.l.b16 %v4617
    %v4878 = vunpack.c.l.b16 %v4618
    %v4879 = vunpack.c.l.b16 %v4619
    %v4880 = vunpack.c.l.b16 %v4620
    %v4881 = vunpack.c.l.b16 %v4621
    %v4882 = vunpack.c.l.b16 %v4622
    %v4883 = vunpack.c.l.b16 %v4623
    %v4884 = vunpack.c.l.b16 %v4624
    %v4885 = vunpack.c.l.b16 %v4625
    %v4886 = vunpack.c.l.b16 %v4626
    %v4887 = vunpack.c.l.b16 %v4627
    %v4888 = vunpack.c.l.b16 %v4628
    %v4889 = vunpack.c.l.b16 %v4629
    %v4890 = vunpack.c.l.b16 %v4630
    %v4891 = vunpack.c.l.b16 %v4631
    %v4892 = vunpack.c.l.b16 %v4632
    %v4893 = vunpack.c.l.b16 %v4633
    %v4894 = vunpack.c.l.b16 %v4634
    %v4895 = vunpack.c.l.b16 %v4635
    %v4896 = vunpack.c.l.b16 %v4636
    %v4897 = vpack.c.b16 %v4870, %v4869
    %v4898 = vpack.c.b16 %v4872, %v4871
    %v4899 = vpack.c.b16 %v4874, %v4873
    %v4900 = vpack.c.b16 %v4876, %v4875
    %v4901 = vpack.c.b16 %v4878, %v4877
    %v4902 = vpack.c.b16 %v4880, %v4879
    %v4903 = vpack.c.b16 %v4882, %v4881
    %v4904 = vpack.c.b16 %v4884, %v4883
    %v4905 = vpack.c.b16 %v4886, %v4885
    %v4906 = vpack.c.b16 %v4888, %v4887
    %v4907 = vpack.c.b16 %v4890, %v4889
    %v4908 = vpack.c.b16 %v4892, %v4891
    %v4909 = vpack.c.b16 %v4894, %v4893
    %v4910 = vpack.c.b16 %v4896, %v4895
    %v4926 = vsel %vm4393, %v4608, 0
    %4928 = vmatprep.subr.bf16.mxu0 0
    %4929 = vmatpush1.bf16.msra.mxu0 %v4897
    %4930 = vmatprep.subr.bf16.mxu0 0
    %4931 = vmatpush1.bf16.msra.mxu0 %v4898
    %4932 = vmatprep.subr.bf16.mxu0 0
    %4933 = vmatpush1.bf16.msra.mxu0 %v4899
    %4934 = vmatprep.subr.bf16.mxu0 0
    %4935 = vmatpush1.bf16.msra.mxu0 %v4900
    %4936 = vmatprep.subr.bf16.mxu0 0
    %4937 = vmatpush1.bf16.msra.mxu0 %v4901
    %4938 = vmatprep.subr.bf16.mxu0 0
    %4939 = vmatpush1.bf16.msra.mxu0 %v4902
    %4940 = vmatprep.subr.bf16.mxu0 0
    %4941 = vmatpush1.bf16.msra.mxu0 %v4903
    %4942 = vmatprep.subr.bf16.mxu0 0
    %4943 = vmatpush1.bf16.msra.mxu0 %v4904
    %4944 = vmatprep.subr.bf16.mxu0 0
    %4945 = vmatpush1.bf16.msra.mxu0 %v4905
    %4946 = vmatprep.subr.bf16.mxu0 0
    %4947 = vmatpush1.bf16.msra.mxu0 %v4906
    %4948 = vmatprep.subr.bf16.mxu0 0
    %4949 = vmatpush1.bf16.msra.mxu0 %v4907
    %4950 = vmatprep.subr.bf16.mxu0 0
    %4951 = vmatpush1.bf16.msra.mxu0 %v4908
    %4952 = vmatprep.subr.bf16.mxu0 0
    %4953 = vmatpush1.bf16.msra.mxu0 %v4909
    %4954 = vmatprep.subr.bf16.mxu0 0
    %4955 = vmatpush1.bf16.msra.mxu0 %v4910
    %4956 = vmatprep.subr.bf16.mxu0 0
    %4957 = vmatpush1.bf16.msra.mxu0 0
    %4958 = vmatprep.subr.bf16.mxu0 0
    %4959 = vmatpush1.bf16.msra.mxu0 0
    %4960 = vmatprep.mubr.bf16.mxu0 %v4926
    %4961 = vmatmul.mubr.bf16.gmra.mrb[0].mxu0 %v4607
    %v4962 = vpop.f32.mrb[0].mxu0
    %v4963 = vadd.f32 %v4836, %v4962
    %v4964 = vpop.f32.mrb[0].mxu0
    %v4965 = vpop.f32.mrb[0].mxu0
    %v4966 = vpop.f32.mrb[0].mxu0
    %4967 = vdwg.mxu0
    %s4968 = scalar_lea.vmem %s9, 4
    %v4969 = vld [vmem:[%s4968] sm:$0x3]
    %v4971 = vsel %vm4555, %v4969, 0
    %4973 = vmatprep.subr.bf16.mxu0 %v4564
    %4974 = vmatpush1.bf16.msra.mxu0 %v4561
    %4975 = vmatprep.subr.bf16.mxu0 0
    %4976 = vmatpush1.bf16.msra.mxu0 0
    %4977 = vmatprep.subr.bf16.mxu0 0
    %4978 = vmatpush1.bf16.msra.mxu0 0
    %4979 = vmatprep.subr.bf16.mxu0 0
    %4980 = vmatpush1.bf16.msra.mxu0 0
    %4981 = vmatprep.subr.bf16.mxu0 0
    %4982 = vmatpush1.bf16.msra.mxu0 0
    %4983 = vmatprep.subr.bf16.mxu0 0
    %4984 = vmatpush1.bf16.msra.mxu0 0
    %4985 = vmatprep.subr.bf16.mxu0 0
    %4986 = vmatpush1.bf16.msra.mxu0 0
    %4987 = vmatprep.subr.bf16.mxu0 0
    %4988 = vmatpush1.bf16.msra.mxu0 0
    %4989 = vmatprep.subr.bf16.mxu0 0
    %4990 = vmatpush1.bf16.msra.mxu0 0
    %4991 = vmatprep.subr.bf16.mxu0 0
    %4992 = vmatpush1.bf16.msra.mxu0 0
    %4993 = vmatprep.subr.bf16.mxu0 0
    %4994 = vmatpush1.bf16.msra.mxu0 0
    %4995 = vmatprep.subr.bf16.mxu0 0
    %4996 = vmatpush1.bf16.msra.mxu0 0
    %4997 = vmatprep.subr.bf16.mxu0 0
    %4998 = vmatpush1.bf16.msra.mxu0 0
    %4999 = vmatprep.subr.bf16.mxu0 0
    %5000 = vmatpush1.bf16.msra.mxu0 0
    %5001 = vmatprep.subr.bf16.mxu0 0
    %5002 = vmatpush1.bf16.msra.mxu0 0
    %5003 = vmatprep.subr.bf16.mxu0 0
    %5004 = vmatpush1.bf16.msra.mxu0 0
    %5005 = vmatprep.mubr.bf16.mxu0 0
    %5006 = vmatmul.mubr.bf16.gmra.mrb[0].mxu0 %v4971
    %v5007 = vpop.f32.mrb[0].mxu0
    %v5008 = vadd.f32 0.0, %v5007
    %v5009 = vpop.f32.mrb[0].mxu0
    %v5010 = vadd.f32 0.0, %v5009
    %v5011 = vpop.f32.mrb[0].mxu0
    %v5012 = vpop.f32.mrb[0].mxu0
    %5013 = vdwg.mxu0
    %v5014 = vpack.c.bf16 %v5008, %v5008
    %v5015 = vpack.c.bf16 %v5010, %v5010
    %s5016 = scalar_lea.vmem %s10, 224
    %v5017 = vld [vmem:[%s5016] sm:$0xf]
    %v5018 = vld [vmem:[%s5016 + $0x4] sm:$0xf]
    %v5019 = vld [vmem:[%s5016 + $0x8] sm:$0xf]
    %v5020 = vld [vmem:[%s5016 + $0xc] sm:$0xf]
    %v5021 = vld [vmem:[%s5016 + $0x10] sm:$0xf]
    %v5022 = vld [vmem:[%s5016 + $0x14] sm:$0xf]
    %v5023 = vld [vmem:[%s5016 + $0x18] sm:$0xf]
    %v5024 = vld [vmem:[%s5016 + $0x1c] sm:$0xf]
    %v5025 = vld [vmem:[%s5016 + $0x20] sm:$0xf]
    %v5026 = vld [vmem:[%s5016 + $0x24] sm:$0xf]
    %v5027 = vld [vmem:[%s5016 + $0x28] sm:$0xf]
    %v5028 = vld [vmem:[%s5016 + $0x2c] sm:$0xf]
    %v5029 = vld [vmem:[%s5016 + $0x30] sm:$0xf]
    %v5030 = vld [vmem:[%s5016 + $0x34] sm:$0xf]
    %v5031 = vld [vmem:[%s5016 + $0x38] sm:$0xf]
    %v5032 = vld [vmem:[%s5016 + $0x3c] sm:$0xf]
    %v5033 = vld [vmem:[%s5016 + $0x40] sm:$0xf]
    %v5034 = vld [vmem:[%s5016 + $0x44] sm:$0xf]
    %v5035 = vld [vmem:[%s5016 + $0x48] sm:$0xf]
    %v5036 = vld [vmem:[%s5016 + $0x4c] sm:$0xf]
    %v5037 = vld [vmem:[%s5016 + $0x50] sm:$0xf]
    %v5038 = vld [vmem:[%s5016 + $0x54] sm:$0xf]
    %v5039 = vld [vmem:[%s5016 + $0x58] sm:$0xf]
    %v5040 = vld [vmem:[%s5016 + $0x5c] sm:$0xf]
    %v5041 = vld [vmem:[%s5016 + $0x60] sm:$0xf]
    %v5042 = vld [vmem:[%s5016 + $0x64] sm:$0xf]
    %v5043 = vld [vmem:[%s5016 + $0x68] sm:$0xf]
    %v5044 = vld [vmem:[%s5016 + $0x6c] sm:$0xf]
    %v5073 = vunpack.c.l.b16 %v5017
    %v5074 = vunpack.c.l.b16 %v5018
    %v5075 = vunpack.c.l.b16 %v5019
    %v5076 = vunpack.c.l.b16 %v5020
    %v5077 = vunpack.c.l.b16 %v5021
    %v5078 = vunpack.c.l.b16 %v5022
    %v5079 = vunpack.c.l.b16 %v5023
    %v5080 = vunpack.c.l.b16 %v5024
    %v5081 = vunpack.c.l.b16 %v5025
    %v5082 = vunpack.c.l.b16 %v5026
    %v5083 = vunpack.c.l.b16 %v5027
    %v5084 = vunpack.c.l.b16 %v5028
    %v5085 = vunpack.c.l.b16 %v5029
    %v5086 = vunpack.c.l.b16 %v5030
    %v5087 = vunpack.c.l.b16 %v5031
    %v5088 = vunpack.c.l.b16 %v5032
    %v5089 = vunpack.c.l.b16 %v5033
    %v5090 = vunpack.c.l.b16 %v5034
    %v5091 = vunpack.c.l.b16 %v5035
    %v5092 = vunpack.c.l.b16 %v5036
    %v5093 = vunpack.c.l.b16 %v5037
    %v5094 = vunpack.c.l.b16 %v5038
    %v5095 = vunpack.c.l.b16 %v5039
    %v5096 = vunpack.c.l.b16 %v5040
    %v5097 = vunpack.c.l.b16 %v5041
    %v5098 = vunpack.c.l.b16 %v5042
    %v5099 = vunpack.c.l.b16 %v5043
    %v5100 = vunpack.c.l.b16 %v5044
    %v5101 = vpack.c.b16 %v5074, %v5073
    %v5102 = vpack.c.b16 %v5076, %v5075
    %v5103 = vpack.c.b16 %v5078, %v5077
    %v5104 = vpack.c.b16 %v5080, %v5079
    %v5105 = vpack.c.b16 %v5082, %v5081
    %v5106 = vpack.c.b16 %v5084, %v5083
    %v5107 = vpack.c.b16 %v5086, %v5085
    %v5108 = vpack.c.b16 %v5088, %v5087
    %v5109 = vpack.c.b16 %v5090, %v5089
    %v5110 = vpack.c.b16 %v5092, %v5091
    %v5111 = vpack.c.b16 %v5094, %v5093
    %v5112 = vpack.c.b16 %v5096, %v5095
    %v5113 = vpack.c.b16 %v5098, %v5097
    %v5114 = vpack.c.b16 %v5100, %v5099
    %v5130 = vsel %vm4393, %v5015, 0
    %5132 = vmatprep.subr.bf16.mxu0 0
    %5133 = vmatpush1.bf16.msra.mxu0 %v5101
    %5134 = vmatprep.subr.bf16.mxu0 0
    %5135 = vmatpush1.bf16.msra.mxu0 %v5102
    %5136 = vmatprep.subr.bf16.mxu0 0
    %5137 = vmatpush1.bf16.msra.mxu0 %v5103
    %5138 = vmatprep.subr.bf16.mxu0 0
    %5139 = vmatpush1.bf16.msra.mxu0 %v5104
    %5140 = vmatprep.subr.bf16.mxu0 0
    %5141 = vmatpush1.bf16.msra.mxu0 %v5105
    %5142 = vmatprep.subr.bf16.mxu0 0
    %5143 = vmatpush1.bf16.msra.mxu0 %v5106
    %5144 = vmatprep.subr.bf16.mxu0 0
    %5145 = vmatpush1.bf16.msra.mxu0 %v5107
    %5146 = vmatprep.subr.bf16.mxu0 0
    %5147 = vmatpush1.bf16.msra.mxu0 %v5108
    %5148 = vmatprep.subr.bf16.mxu0 0
    %5149 = vmatpush1.bf16.msra.mxu0 %v5109
    %5150 = vmatprep.subr.bf16.mxu0 0
    %5151 = vmatpush1.bf16.msra.mxu0 %v5110
    %5152 = vmatprep.subr.bf16.mxu0 0
    %5153 = vmatpush1.bf16.msra.mxu0 %v5111
    %5154 = vmatprep.subr.bf16.mxu0 0
    %5155 = vmatpush1.bf16.msra.mxu0 %v5112
    %5156 = vmatprep.subr.bf16.mxu0 0
    %5157 = vmatpush1.bf16.msra.mxu0 %v5113
    %5158 = vmatprep.subr.bf16.mxu0 0
    %5159 = vmatpush1.bf16.msra.mxu0 %v5114
    %5160 = vmatprep.subr.bf16.mxu0 0
    %5161 = vmatpush1.bf16.msra.mxu0 0
    %5162 = vmatprep.subr.bf16.mxu0 0
    %5163 = vmatpush1.bf16.msra.mxu0 0
    %5164 = vmatprep.mubr.bf16.mxu0 %v5130
    %5165 = vmatmul.mubr.bf16.gmra.mrb[0].mxu0 %v5014
    %v5166 = vpop.f32.mrb[0].mxu0
    %v5167 = vadd.f32 0.0, %v5166
    %v5168 = vpop.f32.mrb[0].mxu0
    %v5169 = vpop.f32.mrb[0].mxu0
    %v5170 = vpop.f32.mrb[0].mxu0
    %5171 = vdwg.mxu0
    %v5172 = vadd.f32 %v4963, %v5167
    %s5173 = scalar_lea.vmem %s9, 6
    %v5174 = vld [vmem:[%s5173] sm:$0x3]
    %v5176 = vsel %vm4555, %v5174, 0
    %5178 = vmatprep.subr.bf16.mxu0 %v4564
    %5179 = vmatpush1.bf16.msra.mxu0 %v4561
    %5180 = vmatprep.subr.bf16.mxu0 0
    %5181 = vmatpush1.bf16.msra.mxu0 0
    %5182 = vmatprep.subr.bf16.mxu0 0
    %5183 = vmatpush1.bf16.msra.mxu0 0
    %5184 = vmatprep.subr.bf16.mxu0 0
    %5185 = vmatpush1.bf16.msra.mxu0 0
    %5186 = vmatprep.subr.bf16.mxu0 0
    %5187 = vmatpush1.bf16.msra.mxu0 0
    %5188 = vmatprep.subr.bf16.mxu0 0
    %5189 = vmatpush1.bf16.msra.mxu0 0
    %5190 = vmatprep.subr.bf16.mxu0 0
    %5191 = vmatpush1.bf16.msra.mxu0 0
    %5192 = vmatprep.subr.bf16.mxu0 0
    %5193 = vmatpush1.bf16.msra.mxu0 0
    %5194 = vmatprep.subr.bf16.mxu0 0
    %5195 = vmatpush1.bf16.msra.mxu0 0
    %5196 = vmatprep.subr.bf16.mxu0 0
    %5197 = vmatpush1.bf16.msra.mxu0 0
    %5198 = vmatprep.subr.bf16.mxu0 0
    %5199 = vmatpush1.bf16.msra.mxu0 0
    %5200 = vmatprep.subr.bf16.mxu0 0
    %5201 = vmatpush1.bf16.msra.mxu0 0
    %5202 = vmatprep.subr.bf16.mxu0 0
    %5203 = vmatpush1.bf16.msra.mxu0 0
    %5204 = vmatprep.subr.bf16.mxu0 0
    %5205 = vmatpush1.bf16.msra.mxu0 0
    %5206 = vmatprep.subr.bf16.mxu0 0
    %5207 = vmatpush1.bf16.msra.mxu0 0
    %5208 = vmatprep.subr.bf16.mxu0 0
    %5209 = vmatpush1.bf16.msra.mxu0 0
    %5210 = vmatprep.mubr.bf16.mxu0 0
    %5211 = vmatmul.mubr.bf16.gmra.mrb[0].mxu0 %v5176
    %v5212 = vpop.f32.mrb[0].mxu0
    %v5213 = vadd.f32 0.0, %v5212
    %v5214 = vpop.f32.mrb[0].mxu0
    %v5215 = vadd.f32 0.0, %v5214
    %v5216 = vpop.f32.mrb[0].mxu0
    %v5217 = vpop.f32.mrb[0].mxu0
    %5218 = vdwg.mxu0
    %v5219 = vpack.c.bf16 %v5213, %v5213
    %v5220 = vpack.c.bf16 %v5215, %v5215
    %s5221 = scalar_lea.vmem %s10, 336
    %v5222 = vld [vmem:[%s5221] sm:$0xf]
    %v5223 = vld [vmem:[%s5221 + $0x4] sm:$0xf]
    %v5224 = vld [vmem:[%s5221 + $0x8] sm:$0xf]
    %v5225 = vld [vmem:[%s5221 + $0xc] sm:$0xf]
    %v5226 = vld [vmem:[%s5221 + $0x10] sm:$0xf]
    %v5227 = vld [vmem:[%s5221 + $0x14] sm:$0xf]
    %v5228 = vld [vmem:[%s5221 + $0x18] sm:$0xf]
    %v5229 = vld [vmem:[%s5221 + $0x1c] sm:$0xf]
    %v5230 = vld [vmem:[%s5221 + $0x20] sm:$0xf]
    %v5231 = vld [vmem:[%s5221 + $0x24] sm:$0xf]
    %v5232 = vld [vmem:[%s5221 + $0x28] sm:$0xf]
    %v5233 = vld [vmem:[%s5221 + $0x2c] sm:$0xf]
    %v5234 = vld [vmem:[%s5221 + $0x30] sm:$0xf]
    %v5235 = vld [vmem:[%s5221 + $0x34] sm:$0xf]
    %v5236 = vld [vmem:[%s5221 + $0x38] sm:$0xf]
    %v5237 = vld [vmem:[%s5221 + $0x3c] sm:$0xf]
    %v5238 = vld [vmem:[%s5221 + $0x40] sm:$0xf]
    %v5239 = vld [vmem:[%s5221 + $0x44] sm:$0xf]
    %v5240 = vld [vmem:[%s5221 + $0x48] sm:$0xf]
    %v5241 = vld [vmem:[%s5221 + $0x4c] sm:$0xf]
    %v5242 = vld [vmem:[%s5221 + $0x50] sm:$0xf]
    %v5243 = vld [vmem:[%s5221 + $0x54] sm:$0xf]
    %v5244 = vld [vmem:[%s5221 + $0x58] sm:$0xf]
    %v5245 = vld [vmem:[%s5221 + $0x5c] sm:$0xf]
    %v5246 = vld [vmem:[%s5221 + $0x60] sm:$0xf]
    %v5247 = vld [vmem:[%s5221 + $0x64] sm:$0xf]
    %v5248 = vld [vmem:[%s5221 + $0x68] sm:$0xf]
    %v5249 = vld [vmem:[%s5221 + $0x6c] sm:$0xf]
    %v5278 = vunpack.c.l.b16 %v5222
    %v5279 = vunpack.c.l.b16 %v5223
    %v5280 = vunpack.c.l.b16 %v5224
    %v5281 = vunpack.c.l.b16 %v5225
    %v5282 = vunpack.c.l.b16 %v5226
    %v5283 = vunpack.c.l.b16 %v5227
    %v5284 = vunpack.c.l.b16 %v5228
    %v5285 = vunpack.c.l.b16 %v5229
    %v5286 = vunpack.c.l.b16 %v5230
    %v5287 = vunpack.c.l.b16 %v5231
    %v5288 = vunpack.c.l.b16 %v5232
    %v5289 = vunpack.c.l.b16 %v5233
    %v5290 = vunpack.c.l.b16 %v5234
    %v5291 = vunpack.c.l.b16 %v5235
    %v5292 = vunpack.c.l.b16 %v5236
    %v5293 = vunpack.c.l.b16 %v5237
    %v5294 = vunpack.c.l.b16 %v5238
    %v5295 = vunpack.c.l.b16 %v5239
    %v5296 = vunpack.c.l.b16 %v5240
    %v5297 = vunpack.c.l.b16 %v5241
    %v5298 = vunpack.c.l.b16 %v5242
    %v5299 = vunpack.c.l.b16 %v5243
    %v5300 = vunpack.c.l.b16 %v5244
    %v5301 = vunpack.c.l.b16 %v5245
    %v5302 = vunpack.c.l.b16 %v5246
    %v5303 = vunpack.c.l.b16 %v5247
    %v5304 = vunpack.c.l.b16 %v5248
    %v5305 = vunpack.c.l.b16 %v5249
    %v5306 = vpack.c.b16 %v5279, %v5278
    %v5307 = vpack.c.b16 %v5281, %v5280
    %v5308 = vpack.c.b16 %v5283, %v5282
    %v5309 = vpack.c.b16 %v5285, %v5284
    %v5310 = vpack.c.b16 %v5287, %v5286
    %v5311 = vpack.c.b16 %v5289, %v5288
    %v5312 = vpack.c.b16 %v5291, %v5290
    %v5313 = vpack.c.b16 %v5293, %v5292
    %v5314 = vpack.c.b16 %v5295, %v5294
    %v5315 = vpack.c.b16 %v5297, %v5296
    %v5316 = vpack.c.b16 %v5299, %v5298
    %v5317 = vpack.c.b16 %v5301, %v5300
    %v5318 = vpack.c.b16 %v5303, %v5302
    %v5319 = vpack.c.b16 %v5305, %v5304
    %v5335 = vsel %vm4393, %v5220, 0
    %5337 = vmatprep.subr.bf16.mxu0 0
    %5338 = vmatpush1.bf16.msra.mxu0 %v5306
    %5339 = vmatprep.subr.bf16.mxu0 0
    %5340 = vmatpush1.bf16.msra.mxu0 %v5307
    %5341 = vmatprep.subr.bf16.mxu0 0
    %5342 = vmatpush1.bf16.msra.mxu0 %v5308
    %5343 = vmatprep.subr.bf16.mxu0 0
    %5344 = vmatpush1.bf16.msra.mxu0 %v5309
    %5345 = vmatprep.subr.bf16.mxu0 0
    %5346 = vmatpush1.bf16.msra.mxu0 %v5310
    %5347 = vmatprep.subr.bf16.mxu0 0
    %5348 = vmatpush1.bf16.msra.mxu0 %v5311
    %5349 = vmatprep.subr.bf16.mxu0 0
    %5350 = vmatpush1.bf16.msra.mxu0 %v5312
    %5351 = vmatprep.subr.bf16.mxu0 0
    %5352 = vmatpush1.bf16.msra.mxu0 %v5313
    %5353 = vmatprep.subr.bf16.mxu0 0
    %5354 = vmatpush1.bf16.msra.mxu0 %v5314
    %5355 = vmatprep.subr.bf16.mxu0 0
    %5356 = vmatpush1.bf16.msra.mxu0 %v5315
    %5357 = vmatprep.subr.bf16.mxu0 0
    %5358 = vmatpush1.bf16.msra.mxu0 %v5316
    %5359 = vmatprep.subr.bf16.mxu0 0
    %5360 = vmatpush1.bf16.msra.mxu0 %v5317
    %5361 = vmatprep.subr.bf16.mxu0 0
    %5362 = vmatpush1.bf16.msra.mxu0 %v5318
    %5363 = vmatprep.subr.bf16.mxu0 0
    %5364 = vmatpush1.bf16.msra.mxu0 %v5319
    %5365 = vmatprep.subr.bf16.mxu0 0
    %5366 = vmatpush1.bf16.msra.mxu0 0
    %5367 = vmatprep.subr.bf16.mxu0 0
    %5368 = vmatpush1.bf16.msra.mxu0 0
    %5369 = vmatprep.mubr.bf16.mxu0 %v5335
    %5370 = vmatmul.mubr.bf16.gmra.mrb[0].mxu0 %v5219
    %v5371 = vpop.f32.mrb[0].mxu0
    %v5372 = vadd.f32 0.0, %v5371
    %v5373 = vpop.f32.mrb[0].mxu0
    %v5374 = vpop.f32.mrb[0].mxu0
    %v5375 = vpop.f32.mrb[0].mxu0
    %5376 = vdwg.mxu0
    %v5377 = vadd.f32 %v5172, %v5372
    %s5378 = scalar_lea.vmem %s9, 8
    %v5379 = vld [vmem:[%s5378] sm:$0x3]
    %v5381 = vsel %vm4555, %v5379, 0
    %5383 = vmatprep.subr.bf16.mxu0 %v4564
    %5384 = vmatpush1.bf16.msra.mxu0 %v4561
    %5385 = vmatprep.subr.bf16.mxu0 0
    %5386 = vmatpush1.bf16.msra.mxu0 0
    %5387 = vmatprep.subr.bf16.mxu0 0
    %5388 = vmatpush1.bf16.msra.mxu0 0
    %5389 = vmatprep.subr.bf16.mxu0 0
    %5390 = vmatpush1.bf16.msra.mxu0 0
    %5391 = vmatprep.subr.bf16.mxu0 0
    %5392 = vmatpush1.bf16.msra.mxu0 0
    %5393 = vmatprep.subr.bf16.mxu0 0
    %5394 = vmatpush1.bf16.msra.mxu0 0
    %5395 = vmatprep.subr.bf16.mxu0 0
    %5396 = vmatpush1.bf16.msra.mxu0 0
    %5397 = vmatprep.subr.bf16.mxu0 0
    %5398 = vmatpush1.bf16.msra.mxu0 0
    %5399 = vmatprep.subr.bf16.mxu0 0
    %5400 = vmatpush1.bf16.msra.mxu0 0
    %5401 = vmatprep.subr.bf16.mxu0 0
    %5402 = vmatpush1.bf16.msra.mxu0 0
    %5403 = vmatprep.subr.bf16.mxu0 0
    %5404 = vmatpush1.bf16.msra.mxu0 0
    %5405 = vmatprep.subr.bf16.mxu0 0
    %5406 = vmatpush1.bf16.msra.mxu0 0
    %5407 = vmatprep.subr.bf16.mxu0 0
    %5408 = vmatpush1.bf16.msra.mxu0 0
    %5409 = vmatprep.subr.bf16.mxu0 0
    %5410 = vmatpush1.bf16.msra.mxu0 0
    %5411 = vmatprep.subr.bf16.mxu0 0
    %5412 = vmatpush1.bf16.msra.mxu0 0
    %5413 = vmatprep.subr.bf16.mxu0 0
    %5414 = vmatpush1.bf16.msra.mxu0 0
    %5415 = vmatprep.mubr.bf16.mxu0 0
    %5416 = vmatmul.mubr.bf16.gmra.mrb[0].mxu0 %v5381
    %v5417 = vpop.f32.mrb[0].mxu0
    %v5418 = vadd.f32 0.0, %v5417
    %v5419 = vpop.f32.mrb[0].mxu0
    %v5420 = vadd.f32 0.0, %v5419
    %v5421 = vpop.f32.mrb[0].mxu0
    %v5422 = vpop.f32.mrb[0].mxu0
    %5423 = vdwg.mxu0
    %v5424 = vpack.c.bf16 %v5418, %v5418
    %v5425 = vpack.c.bf16 %v5420, %v5420
    %s5426 = scalar_lea.vmem %s10, 448
    %v5427 = vld [vmem:[%s5426] sm:$0xf]
    %v5428 = vld [vmem:[%s5426 + $0x4] sm:$0xf]
    %v5429 = vld [vmem:[%s5426 + $0x8] sm:$0xf]
    %v5430 = vld [vmem:[%s5426 + $0xc] sm:$0xf]
    %v5431 = vld [vmem:[%s5426 + $0x10] sm:$0xf]
    %v5432 = vld [vmem:[%s5426 + $0x14] sm:$0xf]
    %v5433 = vld [vmem:[%s5426 + $0x18] sm:$0xf]
    %v5434 = vld [vmem:[%s5426 + $0x1c] sm:$0xf]
    %v5435 = vld [vmem:[%s5426 + $0x20] sm:$0xf]
    %v5436 = vld [vmem:[%s5426 + $0x24] sm:$0xf]
    %v5437 = vld [vmem:[%s5426 + $0x28] sm:$0xf]
    %v5438 = vld [vmem:[%s5426 + $0x2c] sm:$0xf]
    %v5439 = vld [vmem:[%s5426 + $0x30] sm:$0xf]
    %v5440 = vld [vmem:[%s5426 + $0x34] sm:$0xf]
    %v5441 = vld [vmem:[%s5426 + $0x38] sm:$0xf]
    %v5442 = vld [vmem:[%s5426 + $0x3c] sm:$0xf]
    %v5443 = vld [vmem:[%s5426 + $0x40] sm:$0xf]
    %v5444 = vld [vmem:[%s5426 + $0x44] sm:$0xf]
    %v5445 = vld [vmem:[%s5426 + $0x48] sm:$0xf]
    %v5446 = vld [vmem:[%s5426 + $0x4c] sm:$0xf]
    %v5447 = vld [vmem:[%s5426 + $0x50] sm:$0xf]
    %v5448 = vld [vmem:[%s5426 + $0x54] sm:$0xf]
    %v5449 = vld [vmem:[%s5426 + $0x58] sm:$0xf]
    %v5450 = vld [vmem:[%s5426 + $0x5c] sm:$0xf]
    %v5451 = vld [vmem:[%s5426 + $0x60] sm:$0xf]
    %v5452 = vld [vmem:[%s5426 + $0x64] sm:$0xf]
    %v5453 = vld [vmem:[%s5426 + $0x68] sm:$0xf]
    %v5454 = vld [vmem:[%s5426 + $0x6c] sm:$0xf]
    %v5483 = vunpack.c.l.b16 %v5427
    %v5484 = vunpack.c.l.b16 %v5428
    %v5485 = vunpack.c.l.b16 %v5429
    %v5486 = vunpack.c.l.b16 %v5430
    %v5487 = vunpack.c.l.b16 %v5431
    %v5488 = vunpack.c.l.b16 %v5432
    %v5489 = vunpack.c.l.b16 %v5433
    %v5490 = vunpack.c.l.b16 %v5434
    %v5491 = vunpack.c.l.b16 %v5435
    %v5492 = vunpack.c.l.b16 %v5436
    %v5493 = vunpack.c.l.b16 %v5437
    %v5494 = vunpack.c.l.b16 %v5438
    %v5495 = vunpack.c.l.b16 %v5439
    %v5496 = vunpack.c.l.b16 %v5440
    %v5497 = vunpack.c.l.b16 %v5441
    %v5498 = vunpack.c.l.b16 %v5442
    %v5499 = vunpack.c.l.b16 %v5443
    %v5500 = vunpack.c.l.b16 %v5444
    %v5501 = vunpack.c.l.b16 %v5445
    %v5502 = vunpack.c.l.b16 %v5446
    %v5503 = vunpack.c.l.b16 %v5447
    %v5504 = vunpack.c.l.b16 %v5448
    %v5505 = vunpack.c.l.b16 %v5449
    %v5506 = vunpack.c.l.b16 %v5450
    %v5507 = vunpack.c.l.b16 %v5451
    %v5508 = vunpack.c.l.b16 %v5452
    %v5509 = vunpack.c.l.b16 %v5453
    %v5510 = vunpack.c.l.b16 %v5454
    %v5511 = vpack.c.b16 %v5484, %v5483
    %v5512 = vpack.c.b16 %v5486, %v5485
    %v5513 = vpack.c.b16 %v5488, %v5487
    %v5514 = vpack.c.b16 %v5490, %v5489
    %v5515 = vpack.c.b16 %v5492, %v5491
    %v5516 = vpack.c.b16 %v5494, %v5493
    %v5517 = vpack.c.b16 %v5496, %v5495
    %v5518 = vpack.c.b16 %v5498, %v5497
    %v5519 = vpack.c.b16 %v5500, %v5499
    %v5520 = vpack.c.b16 %v5502, %v5501
    %v5521 = vpack.c.b16 %v5504, %v5503
    %v5522 = vpack.c.b16 %v5506, %v5505
    %v5523 = vpack.c.b16 %v5508, %v5507
    %v5524 = vpack.c.b16 %v5510, %v5509
    %v5540 = vsel %vm4393, %v5425, 0
    %5542 = vmatprep.subr.bf16.mxu0 0
    %5543 = vmatpush1.bf16.msra.mxu0 %v5511
    %5544 = vmatprep.subr.bf16.mxu0 0
    %5545 = vmatpush1.bf16.msra.mxu0 %v5512
    %5546 = vmatprep.subr.bf16.mxu0 0
    %5547 = vmatpush1.bf16.msra.mxu0 %v5513
    %5548 = vmatprep.subr.bf16.mxu0 0
    %5549 = vmatpush1.bf16.msra.mxu0 %v5514
    %5550 = vmatprep.subr.bf16.mxu0 0
    %5551 = vmatpush1.bf16.msra.mxu0 %v5515
    %5552 = vmatprep.subr.bf16.mxu0 0
    %5553 = vmatpush1.bf16.msra.mxu0 %v5516
    %5554 = vmatprep.subr.bf16.mxu0 0
    %5555 = vmatpush1.bf16.msra.mxu0 %v5517
    %5556 = vmatprep.subr.bf16.mxu0 0
    %5557 = vmatpush1.bf16.msra.mxu0 %v5518
    %5558 = vmatprep.subr.bf16.mxu0 0
    %5559 = vmatpush1.bf16.msra.mxu0 %v5519
    %5560 = vmatprep.subr.bf16.mxu0 0
    %5561 = vmatpush1.bf16.msra.mxu0 %v5520
    %5562 = vmatprep.subr.bf16.mxu0 0
    %5563 = vmatpush1.bf16.msra.mxu0 %v5521
    %5564 = vmatprep.subr.bf16.mxu0 0
    %5565 = vmatpush1.bf16.msra.mxu0 %v5522
    %5566 = vmatprep.subr.bf16.mxu0 0
    %5567 = vmatpush1.bf16.msra.mxu0 %v5523
    %5568 = vmatprep.subr.bf16.mxu0 0
    %5569 = vmatpush1.bf16.msra.mxu0 %v5524
    %5570 = vmatprep.subr.bf16.mxu0 0
    %5571 = vmatpush1.bf16.msra.mxu0 0
    %5572 = vmatprep.subr.bf16.mxu0 0
    %5573 = vmatpush1.bf16.msra.mxu0 0
    %5574 = vmatprep.mubr.bf16.mxu0 %v5540
    %5575 = vmatmul.mubr.bf16.gmra.mrb[0].mxu0 %v5424
    %v5576 = vpop.f32.mrb[0].mxu0
    %v5577 = vadd.f32 0.0, %v5576
    %v5578 = vpop.f32.mrb[0].mxu0
    %v5579 = vpop.f32.mrb[0].mxu0
    %v5580 = vpop.f32.mrb[0].mxu0
    %5581 = vdwg.mxu0
    %v5582 = vadd.f32 %v5377, %v5577
    %vm5583 = vcmask 519168
    %v5584 = vsel %vm5583, %v5582, 0.0
    %v5585 = vrot.slane %v5584, 4
    %v5586 = vadd.f32 %v5584, %v5585
    %v5587 = vrot.slane %v5586, 2
    %v5588 = vadd.f32 %v5586, %v5587
    %v5589 = vrot.slane %v5588, 1
    %v5590 = vadd.f32 %v5588, %v5589
    %v5591 = vmul.f32 %v5582, %v5582
    %v5592 = vsel %vm5583, %v5591, 0.0
    %v5593 = vrot.slane %v5592, 4
    %v5594 = vadd.f32 %v5592, %v5593
    %v5595 = vrot.slane %v5594, 2
    %v5596 = vadd.f32 %v5594, %v5595
    %v5597 = vrot.slane %v5596, 1
    %v5598 = vadd.f32 %v5596, %v5597
    %5600 = vrot.lane.b32.xlu0 %v5590, 96
    %v5601 = vpop.permute.xlu0 %5600
    %v5603 = vadd.f32 %v5590, %v5601
    %5605 = vrot.lane.b32.xlu0 %v5598, 96
    %v5606 = vpop.permute.xlu0 %5605
    %v5608 = vadd.f32 %v5598, %v5606
    %v5609 = vmul.f32 %v5603, 0.125
    %v5610 = vmul.f32 %v5608, 0.125
    %v5611 = vmul.f32 %v5609, %v5609
    %v5612 = vsub.f32 %v5610, %v5611
    %v5613 = vld [vmem:[%s11] sm:$0x1]
    %v5614 = vadd.f32 %v5612, 1e-05
    %v5615 = vrsqrt.pop %v5614
    %v5616 = vmul.f32 %v5613, %v5615
    %v5617 = vld [vmem:[%s12] sm:$0x1]
    %v5618 = vmul.f32 %v5609, %v5616
    %v5619 = vsub.f32 %v5617, %v5618
    %v5621 = vlaneseq
    %v5622 = vshrl.u32 %v5621, 7
    %v5623 = vsub.s32 0, %v5622
    %v5624 = vrot.slane %v5616, %v5623
    %5625 = vrot.lane.b32.xlu0 %v5624, 32
    %v5626 = vpop.permute.xlu0 %5625
    %v5628 = vsel %vm2028, %v5616, %v5626
    %v5630 = vlaneseq
    %v5631 = vshrl.u32 %v5630, 7
    %v5632 = vsub.s32 0, %v5631
    %v5633 = vrot.slane %v5619, %v5632
    %5634 = vrot.lane.b32.xlu0 %v5633, 32
    %v5635 = vpop.permute.xlu0 %5634
    %v5637 = vsel %vm2028, %v5619, %v5635
    %v5638 = vlaneseq
    %v5639 = vshrl.u32 %v5638, 7
    %v5640 = vsub.s32 0, %v5639
    %v5641 = vrot.slane %v5628, %v5640
    %v5642 = vmul.f32 %v5582, %v5641
    %v5643 = vlaneseq
    %v5644 = vshrl.u32 %v5643, 7
    %v5645 = vsub.s32 0, %v5644
    %v5646 = vrot.slane %v5637, %v5645
    %v5647 = vadd.f32 %v5642, %v5646
    %v5648 = vpack.c.bf16 %v5647, %v5647
    %v5649 = vld [vmem:[%s13] sm:$0x1]
    %vm5650 = vcmask 31744
    %v5652 = vsel %vm5650, %v5649, 0
    %v5655 = vsel %vm2354, %v5648, 0
    %5657 = vmatprep.subr.bf16.mxu0 0
    %5658 = vmatpush1.bf16.msra.mxu0 %v5655
    %5659 = vmatprep.subr.bf16.mxu0 0
    %5660 = vmatpush1.bf16.msra.mxu0 0
    %5661 = vmatprep.subr.bf16.mxu0 0
    %5662 = vmatpush1.bf16.msra.mxu0 0
    %5663 = vmatprep.subr.bf16.mxu0 0
    %5664 = vmatpush1.bf16.msra.mxu0 0
    %5665 = vmatprep.subr.bf16.mxu0 0
    %5666 = vmatpush1.bf16.msra.mxu0 0
    %5667 = vmatprep.subr.bf16.mxu0 0
    %5668 = vmatpush1.bf16.msra.mxu0 0
    %5669 = vmatprep.subr.bf16.mxu0 0
    %5670 = vmatpush1.bf16.msra.mxu0 0
    %5671 = vmatprep.subr.bf16.mxu0 0
    %5672 = vmatpush1.bf16.msra.mxu0 0
    %5673 = vmatprep.subr.bf16.mxu0 0
    %5674 = vmatpush1.bf16.msra.mxu0 0
    %5675 = vmatprep.subr.bf16.mxu0 0
    %5676 = vmatpush1.bf16.msra.mxu0 0
    %5677 = vmatprep.subr.bf16.mxu0 0
    %5678 = vmatpush1.bf16.msra.mxu0 0
    %5679 = vmatprep.subr.bf16.mxu0 0
    %5680 = vmatpush1.bf16.msra.mxu0 0
    %5681 = vmatprep.subr.bf16.mxu0 0
    %5682 = vmatpush1.bf16.msra.mxu0 0
    %5683 = vmatprep.subr.bf16.mxu0 0
    %5684 = vmatpush1.bf16.msra.mxu0 0
    %5685 = vmatprep.subr.bf16.mxu0 0
    %5686 = vmatpush1.bf16.msra.mxu0 0
    %5687 = vmatprep.subr.bf16.mxu0 0
    %5688 = vmatpush1.bf16.msra.mxu0 0
    %5689 = vmatprep.mubr.bf16.mxu0 0
    %5690 = vmatmul.mubr.bf16.gmra.mrb[0].mxu0 %v5652
    %v5691 = vpop.f32.mrb[0].mxu0
    %v5692 = vadd.f32 0.0, %v5691
    %v5693 = vpop.f32.mrb[0].mxu0
    %v5694 = vpop.f32.mrb[0].mxu0
    %v5695 = vpop.f32.mrb[0].mxu0
    %5696 = vdwg.mxu0
    %v5697 = vpack.c.bf16 %v5692, %v5692
    %v5698 = vld [vmem:[%s14] sm:$0xf]
    %v5699 = vld [vmem:[%s14 + $0x4] sm:$0xf]
    %v5700 = vld [vmem:[%s14 + $0x8] sm:$0xf]
    %v5701 = vld [vmem:[%s14 + $0xc] sm:$0xf]
    %v5702 = vld [vmem:[%s14 + $0x10] sm:$0xf]
    %v5703 = vld [vmem:[%s14 + $0x14] sm:$0xf]
    %v5704 = vld [vmem:[%s14 + $0x18] sm:$0xf]
    %v5705 = vld [vmem:[%s14 + $0x1c] sm:$0xf]
    %s5706 = scalar_lea.vmem %s13, 1
    %v5707 = vld [vmem:[%s5706] sm:$0x1]
    %v5709 = vsel %vm5650, %v5707, 0
    %5711 = vmatprep.subr.bf16.mxu0 0
    %5712 = vmatpush1.bf16.msra.mxu0 %v5655
    %5713 = vmatprep.subr.bf16.mxu0 0
    %5714 = vmatpush1.bf16.msra.mxu0 0
    %5715 = vmatprep.subr.bf16.mxu0 0
    %5716 = vmatpush1.bf16.msra.mxu0 0
    %5717 = vmatprep.subr.bf16.mxu0 0
    %5718 = vmatpush1.bf16.msra.mxu0 0
    %5719 = vmatprep.subr.bf16.mxu0 0
    %5720 = vmatpush1.bf16.msra.mxu0 0
    %5721 = vmatprep.subr.bf16.mxu0 0
    %5722 = vmatpush1.bf16.msra.mxu0 0
    %5723 = vmatprep.subr.bf16.mxu0 0
    %5724 = vmatpush1.bf16.msra.mxu0 0
    %5725 = vmatprep.subr.bf16.mxu0 0
    %5726 = vmatpush1.bf16.msra.mxu0 0
    %5727 = vmatprep.subr.bf16.mxu0 0
    %5728 = vmatpush1.bf16.msra.mxu0 0
    %5729 = vmatprep.subr.bf16.mxu0 0
    %5730 = vmatpush1.bf16.msra.mxu0 0
    %5731 = vmatprep.subr.bf16.mxu0 0
    %5732 = vmatpush1.bf16.msra.mxu0 0
    %5733 = vmatprep.subr.bf16.mxu0 0
    %5734 = vmatpush1.bf16.msra.mxu0 0
    %5735 = vmatprep.subr.bf16.mxu0 0
    %5736 = vmatpush1.bf16.msra.mxu0 0
    %5737 = vmatprep.subr.bf16.mxu0 0
    %5738 = vmatpush1.bf16.msra.mxu0 0
    %5739 = vmatprep.subr.bf16.mxu0 0
    %5740 = vmatpush1.bf16.msra.mxu0 0
    %5741 = vmatprep.subr.bf16.mxu0 0
    %5742 = vmatpush1.bf16.msra.mxu0 0
    %5743 = vmatprep.mubr.bf16.mxu0 0
    %5744 = vmatmul.mubr.bf16.gmra.mrb[0].mxu0 %v5709
    %v5745 = vpop.f32.mrb[0].mxu0
    %v5746 = vadd.f32 0.0, %v5745
    %v5747 = vpop.f32.mrb[0].mxu0
    %v5748 = vpop.f32.mrb[0].mxu0
    %v5749 = vpop.f32.mrb[0].mxu0
    %5750 = vdwg.mxu0
    %v5751 = vpack.c.bf16 %v5746, %v5746
    %s5752 = scalar_lea.vmem %s14, 32
    %v5753 = vld [vmem:[%s5752] sm:$0xf]
    %v5754 = vld [vmem:[%s5752 + $0x4] sm:$0xf]
    %v5755 = vld [vmem:[%s5752 + $0x8] sm:$0xf]
    %v5756 = vld [vmem:[%s5752 + $0xc] sm:$0xf]
    %v5757 = vld [vmem:[%s5752 + $0x10] sm:$0xf]
    %v5758 = vld [vmem:[%s5752 + $0x14] sm:$0xf]
    %v5759 = vld [vmem:[%s5752 + $0x18] sm:$0xf]
    %v5760 = vld [vmem:[%s5752 + $0x1c] sm:$0xf]
    %v5769 = vunpack.c.l.b16 %v5753
    %v5770 = vunpack.c.l.b16 %v5754
    %v5771 = vunpack.c.l.b16 %v5755
    %v5772 = vunpack.c.l.b16 %v5756
    %v5773 = vunpack.c.l.b16 %v5757
    %v5774 = vunpack.c.l.b16 %v5758
    %v5775 = vunpack.c.l.b16 %v5759
    %v5776 = vunpack.c.l.b16 %v5760
    %v5777 = vpack.c.b16 %v5770, %v5769
    %v5778 = vpack.c.b16 %v5772, %v5771
    %v5779 = vpack.c.b16 %v5774, %v5773
    %v5780 = vpack.c.b16 %v5776, %v5775
    %v5786 = vsel %vm2257, %v5751, 0
    %5788 = vmatprep.subr.bf16.mxu0 0
    %5789 = vmatpush1.bf16.msra.mxu0 %v5777
    %5790 = vmatprep.subr.bf16.mxu0 0
    %5791 = vmatpush1.bf16.msra.mxu0 %v5778
    %5792 = vmatprep.subr.bf16.mxu0 0
    %5793 = vmatpush1.bf16.msra.mxu0 %v5779
    %5794 = vmatprep.subr.bf16.mxu0 0
    %5795 = vmatpush1.bf16.msra.mxu0 %v5780
    %5796 = vmatprep.subr.bf16.mxu0 0
    %5797 = vmatpush1.bf16.msra.mxu0 0
    %5798 = vmatprep.subr.bf16.mxu0 0
    %5799 = vmatpush1.bf16.msra.mxu0 0
    %5800 = vmatprep.subr.bf16.mxu0 0
    %5801 = vmatpush1.bf16.msra.mxu0 0
    %5802 = vmatprep.subr.bf16.mxu0 0
    %5803 = vmatpush1.bf16.msra.mxu0 0
    %5804 = vmatprep.subr.bf16.mxu0 0
    %5805 = vmatpush1.bf16.msra.mxu0 0
    %5806 = vmatprep.subr.bf16.mxu0 0
    %5807 = vmatpush1.bf16.msra.mxu0 0
    %5808 = vmatprep.subr.bf16.mxu0 0
    %5809 = vmatpush1.bf16.msra.mxu0 0
    %5810 = vmatprep.subr.bf16.mxu0 0
    %5811 = vmatpush1.bf16.msra.mxu0 0
    %5812 = vmatprep.subr.bf16.mxu0 0
    %5813 = vmatpush1.bf16.msra.mxu0 0
    %5814 = vmatprep.subr.bf16.mxu0 0
    %5815 = vmatpush1.bf16.msra.mxu0 0
    %5816 = vmatprep.subr.bf16.mxu0 0
    %5817 = vmatpush1.bf16.msra.mxu0 0
    %5818 = vmatprep.subr.bf16.mxu0 0
    %5819 = vmatpush1.bf16.msra.mxu0 0
    %5820 = vmatprep.mubr.bf16.mxu0 0
    %5821 = vmatmul.mubr.bf16.gmra.mrb[0].mxu0 %v5786
    %v5822 = vpop.f32.mrb[0].mxu0
    %v5823 = vadd.f32 0.0, %v5822
    %v5824 = vpop.f32.mrb[0].mxu0
    %v5825 = vpop.f32.mrb[0].mxu0
    %v5826 = vpop.f32.mrb[0].mxu0
    %5827 = vdwg.mxu0
    %v5836 = vunpack.c.l.b16 %v5698
    %v5837 = vunpack.c.l.b16 %v5699
    %v5838 = vunpack.c.l.b16 %v5700
    %v5839 = vunpack.c.l.b16 %v5701
    %v5840 = vunpack.c.l.b16 %v5702
    %v5841 = vunpack.c.l.b16 %v5703
    %v5842 = vunpack.c.l.b16 %v5704
    %v5843 = vunpack.c.l.b16 %v5705
    %v5844 = vpack.c.b16 %v5837, %v5836
    %v5845 = vpack.c.b16 %v5839, %v5838
    %v5846 = vpack.c.b16 %v5841, %v5840
    %v5847 = vpack.c.b16 %v5843, %v5842
    %v5853 = vsel %vm2257, %v5697, 0
    %5855 = vmatprep.subr.bf16.mxu0 0
    %5856 = vmatpush1.bf16.msra.mxu0 %v5844
    %5857 = vmatprep.subr.bf16.mxu0 0
    %5858 = vmatpush1.bf16.msra.mxu0 %v5845
    %5859 = vmatprep.subr.bf16.mxu0 0
    %5860 = vmatpush1.bf16.msra.mxu0 %v5846
    %5861 = vmatprep.subr.bf16.mxu0 0
    %5862 = vmatpush1.bf16.msra.mxu0 %v5847
    %5863 = vmatprep.subr.bf16.mxu0 0
    %5864 = vmatpush1.bf16.msra.mxu0 0
    %5865 = vmatprep.subr.bf16.mxu0 0
    %5866 = vmatpush1.bf16.msra.mxu0 0
    %5867 = vmatprep.subr.bf16.mxu0 0
    %5868 = vmatpush1.bf16.msra.mxu0 0
    %5869 = vmatprep.subr.bf16.mxu0 0
    %5870 = vmatpush1.bf16.msra.mxu0 0
    %5871 = vmatprep.subr.bf16.mxu0 0
    %5872 = vmatpush1.bf16.msra.mxu0 0
    %5873 = vmatprep.subr.bf16.mxu0 0
    %5874 = vmatpush1.bf16.msra.mxu0 0
    %5875 = vmatprep.subr.bf16.mxu0 0
    %5876 = vmatpush1.bf16.msra.mxu0 0
    %5877 = vmatprep.subr.bf16.mxu0 0
    %5878 = vmatpush1.bf16.msra.mxu0 0
    %5879 = vmatprep.subr.bf16.mxu0 0
    %5880 = vmatpush1.bf16.msra.mxu0 0
    %5881 = vmatprep.subr.bf16.mxu0 0
    %5882 = vmatpush1.bf16.msra.mxu0 0
    %5883 = vmatprep.subr.bf16.mxu0 0
    %5884 = vmatpush1.bf16.msra.mxu0 0
    %5885 = vmatprep.subr.bf16.mxu0 0
    %5886 = vmatpush1.bf16.msra.mxu0 0
    %5887 = vmatprep.mubr.bf16.mxu0 0
    %5888 = vmatmul.mubr.bf16.gmra.mrb[0].mxu0 %v5853
    %v5889 = vpop.f32.mrb[0].mxu0
    %v5890 = vadd.f32 %v5823, %v5889
    %v5891 = vpop.f32.mrb[0].mxu0
    %v5892 = vpop.f32.mrb[0].mxu0
    %v5893 = vpop.f32.mrb[0].mxu0
    %5894 = vdwg.mxu0
    %v5895 = vld [vmem:[%s15] sm:$0x1]
    %v5897 = vlaneseq
    %v5898 = vshrl.u32 %v5897, 7
    %v5899 = vsub.s32 0, %v5898
    %v5900 = vrot.slane %v5895, %v5899
    %v5902 = vadd.f32 %v5890, %v5900
    %vm5903 = vcmask 25600
    %5904 = vst.msk [vmem:[#allocation2] sm:$0x3] %vm5903, %v5902
    // Predicated region
    $region66: #{dqn_forward.1} parent=1 // pred_check
      _
    $region67: #{dqn_forward.1} parent=1 // pred_check_branch
      %5906 = sbr.rel (0) target = $region69
    $region68: #{dqn_forward.1} parent=1 // pred_region
      %s5908 = ssub.s32 32, 32
      %5909 = vsyncadd [#allocation3], %s5908
      %s5911 = sshll.u32 [#allocation2], 4
      %s5912 = int_to_ptr.vmem [resolvable:$true] %s5911
      %5914 = dma.vmem_to_hbm [thread:$0]  %s5912, 32, %s16, [#allocation3]
    $region69: #{dqn_forward.1} parent=1 // pred_fallthru
      _
    // Predicated region
    $region70: #{dqn_forward.1} parent=1 // pred_check
      _
    $region71: #{dqn_forward.1} parent=1 // pred_check_branch
      %5916 = sbr.rel (0) target = $region73
    $region72: #{dqn_forward.1} parent=1 // pred_region
      %5917 = dma.done [#allocation3], 32
    $region73: #{dqn_forward.1} parent=1 // pred_fallthru
      _
    %5918 = vsyncpa [#allocation3], 1

</llo_original>
